<compile_context>
chip_gen: v7x
topology: tpu7x:2x2x1
jax: 0.10.0
libtpu: 0.0.40
codegen_flags: <defaults>
</compile_context>

<pallas_src>
import jax
import jax.numpy as jnp
import numpy as np
from jax.experimental import pallas as pl
from jax.experimental.pallas import tpu as pltpu


# -----------------------------------------------------------------------------
# Fused kernel: 2-layer LSTM + classifier + log-softmax + NLL, single invocation.
# All shapes are already padded lane/sublane-dense by the wrapper.
# -----------------------------------------------------------------------------
def _network_kernel(x_ref, wih0_ref, b0_ref, whh0_ref,
                    wih1_ref, b1_ref, whh1_ref,
                    wcls_ref, bcls_ref, tgt_ref, nllw_ref,
                    logprob_ref, loss_ref):
    T, Bp, Ip = x_ref.shape
    Hp = whh0_ref.shape[0]
    Cp = wcls_ref.shape[1]
    N = T * Bp

    # ---- hoisted layer-0 input projection: one MXU matmul over all timesteps ----
    x_flat = x_ref[...].reshape(N, Ip)                                  # (T*Bp, Ip)
    xproj = (jnp.dot(x_flat, wih0_ref[...], preferred_element_type=jnp.float32)
             + b0_ref[...])                                             # (T*Bp, 4Hp)

    whh0 = whh0_ref[...]
    wih1 = wih1_ref[...]
    whh1 = whh1_ref[...]
    b1 = b1_ref[...]

    def cell(gates, c_prev):
        # PyTorch gate order: input, forget, cell(g), output. Hp = 128 so every
        # gate slice is a lane-aligned 128-wide slab (no sub-vreg extraction).
        i_g = jax.nn.sigmoid(gates[:, 0 * Hp:1 * Hp])
        f_g = jax.nn.sigmoid(gates[:, 1 * Hp:2 * Hp])
        g_g = jnp.tanh(gates[:, 2 * Hp:3 * Hp])
        o_g = jax.nn.sigmoid(gates[:, 3 * Hp:4 * Hp])
        c_new = f_g * c_prev + i_g * g_g
        h_new = o_g * jnp.tanh(c_new)
        return h_new, c_new

    h0 = jnp.zeros((Bp, Hp), jnp.float32)
    c0 = jnp.zeros((Bp, Hp), jnp.float32)
    h1 = jnp.zeros((Bp, Hp), jnp.float32)
    c1 = jnp.zeros((Bp, Hp), jnp.float32)
    h1_steps = []
    # T is small and static: fully unrolled Python loop (max LLO visibility).
    # TODO(synk): for long sequences switch to lax.fori_loop + VMEM scratch carries.
    for t in range(T):
        # layer 0 (only the recurrent matmul remains inside the loop)
        gates0 = xproj[t * Bp:(t + 1) * Bp, :] + jnp.dot(
            h0, whh0, preferred_element_type=jnp.float32)
        h0, c0 = cell(gates0, c0)
        # layer 1 (fused: layer-0 output never leaves VMEM)
        gates1 = (jnp.dot(h0, wih1, preferred_element_type=jnp.float32)
                  + jnp.dot(h1, whh1, preferred_element_type=jnp.float32)
                  + b1)
        h1, c1 = cell(gates1, c1)
        h1_steps.append(h1)

    h_all = jnp.concatenate(h1_steps, axis=0)                           # (T*Bp, Hp)

    # ---- classifier + log-softmax + NLL (full-softmax AdaptiveLogSoftmax case) ----
    logits = (jnp.dot(h_all, wcls_ref[...], preferred_element_type=jnp.float32)
              + bcls_ref[...])                                          # (N, Cp)
    m = jnp.max(logits, axis=-1, keepdims=True)
    lse = m + jnp.log(jnp.sum(jnp.exp(logits - m), axis=-1, keepdims=True))
    logsm = logits - lse

    cols = jax.lax.broadcasted_iota(jnp.int32, (N, Cp), 1)
    onehot = (cols == tgt_ref[...]).astype(jnp.float32)                 # (N, Cp)
    tgt_lp = jnp.sum(logsm * onehot, axis=-1, keepdims=True)            # (N, 1)

    logprob_ref[...] = tgt_lp
    # nllw already folds the padded-row mask and the 1/(B*T) mean normalization.
    loss_ref[0] = -jnp.sum(tgt_lp * nllw_ref[...])


def _network_pallas(x_p, wih0, b0, whh0, wih1, b1, whh1, wcls, bcls, tgt, nllw):
    T, Bp, _ = x_p.shape
    N = T * Bp
    vmem = pl.BlockSpec(memory_space=pltpu.MemorySpace.VMEM)
    logprob, loss = pl.pallas_call(
        _network_kernel,
        out_shape=(
            jax.ShapeDtypeStruct((N, 1), jnp.float32),
            jax.ShapeDtypeStruct((1,), jnp.float32),
        ),
        in_specs=[vmem] * 11,
        out_specs=(
            pl.BlockSpec(memory_space=pltpu.MemorySpace.VMEM),
            pl.BlockSpec(memory_space=pltpu.MemorySpace.SMEM),
        ),
    )(x_p, wih0, b0, whh0, wih1, b1, whh1, wcls, bcls, tgt, nllw)
    return logprob, loss


# -----------------------------------------------------------------------------
# Lane-dense padding helpers (per-gate zero padding keeps the LSTM math exact).
# -----------------------------------------------------------------------------
def _round_up(x, m):
    return ((x + m - 1) // m) * m


def _pad_gate_matrix(w, in_pad, h_pad):
    """w: (in_dim, 4*H) -> (in_pad, 4*h_pad), zero-padding each gate block."""
    in_dim, four_h = w.shape
    H = four_h // 4
    w = w.reshape(in_dim, 4, H)
    w = jnp.pad(w, ((0, in_pad - in_dim), (0, 0), (0, h_pad - H)))
    return w.reshape(in_pad, 4 * h_pad)


def _pad_gate_bias(b, h_pad):
    """b: (1, 4*H) -> (1, 4*h_pad), zero-padding each gate block."""
    four_h = b.shape[-1]
    H = four_h // 4
    b = b.reshape(1, 4, H)
    b = jnp.pad(b, ((0, 0), (0, 0), (0, h_pad - H)))
    return b.reshape(1, 4 * h_pad)


# -----------------------------------------------------------------------------
# Full Network forward (padding + the single fused pallas_call).
# -----------------------------------------------------------------------------
@jax.jit
def network_forward(params, x_bti, targets_bt):
    B, T, I = x_bti.shape
    H = params["w_hh0"].shape[0]
    C = params["w_cls"].shape[1]
    Bp = _round_up(B, 8)       # sublane-dense batch
    Ip = _round_up(I, 128)     # lane-dense input features
    Hp = _round_up(H, 128)     # lane-dense hidden (gate slices become 128-slabs)
    Cp = _round_up(C, 128)     # lane-dense classes

    # Parameters: per-gate zero padding (padded hidden/cell columns stay exactly 0).
    wih0 = _pad_gate_matrix(params["w_ih0"], Ip, Hp)
    whh0 = _pad_gate_matrix(params["w_hh0"], Hp, Hp)
    b0 = _pad_gate_bias(params["b0"], Hp)
    wih1 = _pad_gate_matrix(params["w_ih1"], Hp, Hp)
    whh1 = _pad_gate_matrix(params["w_hh1"], Hp, Hp)
    b1 = _pad_gate_bias(params["b1"], Hp)
    wcls = jnp.pad(params["w_cls"], ((0, Hp - H), (0, Cp - C)))
    # padded class columns get a huge negative bias so they vanish in the softmax
    bcls = jnp.concatenate(
        [params["b_cls"], jnp.full((1, Cp - C), -1e30, jnp.float32)], axis=1)

    # Activations: batch_first -> time-major, padded to (T, Bp, Ip).
    x_tbi = jnp.transpose(x_bti, (1, 0, 2))
    x_p = jnp.pad(x_tbi, ((0, 0), (0, Bp - B), (0, Ip - I)))
    tgt_tb = jnp.pad(jnp.transpose(targets_bt, (1, 0)), ((0, 0), (0, Bp - B)))
    tgt = tgt_tb.reshape(T * Bp, 1).astype(jnp.int32)

    # Per-row NLL weight: masks out padded batch rows and folds in the 1/(B*T)
    # mean normalization. Built here (static shapes) and passed as a kernel
    # input -- creating it inside the kernel made Pallas reject it as a
    # captured non-scalar constant.
    nllw = jnp.asarray(
        (((np.arange(T * Bp) % Bp) < B).astype(np.float32) / (B * T))
        .reshape(T * Bp, 1))

    logprob_p, loss = _network_pallas(x_p, wih0, b0, whh0, wih1, b1, whh1,
                                      wcls, bcls, tgt, nllw)

    # (T*Bp, 1) -> flatten in the reference's (B, T) order and drop padded rows.
    logprob = jnp.transpose(logprob_p.reshape(T, Bp), (1, 0))[:B].reshape(B * T)
    return logprob, loss[0]


# -----------------------------------------------------------------------------
# Deterministic parameter init (PyTorch-style uniform(-1/sqrt(H), 1/sqrt(H))).
# -----------------------------------------------------------------------------
def init_params(key, input_size, hidden_size, num_classes):
    k = 1.0 / np.sqrt(hidden_size)
    keys = jax.random.split(key, 10)

    def u(k_, shape):
        return jax.random.uniform(k_, shape, jnp.float32, -k, k)

    w_ih0 = u(keys[0], (4 * hidden_size, input_size)).T     # (I, 4H)
    w_hh0 = u(keys[1], (4 * hidden_size, hidden_size)).T    # (H, 4H)
    b0 = (u(keys[2], (4 * hidden_size,)) + u(keys[3], (4 * hidden_size,))).reshape(1, -1)
    w_ih1 = u(keys[4], (4 * hidden_size, hidden_size)).T
    w_hh1 = u(keys[5], (4 * hidden_size, hidden_size)).T
    b1 = (u(keys[6], (4 * hidden_size,)) + u(keys[7], (4 * hidden_size,))).reshape(1, -1)
    w_cls = u(keys[8], (hidden_size, num_classes))
    b_cls = jnp.zeros((1, num_classes), jnp.float32)        # adaptive head has no bias
    return dict(w_ih0=w_ih0, w_hh0=w_hh0, b0=b0,
                w_ih1=w_ih1, w_hh1=w_hh1, b1=b1,
                w_cls=w_cls, b_cls=b_cls)


# -----------------------------------------------------------------------------
# Pure-JAX reference for validation (unpadded).
# -----------------------------------------------------------------------------
def reference_forward(params, x_bti, targets_bt):
    def run_layer(x_tbi, w_ih, w_hh, b):
        T, B, _ = x_tbi.shape
        H = w_hh.shape[0]

        def step(carry, x_t):
            h, c = carry
            gates = x_t @ w_ih + h @ w_hh + b[0]
            i = jax.nn.sigmoid(gates[:, 0 * H:1 * H])
            f = jax.nn.sigmoid(gates[:, 1 * H:2 * H])
            g = jnp.tanh(gates[:, 2 * H:3 * H])
            o = jax.nn.sigmoid(gates[:, 3 * H:4 * H])
            c = f * c + i * g
            h = o * jnp.tanh(c)
            return (h, c), h

        init = (jnp.zeros((B, H)), jnp.zeros((B, H)))
        _, ys = jax.lax.scan(step, init, x_tbi)
        return ys

    x_tbi = jnp.transpose(x_bti, (1, 0, 2))
    h0 = run_layer(x_tbi, params["w_ih0"], params["w_hh0"], params["b0"])
    h1 = run_layer(h0, params["w_ih1"], params["w_hh1"], params["b1"])
    T, B, H = h1.shape
    score = jnp.transpose(h1, (1, 0, 2)).reshape(B * T, H)
    logits = score @ params["w_cls"] + params["b_cls"][0]
    logsm = jax.nn.log_softmax(logits, axis=-1)
    tgt = targets_bt.reshape(-1)
    lp = logsm[jnp.arange(logsm.shape[0]), tgt]
    return lp, -jnp.mean(lp)


if __name__ == "__main__":
    # Small shapes consistent with the module's constructor arguments.
    batch, seq = 2, 8
    input_size, hidden_size, feature_length = 16, 32, 16  # feature_length = #classes

    key = jax.random.PRNGKey(0)
    k_p, k_x, k_t = jax.random.split(key, 3)
    params = init_params(k_p, input_size, hidden_size, feature_length)
    x = jax.random.normal(k_x, (batch, seq, input_size), jnp.float32)
    t = jax.random.randint(k_t, (batch, seq), 0, feature_length, jnp.int32)

    logprob, loss = network_forward(params, x, t)
    jax.block_until_ready((logprob, loss))

    ref_lp, ref_loss = reference_forward(params, x, t)
    np.testing.assert_allclose(np.asarray(logprob), np.asarray(ref_lp),
                               rtol=2e-3, atol=2e-3)
    np.testing.assert_allclose(np.asarray(loss), np.asarray(ref_loss),
                               rtol=2e-3, atol=2e-3)

    print("KERNEL_OK")
</pallas_src>

<mosaic_0001>
module attributes {stable_mosaic.version = 11 : i64} {
  func.func @_network_kernel(%arg0: memref<8x8x128xf32, #tpu.memory_space<vmem>>, %arg1: memref<128x512xf32, #tpu.memory_space<vmem>>, %arg2: memref<1x512xf32, #tpu.memory_space<vmem>>, %arg3: memref<128x512xf32, #tpu.memory_space<vmem>>, %arg4: memref<128x512xf32, #tpu.memory_space<vmem>>, %arg5: memref<1x512xf32, #tpu.memory_space<vmem>>, %arg6: memref<128x512xf32, #tpu.memory_space<vmem>>, %arg7: memref<128x128xf32, #tpu.memory_space<vmem>>, %arg8: memref<1x128xf32, #tpu.memory_space<vmem>>, %arg9: memref<64x1xi32, #tpu.memory_space<vmem>>, %arg10: memref<64x1xf32, #tpu.memory_space<vmem>>, %arg11: memref<64x1xf32, #tpu.memory_space<vmem>>, %arg12: memref<1xf32, #tpu.memory_space<smem>>) attributes {dimension_semantics = [], scalar_prefetch = 0 : i64, scratch_operands = 0 : i64, tpu.core_type = #tpu.core_type<tc>} {
    %c0 = arith.constant 0 : index
    %c0_0 = arith.constant 0 : index
    %c0_1 = arith.constant 0 : index
    %0 = vector.load %arg0[%c0, %c0_0, %c0_1] : memref<8x8x128xf32, #tpu.memory_space<vmem>>, vector<8x8x128xf32>
    %1 = vector.shape_cast %0 : vector<8x8x128xf32> to vector<64x128xf32>
    %c0_2 = arith.constant 0 : index
    %c0_3 = arith.constant 0 : index
    %2 = vector.load %arg1[%c0_2, %c0_3] : memref<128x512xf32, #tpu.memory_space<vmem>>, vector<128x512xf32>
    %cst = arith.constant dense<0.000000e+00> : vector<64x512xf32>
    %3 = tpu.matmul %1, %2, %cst {dimension_numbers = #tpu.dot_dimension_numbers<[1], [0], [0], [1], [0, 0, 1, 1], [], []>} : vector<64x128xf32>, vector<128x512xf32>, vector<64x512xf32> -> vector<64x512xf32>
    %c0_4 = arith.constant 0 : index
    %c0_5 = arith.constant 0 : index
    %4 = vector.load %arg2[%c0_4, %c0_5] : memref<1x512xf32, #tpu.memory_space<vmem>>, vector<1x512xf32>
    %5 = vector.broadcast %4 : vector<1x512xf32> to vector<64x512xf32>
    %6 = arith.addf %3, %5 : vector<64x512xf32>
    %c0_6 = arith.constant 0 : index
    %c0_7 = arith.constant 0 : index
    %7 = vector.load %arg3[%c0_6, %c0_7] : memref<128x512xf32, #tpu.memory_space<vmem>>, vector<128x512xf32>
    %c0_8 = arith.constant 0 : index
    %c0_9 = arith.constant 0 : index
    %8 = vector.load %arg4[%c0_8, %c0_9] : memref<128x512xf32, #tpu.memory_space<vmem>>, vector<128x512xf32>
    %c0_10 = arith.constant 0 : index
    %c0_11 = arith.constant 0 : index
    %9 = vector.load %arg6[%c0_10, %c0_11] : memref<128x512xf32, #tpu.memory_space<vmem>>, vector<128x512xf32>
    %c0_12 = arith.constant 0 : index
    %c0_13 = arith.constant 0 : index
    %10 = vector.load %arg5[%c0_12, %c0_13] : memref<1x512xf32, #tpu.memory_space<vmem>>, vector<1x512xf32>
    %cst_14 = arith.constant 0.000000e+00 : f32
    %11 = vector.broadcast %cst_14 : f32 to vector<8x128xf32>
    %cst_15 = arith.constant 0.000000e+00 : f32
    %12 = vector.broadcast %cst_15 : f32 to vector<8x128xf32>
    %cst_16 = arith.constant 0.000000e+00 : f32
    %13 = vector.broadcast %cst_16 : f32 to vector<8x128xf32>
    %cst_17 = arith.constant 0.000000e+00 : f32
    %14 = vector.broadcast %cst_17 : f32 to vector<8x128xf32>
    %15 = vector.extract_strided_slice %6 {offsets = [0, 0], sizes = [8, 512], strides = [1, 1]} : vector<64x512xf32> to vector<8x512xf32>
    %cst_18 = arith.constant dense<0.000000e+00> : vector<8x512xf32>
    %16 = tpu.matmul %11, %7, %cst_18 {dimension_numbers = #tpu.dot_dimension_numbers<[1], [0], [0], [1], [0, 0, 1, 1], [], []>} : vector<8x128xf32>, vector<128x512xf32>, vector<8x512xf32> -> vector<8x512xf32>
    %17 = arith.addf %15, %16 : vector<8x512xf32>
    %18 = vector.extract_strided_slice %17 {offsets = [0, 0], sizes = [8, 128], strides = [1, 1]} : vector<8x512xf32> to vector<8x128xf32>
    %19 = arith.negf %18 : vector<8x128xf32>
    %20 = math.exp %19 : vector<8x128xf32>
    %cst_19 = arith.constant 1.000000e+00 : f32
    %21 = vector.broadcast %cst_19 : f32 to vector<8x128xf32>
    %22 = arith.addf %21, %20 : vector<8x128xf32>
    %23 = arith.divf %21, %22 : vector<8x128xf32>
    %24 = vector.extract_strided_slice %17 {offsets = [0, 128], sizes = [8, 128], strides = [1, 1]} : vector<8x512xf32> to vector<8x128xf32>
    %25 = arith.negf %24 : vector<8x128xf32>
    %26 = math.exp %25 : vector<8x128xf32>
    %cst_20 = arith.constant 1.000000e+00 : f32
    %27 = vector.broadcast %cst_20 : f32 to vector<8x128xf32>
    %28 = arith.addf %27, %26 : vector<8x128xf32>
    %29 = arith.divf %27, %28 : vector<8x128xf32>
    %30 = vector.extract_strided_slice %17 {offsets = [0, 256], sizes = [8, 128], strides = [1, 1]} : vector<8x512xf32> to vector<8x128xf32>
    %31 = math.tanh %30 : vector<8x128xf32>
    %32 = vector.extract_strided_slice %17 {offsets = [0, 384], sizes = [8, 128], strides = [1, 1]} : vector<8x512xf32> to vector<8x128xf32>
    %33 = arith.negf %32 : vector<8x128xf32>
    %34 = math.exp %33 : vector<8x128xf32>
    %cst_21 = arith.constant 1.000000e+00 : f32
    %35 = vector.broadcast %cst_21 : f32 to vector<8x128xf32>
    %36 = arith.addf %35, %34 : vector<8x128xf32>
    %37 = arith.divf %35, %36 : vector<8x128xf32>
    %38 = arith.mulf %29, %12 : vector<8x128xf32>
    %39 = arith.mulf %23, %31 : vector<8x128xf32>
    %40 = arith.addf %38, %39 : vector<8x128xf32>
    %41 = math.tanh %40 : vector<8x128xf32>
    %42 = arith.mulf %37, %41 : vector<8x128xf32>
    %cst_22 = arith.constant dense<0.000000e+00> : vector<8x512xf32>
    %43 = tpu.matmul %42, %8, %cst_22 {dimension_numbers = #tpu.dot_dimension_numbers<[1], [0], [0], [1], [0, 0, 1, 1], [], []>} : vector<8x128xf32>, vector<128x512xf32>, vector<8x512xf32> -> vector<8x512xf32>
    %cst_23 = arith.constant dense<0.000000e+00> : vector<8x512xf32>
    %44 = tpu.matmul %13, %9, %cst_23 {dimension_numbers = #tpu.dot_dimension_numbers<[1], [0], [0], [1], [0, 0, 1, 1], [], []>} : vector<8x128xf32>, vector<128x512xf32>, vector<8x512xf32> -> vector<8x512xf32>
    %45 = arith.addf %43, %44 : vector<8x512xf32>
    %46 = vector.broadcast %10 : vector<1x512xf32> to vector<8x512xf32>
    %47 = arith.addf %45, %46 : vector<8x512xf32>
    %48 = vector.extract_strided_slice %47 {offsets = [0, 0], sizes = [8, 128], strides = [1, 1]} : vector<8x512xf32> to vector<8x128xf32>
    %49 = arith.negf %48 : vector<8x128xf32>
    %50 = math.exp %49 : vector<8x128xf32>
    %cst_24 = arith.constant 1.000000e+00 : f32
    %51 = vector.broadcast %cst_24 : f32 to vector<8x128xf32>
    %52 = arith.addf %51, %50 : vector<8x128xf32>
    %53 = arith.divf %51, %52 : vector<8x128xf32>
    %54 = vector.extract_strided_slice %47 {offsets = [0, 128], sizes = [8, 128], strides = [1, 1]} : vector<8x512xf32> to vector<8x128xf32>
    %55 = arith.negf %54 : vector<8x128xf32>
    %56 = math.exp %55 : vector<8x128xf32>
    %cst_25 = arith.constant 1.000000e+00 : f32
    %57 = vector.broadcast %cst_25 : f32 to vector<8x128xf32>
    %58 = arith.addf %57, %56 : vector<8x128xf32>
    %59 = arith.divf %57, %58 : vector<8x128xf32>
    %60 = vector.extract_strided_slice %47 {offsets = [0, 256], sizes = [8, 128], strides = [1, 1]} : vector<8x512xf32> to vector<8x128xf32>
    %61 = math.tanh %60 : vector<8x128xf32>
    %62 = vector.extract_strided_slice %47 {offsets = [0, 384], sizes = [8, 128], strides = [1, 1]} : vector<8x512xf32> to vector<8x128xf32>
    %63 = arith.negf %62 : vector<8x128xf32>
    %64 = math.exp %63 : vector<8x128xf32>
    %cst_26 = arith.constant 1.000000e+00 : f32
    %65 = vector.broadcast %cst_26 : f32 to vector<8x128xf32>
    %66 = arith.addf %65, %64 : vector<8x128xf32>
    %67 = arith.divf %65, %66 : vector<8x128xf32>
    %68 = arith.mulf %59, %14 : vector<8x128xf32>
    %69 = arith.mulf %53, %61 : vector<8x128xf32>
    %70 = arith.addf %68, %69 : vector<8x128xf32>
    %71 = math.tanh %70 : vector<8x128xf32>
    %72 = arith.mulf %67, %71 : vector<8x128xf32>
    %73 = vector.extract_strided_slice %6 {offsets = [8, 0], sizes = [8, 512], strides = [1, 1]} : vector<64x512xf32> to vector<8x512xf32>
    %cst_27 = arith.constant dense<0.000000e+00> : vector<8x512xf32>
    %74 = tpu.matmul %42, %7, %cst_27 {dimension_numbers = #tpu.dot_dimension_numbers<[1], [0], [0], [1], [0, 0, 1, 1], [], []>} : vector<8x128xf32>, vector<128x512xf32>, vector<8x512xf32> -> vector<8x512xf32>
    %75 = arith.addf %73, %74 : vector<8x512xf32>
    %76 = vector.extract_strided_slice %75 {offsets = [0, 0], sizes = [8, 128], strides = [1, 1]} : vector<8x512xf32> to vector<8x128xf32>
    %77 = arith.negf %76 : vector<8x128xf32>
    %78 = math.exp %77 : vector<8x128xf32>
    %cst_28 = arith.constant 1.000000e+00 : f32
    %79 = vector.broadcast %cst_28 : f32 to vector<8x128xf32>
    %80 = arith.addf %79, %78 : vector<8x128xf32>
    %81 = arith.divf %79, %80 : vector<8x128xf32>
    %82 = vector.extract_strided_slice %75 {offsets = [0, 128], sizes = [8, 128], strides = [1, 1]} : vector<8x512xf32> to vector<8x128xf32>
    %83 = arith.negf %82 : vector<8x128xf32>
    %84 = math.exp %83 : vector<8x128xf32>
    %cst_29 = arith.constant 1.000000e+00 : f32
    %85 = vector.broadcast %cst_29 : f32 to vector<8x128xf32>
    %86 = arith.addf %85, %84 : vector<8x128xf32>
    %87 = arith.divf %85, %86 : vector<8x128xf32>
    %88 = vector.extract_strided_slice %75 {offsets = [0, 256], sizes = [8, 128], strides = [1, 1]} : vector<8x512xf32> to vector<8x128xf32>
    %89 = math.tanh %88 : vector<8x128xf32>
    %90 = vector.extract_strided_slice %75 {offsets = [0, 384], sizes = [8, 128], strides = [1, 1]} : vector<8x512xf32> to vector<8x128xf32>
    %91 = arith.negf %90 : vector<8x128xf32>
    %92 = math.exp %91 : vector<8x128xf32>
    %cst_30 = arith.constant 1.000000e+00 : f32
    %93 = vector.broadcast %cst_30 : f32 to vector<8x128xf32>
    %94 = arith.addf %93, %92 : vector<8x128xf32>
    %95 = arith.divf %93, %94 : vector<8x128xf32>
    %96 = arith.mulf %87, %40 : vector<8x128xf32>
    %97 = arith.mulf %81, %89 : vector<8x128xf32>
    %98 = arith.addf %96, %97 : vector<8x128xf32>
    %99 = math.tanh %98 : vector<8x128xf32>
    %100 = arith.mulf %95, %99 : vector<8x128xf32>
    %cst_31 = arith.constant dense<0.000000e+00> : vector<8x512xf32>
    %101 = tpu.matmul %100, %8, %cst_31 {dimension_numbers = #tpu.dot_dimension_numbers<[1], [0], [0], [1], [0, 0, 1, 1], [], []>} : vector<8x128xf32>, vector<128x512xf32>, vector<8x512xf32> -> vector<8x512xf32>
    %cst_32 = arith.constant dense<0.000000e+00> : vector<8x512xf32>
    %102 = tpu.matmul %72, %9, %cst_32 {dimension_numbers = #tpu.dot_dimension_numbers<[1], [0], [0], [1], [0, 0, 1, 1], [], []>} : vector<8x128xf32>, vector<128x512xf32>, vector<8x512xf32> -> vector<8x512xf32>
    %103 = arith.addf %101, %102 : vector<8x512xf32>
    %104 = vector.broadcast %10 : vector<1x512xf32> to vector<8x512xf32>
    %105 = arith.addf %103, %104 : vector<8x512xf32>
    %106 = vector.extract_strided_slice %105 {offsets = [0, 0], sizes = [8, 128], strides = [1, 1]} : vector<8x512xf32> to vector<8x128xf32>
    %107 = arith.negf %106 : vector<8x128xf32>
    %108 = math.exp %107 : vector<8x128xf32>
    %cst_33 = arith.constant 1.000000e+00 : f32
    %109 = vector.broadcast %cst_33 : f32 to vector<8x128xf32>
    %110 = arith.addf %109, %108 : vector<8x128xf32>
    %111 = arith.divf %109, %110 : vector<8x128xf32>
    %112 = vector.extract_strided_slice %105 {offsets = [0, 128], sizes = [8, 128], strides = [1, 1]} : vector<8x512xf32> to vector<8x128xf32>
    %113 = arith.negf %112 : vector<8x128xf32>
    %114 = math.exp %113 : vector<8x128xf32>
    %cst_34 = arith.constant 1.000000e+00 : f32
    %115 = vector.broadcast %cst_34 : f32 to vector<8x128xf32>
    %116 = arith.addf %115, %114 : vector<8x128xf32>
    %117 = arith.divf %115, %116 : vector<8x128xf32>
    %118 = vector.extract_strided_slice %105 {offsets = [0, 256], sizes = [8, 128], strides = [1, 1]} : vector<8x512xf32> to vector<8x128xf32>
    %119 = math.tanh %118 : vector<8x128xf32>
    %120 = vector.extract_strided_slice %105 {offsets = [0, 384], sizes = [8, 128], strides = [1, 1]} : vector<8x512xf32> to vector<8x128xf32>
    %121 = arith.negf %120 : vector<8x128xf32>
    %122 = math.exp %121 : vector<8x128xf32>
    %cst_35 = arith.constant 1.000000e+00 : f32
    %123 = vector.broadcast %cst_35 : f32 to vector<8x128xf32>
    %124 = arith.addf %123, %122 : vector<8x128xf32>
    %125 = arith.divf %123, %124 : vector<8x128xf32>
    %126 = arith.mulf %117, %70 : vector<8x128xf32>
    %127 = arith.mulf %111, %119 : vector<8x128xf32>
    %128 = arith.addf %126, %127 : vector<8x128xf32>
    %129 = math.tanh %128 : vector<8x128xf32>
    %130 = arith.mulf %125, %129 : vector<8x128xf32>
    %131 = vector.extract_strided_slice %6 {offsets = [16, 0], sizes = [8, 512], strides = [1, 1]} : vector<64x512xf32> to vector<8x512xf32>
    %cst_36 = arith.constant dense<0.000000e+00> : vector<8x512xf32>
    %132 = tpu.matmul %100, %7, %cst_36 {dimension_numbers = #tpu.dot_dimension_numbers<[1], [0], [0], [1], [0, 0, 1, 1], [], []>} : vector<8x128xf32>, vector<128x512xf32>, vector<8x512xf32> -> vector<8x512xf32>
    %133 = arith.addf %131, %132 : vector<8x512xf32>
    %134 = vector.extract_strided_slice %133 {offsets = [0, 0], sizes = [8, 128], strides = [1, 1]} : vector<8x512xf32> to vector<8x128xf32>
    %135 = arith.negf %134 : vector<8x128xf32>
    %136 = math.exp %135 : vector<8x128xf32>
    %cst_37 = arith.constant 1.000000e+00 : f32
    %137 = vector.broadcast %cst_37 : f32 to vector<8x128xf32>
    %138 = arith.addf %137, %136 : vector<8x128xf32>
    %139 = arith.divf %137, %138 : vector<8x128xf32>
    %140 = vector.extract_strided_slice %133 {offsets = [0, 128], sizes = [8, 128], strides = [1, 1]} : vector<8x512xf32> to vector<8x128xf32>
    %141 = arith.negf %140 : vector<8x128xf32>
    %142 = math.exp %141 : vector<8x128xf32>
    %cst_38 = arith.constant 1.000000e+00 : f32
    %143 = vector.broadcast %cst_38 : f32 to vector<8x128xf32>
    %144 = arith.addf %143, %142 : vector<8x128xf32>
    %145 = arith.divf %143, %144 : vector<8x128xf32>
    %146 = vector.extract_strided_slice %133 {offsets = [0, 256], sizes = [8, 128], strides = [1, 1]} : vector<8x512xf32> to vector<8x128xf32>
    %147 = math.tanh %146 : vector<8x128xf32>
    %148 = vector.extract_strided_slice %133 {offsets = [0, 384], sizes = [8, 128], strides = [1, 1]} : vector<8x512xf32> to vector<8x128xf32>
    %149 = arith.negf %148 : vector<8x128xf32>
    %150 = math.exp %149 : vector<8x128xf32>
    %cst_39 = arith.constant 1.000000e+00 : f32
    %151 = vector.broadcast %cst_39 : f32 to vector<8x128xf32>
    %152 = arith.addf %151, %150 : vector<8x128xf32>
    %153 = arith.divf %151, %152 : vector<8x128xf32>
    %154 = arith.mulf %145, %98 : vector<8x128xf32>
    %155 = arith.mulf %139, %147 : vector<8x128xf32>
    %156 = arith.addf %154, %155 : vector<8x128xf32>
    %157 = math.tanh %156 : vector<8x128xf32>
    %158 = arith.mulf %153, %157 : vector<8x128xf32>
    %cst_40 = arith.constant dense<0.000000e+00> : vector<8x512xf32>
    %159 = tpu.matmul %158, %8, %cst_40 {dimension_numbers = #tpu.dot_dimension_numbers<[1], [0], [0], [1], [0, 0, 1, 1], [], []>} : vector<8x128xf32>, vector<128x512xf32>, vector<8x512xf32> -> vector<8x512xf32>
    %cst_41 = arith.constant dense<0.000000e+00> : vector<8x512xf32>
    %160 = tpu.matmul %130, %9, %cst_41 {dimension_numbers = #tpu.dot_dimension_numbers<[1], [0], [0], [1], [0, 0, 1, 1], [], []>} : vector<8x128xf32>, vector<128x512xf32>, vector<8x512xf32> -> vector<8x512xf32>
    %161 = arith.addf %159, %160 : vector<8x512xf32>
    %162 = vector.broadcast %10 : vector<1x512xf32> to vector<8x512xf32>
    %163 = arith.addf %161, %162 : vector<8x512xf32>
    %164 = vector.extract_strided_slice %163 {offsets = [0, 0], sizes = [8, 128], strides = [1, 1]} : vector<8x512xf32> to vector<8x128xf32>
    %165 = arith.negf %164 : vector<8x128xf32>
    %166 = math.exp %165 : vector<8x128xf32>
    %cst_42 = arith.constant 1.000000e+00 : f32
    %167 = vector.broadcast %cst_42 : f32 to vector<8x128xf32>
    %168 = arith.addf %167, %166 : vector<8x128xf32>
    %169 = arith.divf %167, %168 : vector<8x128xf32>
    %170 = vector.extract_strided_slice %163 {offsets = [0, 128], sizes = [8, 128], strides = [1, 1]} : vector<8x512xf32> to vector<8x128xf32>
    %171 = arith.negf %170 : vector<8x128xf32>
    %172 = math.exp %171 : vector<8x128xf32>
    %cst_43 = arith.constant 1.000000e+00 : f32
    %173 = vector.broadcast %cst_43 : f32 to vector<8x128xf32>
    %174 = arith.addf %173, %172 : vector<8x128xf32>
    %175 = arith.divf %173, %174 : vector<8x128xf32>
    %176 = vector.extract_strided_slice %163 {offsets = [0, 256], sizes = [8, 128], strides = [1, 1]} : vector<8x512xf32> to vector<8x128xf32>
    %177 = math.tanh %176 : vector<8x128xf32>
    %178 = vector.extract_strided_slice %163 {offsets = [0, 384], sizes = [8, 128], strides = [1, 1]} : vector<8x512xf32> to vector<8x128xf32>
    %179 = arith.negf %178 : vector<8x128xf32>
    %180 = math.exp %179 : vector<8x128xf32>
    %cst_44 = arith.constant 1.000000e+00 : f32
    %181 = vector.broadcast %cst_44 : f32 to vector<8x128xf32>
    %182 = arith.addf %181, %180 : vector<8x128xf32>
    %183 = arith.divf %181, %182 : vector<8x128xf32>
    %184 = arith.mulf %175, %128 : vector<8x128xf32>
    %185 = arith.mulf %169, %177 : vector<8x128xf32>
    %186 = arith.addf %184, %185 : vector<8x128xf32>
    %187 = math.tanh %186 : vector<8x128xf32>
    %188 = arith.mulf %183, %187 : vector<8x128xf32>
    %189 = vector.extract_strided_slice %6 {offsets = [24, 0], sizes = [8, 512], strides = [1, 1]} : vector<64x512xf32> to vector<8x512xf32>
    %cst_45 = arith.constant dense<0.000000e+00> : vector<8x512xf32>
    %190 = tpu.matmul %158, %7, %cst_45 {dimension_numbers = #tpu.dot_dimension_numbers<[1], [0], [0], [1], [0, 0, 1, 1], [], []>} : vector<8x128xf32>, vector<128x512xf32>, vector<8x512xf32> -> vector<8x512xf32>
    %191 = arith.addf %189, %190 : vector<8x512xf32>
    %192 = vector.extract_strided_slice %191 {offsets = [0, 0], sizes = [8, 128], strides = [1, 1]} : vector<8x512xf32> to vector<8x128xf32>
    %193 = arith.negf %192 : vector<8x128xf32>
    %194 = math.exp %193 : vector<8x128xf32>
    %cst_46 = arith.constant 1.000000e+00 : f32
    %195 = vector.broadcast %cst_46 : f32 to vector<8x128xf32>
    %196 = arith.addf %195, %194 : vector<8x128xf32>
    %197 = arith.divf %195, %196 : vector<8x128xf32>
    %198 = vector.extract_strided_slice %191 {offsets = [0, 128], sizes = [8, 128], strides = [1, 1]} : vector<8x512xf32> to vector<8x128xf32>
    %199 = arith.negf %198 : vector<8x128xf32>
    %200 = math.exp %199 : vector<8x128xf32>
    %cst_47 = arith.constant 1.000000e+00 : f32
    %201 = vector.broadcast %cst_47 : f32 to vector<8x128xf32>
    %202 = arith.addf %201, %200 : vector<8x128xf32>
    %203 = arith.divf %201, %202 : vector<8x128xf32>
    %204 = vector.extract_strided_slice %191 {offsets = [0, 256], sizes = [8, 128], strides = [1, 1]} : vector<8x512xf32> to vector<8x128xf32>
    %205 = math.tanh %204 : vector<8x128xf32>
    %206 = vector.extract_strided_slice %191 {offsets = [0, 384], sizes = [8, 128], strides = [1, 1]} : vector<8x512xf32> to vector<8x128xf32>
    %207 = arith.negf %206 : vector<8x128xf32>
    %208 = math.exp %207 : vector<8x128xf32>
    %cst_48 = arith.constant 1.000000e+00 : f32
    %209 = vector.broadcast %cst_48 : f32 to vector<8x128xf32>
    %210 = arith.addf %209, %208 : vector<8x128xf32>
    %211 = arith.divf %209, %210 : vector<8x128xf32>
    %212 = arith.mulf %203, %156 : vector<8x128xf32>
    %213 = arith.mulf %197, %205 : vector<8x128xf32>
    %214 = arith.addf %212, %213 : vector<8x128xf32>
    %215 = math.tanh %214 : vector<8x128xf32>
    %216 = arith.mulf %211, %215 : vector<8x128xf32>
    %cst_49 = arith.constant dense<0.000000e+00> : vector<8x512xf32>
    %217 = tpu.matmul %216, %8, %cst_49 {dimension_numbers = #tpu.dot_dimension_numbers<[1], [0], [0], [1], [0, 0, 1, 1], [], []>} : vector<8x128xf32>, vector<128x512xf32>, vector<8x512xf32> -> vector<8x512xf32>
    %cst_50 = arith.constant dense<0.000000e+00> : vector<8x512xf32>
    %218 = tpu.matmul %188, %9, %cst_50 {dimension_numbers = #tpu.dot_dimension_numbers<[1], [0], [0], [1], [0, 0, 1, 1], [], []>} : vector<8x128xf32>, vector<128x512xf32>, vector<8x512xf32> -> vector<8x512xf32>
    %219 = arith.addf %217, %218 : vector<8x512xf32>
    %220 = vector.broadcast %10 : vector<1x512xf32> to vector<8x512xf32>
    %221 = arith.addf %219, %220 : vector<8x512xf32>
    %222 = vector.extract_strided_slice %221 {offsets = [0, 0], sizes = [8, 128], strides = [1, 1]} : vector<8x512xf32> to vector<8x128xf32>
    %223 = arith.negf %222 : vector<8x128xf32>
    %224 = math.exp %223 : vector<8x128xf32>
    %cst_51 = arith.constant 1.000000e+00 : f32
    %225 = vector.broadcast %cst_51 : f32 to vector<8x128xf32>
    %226 = arith.addf %225, %224 : vector<8x128xf32>
    %227 = arith.divf %225, %226 : vector<8x128xf32>
    %228 = vector.extract_strided_slice %221 {offsets = [0, 128], sizes = [8, 128], strides = [1, 1]} : vector<8x512xf32> to vector<8x128xf32>
    %229 = arith.negf %228 : vector<8x128xf32>
    %230 = math.exp %229 : vector<8x128xf32>
    %cst_52 = arith.constant 1.000000e+00 : f32
    %231 = vector.broadcast %cst_52 : f32 to vector<8x128xf32>
    %232 = arith.addf %231, %230 : vector<8x128xf32>
    %233 = arith.divf %231, %232 : vector<8x128xf32>
    %234 = vector.extract_strided_slice %221 {offsets = [0, 256], sizes = [8, 128], strides = [1, 1]} : vector<8x512xf32> to vector<8x128xf32>
    %235 = math.tanh %234 : vector<8x128xf32>
    %236 = vector.extract_strided_slice %221 {offsets = [0, 384], sizes = [8, 128], strides = [1, 1]} : vector<8x512xf32> to vector<8x128xf32>
    %237 = arith.negf %236 : vector<8x128xf32>
    %238 = math.exp %237 : vector<8x128xf32>
    %cst_53 = arith.constant 1.000000e+00 : f32
    %239 = vector.broadcast %cst_53 : f32 to vector<8x128xf32>
    %240 = arith.addf %239, %238 : vector<8x128xf32>
    %241 = arith.divf %239, %240 : vector<8x128xf32>
    %242 = arith.mulf %233, %186 : vector<8x128xf32>
    %243 = arith.mulf %227, %235 : vector<8x128xf32>
    %244 = arith.addf %242, %243 : vector<8x128xf32>
    %245 = math.tanh %244 : vector<8x128xf32>
    %246 = arith.mulf %241, %245 : vector<8x128xf32>
    %247 = vector.extract_strided_slice %6 {offsets = [32, 0], sizes = [8, 512], strides = [1, 1]} : vector<64x512xf32> to vector<8x512xf32>
    %cst_54 = arith.constant dense<0.000000e+00> : vector<8x512xf32>
    %248 = tpu.matmul %216, %7, %cst_54 {dimension_numbers = #tpu.dot_dimension_numbers<[1], [0], [0], [1], [0, 0, 1, 1], [], []>} : vector<8x128xf32>, vector<128x512xf32>, vector<8x512xf32> -> vector<8x512xf32>
    %249 = arith.addf %247, %248 : vector<8x512xf32>
    %250 = vector.extract_strided_slice %249 {offsets = [0, 0], sizes = [8, 128], strides = [1, 1]} : vector<8x512xf32> to vector<8x128xf32>
    %251 = arith.negf %250 : vector<8x128xf32>
    %252 = math.exp %251 : vector<8x128xf32>
    %cst_55 = arith.constant 1.000000e+00 : f32
    %253 = vector.broadcast %cst_55 : f32 to vector<8x128xf32>
    %254 = arith.addf %253, %252 : vector<8x128xf32>
    %255 = arith.divf %253, %254 : vector<8x128xf32>
    %256 = vector.extract_strided_slice %249 {offsets = [0, 128], sizes = [8, 128], strides = [1, 1]} : vector<8x512xf32> to vector<8x128xf32>
    %257 = arith.negf %256 : vector<8x128xf32>
    %258 = math.exp %257 : vector<8x128xf32>
    %cst_56 = arith.constant 1.000000e+00 : f32
    %259 = vector.broadcast %cst_56 : f32 to vector<8x128xf32>
    %260 = arith.addf %259, %258 : vector<8x128xf32>
    %261 = arith.divf %259, %260 : vector<8x128xf32>
    %262 = vector.extract_strided_slice %249 {offsets = [0, 256], sizes = [8, 128], strides = [1, 1]} : vector<8x512xf32> to vector<8x128xf32>
    %263 = math.tanh %262 : vector<8x128xf32>
    %264 = vector.extract_strided_slice %249 {offsets = [0, 384], sizes = [8, 128], strides = [1, 1]} : vector<8x512xf32> to vector<8x128xf32>
    %265 = arith.negf %264 : vector<8x128xf32>
    %266 = math.exp %265 : vector<8x128xf32>
    %cst_57 = arith.constant 1.000000e+00 : f32
    %267 = vector.broadcast %cst_57 : f32 to vector<8x128xf32>
    %268 = arith.addf %267, %266 : vector<8x128xf32>
    %269 = arith.divf %267, %268 : vector<8x128xf32>
    %270 = arith.mulf %261, %214 : vector<8x128xf32>
    %271 = arith.mulf %255, %263 : vector<8x128xf32>
    %272 = arith.addf %270, %271 : vector<8x128xf32>
    %273 = math.tanh %272 : vector<8x128xf32>
    %274 = arith.mulf %269, %273 : vector<8x128xf32>
    %cst_58 = arith.constant dense<0.000000e+00> : vector<8x512xf32>
    %275 = tpu.matmul %274, %8, %cst_58 {dimension_numbers = #tpu.dot_dimension_numbers<[1], [0], [0], [1], [0, 0, 1, 1], [], []>} : vector<8x128xf32>, vector<128x512xf32>, vector<8x512xf32> -> vector<8x512xf32>
    %cst_59 = arith.constant dense<0.000000e+00> : vector<8x512xf32>
    %276 = tpu.matmul %246, %9, %cst_59 {dimension_numbers = #tpu.dot_dimension_numbers<[1], [0], [0], [1], [0, 0, 1, 1], [], []>} : vector<8x128xf32>, vector<128x512xf32>, vector<8x512xf32> -> vector<8x512xf32>
    %277 = arith.addf %275, %276 : vector<8x512xf32>
    %278 = vector.broadcast %10 : vector<1x512xf32> to vector<8x512xf32>
    %279 = arith.addf %277, %278 : vector<8x512xf32>
    %280 = vector.extract_strided_slice %279 {offsets = [0, 0], sizes = [8, 128], strides = [1, 1]} : vector<8x512xf32> to vector<8x128xf32>
    %281 = arith.negf %280 : vector<8x128xf32>
    %282 = math.exp %281 : vector<8x128xf32>
    %cst_60 = arith.constant 1.000000e+00 : f32
    %283 = vector.broadcast %cst_60 : f32 to vector<8x128xf32>
    %284 = arith.addf %283, %282 : vector<8x128xf32>
    %285 = arith.divf %283, %284 : vector<8x128xf32>
    %286 = vector.extract_strided_slice %279 {offsets = [0, 128], sizes = [8, 128], strides = [1, 1]} : vector<8x512xf32> to vector<8x128xf32>
    %287 = arith.negf %286 : vector<8x128xf32>
    %288 = math.exp %287 : vector<8x128xf32>
    %cst_61 = arith.constant 1.000000e+00 : f32
    %289 = vector.broadcast %cst_61 : f32 to vector<8x128xf32>
    %290 = arith.addf %289, %288 : vector<8x128xf32>
    %291 = arith.divf %289, %290 : vector<8x128xf32>
    %292 = vector.extract_strided_slice %279 {offsets = [0, 256], sizes = [8, 128], strides = [1, 1]} : vector<8x512xf32> to vector<8x128xf32>
    %293 = math.tanh %292 : vector<8x128xf32>
    %294 = vector.extract_strided_slice %279 {offsets = [0, 384], sizes = [8, 128], strides = [1, 1]} : vector<8x512xf32> to vector<8x128xf32>
    %295 = arith.negf %294 : vector<8x128xf32>
    %296 = math.exp %295 : vector<8x128xf32>
    %cst_62 = arith.constant 1.000000e+00 : f32
    %297 = vector.broadcast %cst_62 : f32 to vector<8x128xf32>
    %298 = arith.addf %297, %296 : vector<8x128xf32>
    %299 = arith.divf %297, %298 : vector<8x128xf32>
    %300 = arith.mulf %291, %244 : vector<8x128xf32>
    %301 = arith.mulf %285, %293 : vector<8x128xf32>
    %302 = arith.addf %300, %301 : vector<8x128xf32>
    %303 = math.tanh %302 : vector<8x128xf32>
    %304 = arith.mulf %299, %303 : vector<8x128xf32>
    %305 = vector.extract_strided_slice %6 {offsets = [40, 0], sizes = [8, 512], strides = [1, 1]} : vector<64x512xf32> to vector<8x512xf32>
    %cst_63 = arith.constant dense<0.000000e+00> : vector<8x512xf32>
    %306 = tpu.matmul %274, %7, %cst_63 {dimension_numbers = #tpu.dot_dimension_numbers<[1], [0], [0], [1], [0, 0, 1, 1], [], []>} : vector<8x128xf32>, vector<128x512xf32>, vector<8x512xf32> -> vector<8x512xf32>
    %307 = arith.addf %305, %306 : vector<8x512xf32>
    %308 = vector.extract_strided_slice %307 {offsets = [0, 0], sizes = [8, 128], strides = [1, 1]} : vector<8x512xf32> to vector<8x128xf32>
    %309 = arith.negf %308 : vector<8x128xf32>
    %310 = math.exp %309 : vector<8x128xf32>
    %cst_64 = arith.constant 1.000000e+00 : f32
    %311 = vector.broadcast %cst_64 : f32 to vector<8x128xf32>
    %312 = arith.addf %311, %310 : vector<8x128xf32>
    %313 = arith.divf %311, %312 : vector<8x128xf32>
    %314 = vector.extract_strided_slice %307 {offsets = [0, 128], sizes = [8, 128], strides = [1, 1]} : vector<8x512xf32> to vector<8x128xf32>
    %315 = arith.negf %314 : vector<8x128xf32>
    %316 = math.exp %315 : vector<8x128xf32>
    %cst_65 = arith.constant 1.000000e+00 : f32
    %317 = vector.broadcast %cst_65 : f32 to vector<8x128xf32>
    %318 = arith.addf %317, %316 : vector<8x128xf32>
    %319 = arith.divf %317, %318 : vector<8x128xf32>
    %320 = vector.extract_strided_slice %307 {offsets = [0, 256], sizes = [8, 128], strides = [1, 1]} : vector<8x512xf32> to vector<8x128xf32>
    %321 = math.tanh %320 : vector<8x128xf32>
    %322 = vector.extract_strided_slice %307 {offsets = [0, 384], sizes = [8, 128], strides = [1, 1]} : vector<8x512xf32> to vector<8x128xf32>
    %323 = arith.negf %322 : vector<8x128xf32>
    %324 = math.exp %323 : vector<8x128xf32>
    %cst_66 = arith.constant 1.000000e+00 : f32
    %325 = vector.broadcast %cst_66 : f32 to vector<8x128xf32>
    %326 = arith.addf %325, %324 : vector<8x128xf32>
    %327 = arith.divf %325, %326 : vector<8x128xf32>
    %328 = arith.mulf %319, %272 : vector<8x128xf32>
    %329 = arith.mulf %313, %321 : vector<8x128xf32>
    %330 = arith.addf %328, %329 : vector<8x128xf32>
    %331 = math.tanh %330 : vector<8x128xf32>
    %332 = arith.mulf %327, %331 : vector<8x128xf32>
    %cst_67 = arith.constant dense<0.000000e+00> : vector<8x512xf32>
    %333 = tpu.matmul %332, %8, %cst_67 {dimension_numbers = #tpu.dot_dimension_numbers<[1], [0], [0], [1], [0, 0, 1, 1], [], []>} : vector<8x128xf32>, vector<128x512xf32>, vector<8x512xf32> -> vector<8x512xf32>
    %cst_68 = arith.constant dense<0.000000e+00> : vector<8x512xf32>
    %334 = tpu.matmul %304, %9, %cst_68 {dimension_numbers = #tpu.dot_dimension_numbers<[1], [0], [0], [1], [0, 0, 1, 1], [], []>} : vector<8x128xf32>, vector<128x512xf32>, vector<8x512xf32> -> vector<8x512xf32>
    %335 = arith.addf %333, %334 : vector<8x512xf32>
    %336 = vector.broadcast %10 : vector<1x512xf32> to vector<8x512xf32>
    %337 = arith.addf %335, %336 : vector<8x512xf32>
    %338 = vector.extract_strided_slice %337 {offsets = [0, 0], sizes = [8, 128], strides = [1, 1]} : vector<8x512xf32> to vector<8x128xf32>
    %339 = arith.negf %338 : vector<8x128xf32>
    %340 = math.exp %339 : vector<8x128xf32>
    %cst_69 = arith.constant 1.000000e+00 : f32
    %341 = vector.broadcast %cst_69 : f32 to vector<8x128xf32>
    %342 = arith.addf %341, %340 : vector<8x128xf32>
    %343 = arith.divf %341, %342 : vector<8x128xf32>
    %344 = vector.extract_strided_slice %337 {offsets = [0, 128], sizes = [8, 128], strides = [1, 1]} : vector<8x512xf32> to vector<8x128xf32>
    %345 = arith.negf %344 : vector<8x128xf32>
    %346 = math.exp %345 : vector<8x128xf32>
    %cst_70 = arith.constant 1.000000e+00 : f32
    %347 = vector.broadcast %cst_70 : f32 to vector<8x128xf32>
    %348 = arith.addf %347, %346 : vector<8x128xf32>
    %349 = arith.divf %347, %348 : vector<8x128xf32>
    %350 = vector.extract_strided_slice %337 {offsets = [0, 256], sizes = [8, 128], strides = [1, 1]} : vector<8x512xf32> to vector<8x128xf32>
    %351 = math.tanh %350 : vector<8x128xf32>
    %352 = vector.extract_strided_slice %337 {offsets = [0, 384], sizes = [8, 128], strides = [1, 1]} : vector<8x512xf32> to vector<8x128xf32>
    %353 = arith.negf %352 : vector<8x128xf32>
    %354 = math.exp %353 : vector<8x128xf32>
    %cst_71 = arith.constant 1.000000e+00 : f32
    %355 = vector.broadcast %cst_71 : f32 to vector<8x128xf32>
    %356 = arith.addf %355, %354 : vector<8x128xf32>
    %357 = arith.divf %355, %356 : vector<8x128xf32>
    %358 = arith.mulf %349, %302 : vector<8x128xf32>
    %359 = arith.mulf %343, %351 : vector<8x128xf32>
    %360 = arith.addf %358, %359 : vector<8x128xf32>
    %361 = math.tanh %360 : vector<8x128xf32>
    %362 = arith.mulf %357, %361 : vector<8x128xf32>
    %363 = vector.extract_strided_slice %6 {offsets = [48, 0], sizes = [8, 512], strides = [1, 1]} : vector<64x512xf32> to vector<8x512xf32>
    %cst_72 = arith.constant dense<0.000000e+00> : vector<8x512xf32>
    %364 = tpu.matmul %332, %7, %cst_72 {dimension_numbers = #tpu.dot_dimension_numbers<[1], [0], [0], [1], [0, 0, 1, 1], [], []>} : vector<8x128xf32>, vector<128x512xf32>, vector<8x512xf32> -> vector<8x512xf32>
    %365 = arith.addf %363, %364 : vector<8x512xf32>
    %366 = vector.extract_strided_slice %365 {offsets = [0, 0], sizes = [8, 128], strides = [1, 1]} : vector<8x512xf32> to vector<8x128xf32>
    %367 = arith.negf %366 : vector<8x128xf32>
    %368 = math.exp %367 : vector<8x128xf32>
    %cst_73 = arith.constant 1.000000e+00 : f32
    %369 = vector.broadcast %cst_73 : f32 to vector<8x128xf32>
    %370 = arith.addf %369, %368 : vector<8x128xf32>
    %371 = arith.divf %369, %370 : vector<8x128xf32>
    %372 = vector.extract_strided_slice %365 {offsets = [0, 128], sizes = [8, 128], strides = [1, 1]} : vector<8x512xf32> to vector<8x128xf32>
    %373 = arith.negf %372 : vector<8x128xf32>
    %374 = math.exp %373 : vector<8x128xf32>
    %cst_74 = arith.constant 1.000000e+00 : f32
    %375 = vector.broadcast %cst_74 : f32 to vector<8x128xf32>
    %376 = arith.addf %375, %374 : vector<8x128xf32>
    %377 = arith.divf %375, %376 : vector<8x128xf32>
    %378 = vector.extract_strided_slice %365 {offsets = [0, 256], sizes = [8, 128], strides = [1, 1]} : vector<8x512xf32> to vector<8x128xf32>
    %379 = math.tanh %378 : vector<8x128xf32>
    %380 = vector.extract_strided_slice %365 {offsets = [0, 384], sizes = [8, 128], strides = [1, 1]} : vector<8x512xf32> to vector<8x128xf32>
    %381 = arith.negf %380 : vector<8x128xf32>
    %382 = math.exp %381 : vector<8x128xf32>
    %cst_75 = arith.constant 1.000000e+00 : f32
    %383 = vector.broadcast %cst_75 : f32 to vector<8x128xf32>
    %384 = arith.addf %383, %382 : vector<8x128xf32>
    %385 = arith.divf %383, %384 : vector<8x128xf32>
    %386 = arith.mulf %377, %330 : vector<8x128xf32>
    %387 = arith.mulf %371, %379 : vector<8x128xf32>
    %388 = arith.addf %386, %387 : vector<8x128xf32>
    %389 = math.tanh %388 : vector<8x128xf32>
    %390 = arith.mulf %385, %389 : vector<8x128xf32>
    %cst_76 = arith.constant dense<0.000000e+00> : vector<8x512xf32>
    %391 = tpu.matmul %390, %8, %cst_76 {dimension_numbers = #tpu.dot_dimension_numbers<[1], [0], [0], [1], [0, 0, 1, 1], [], []>} : vector<8x128xf32>, vector<128x512xf32>, vector<8x512xf32> -> vector<8x512xf32>
    %cst_77 = arith.constant dense<0.000000e+00> : vector<8x512xf32>
    %392 = tpu.matmul %362, %9, %cst_77 {dimension_numbers = #tpu.dot_dimension_numbers<[1], [0], [0], [1], [0, 0, 1, 1], [], []>} : vector<8x128xf32>, vector<128x512xf32>, vector<8x512xf32> -> vector<8x512xf32>
    %393 = arith.addf %391, %392 : vector<8x512xf32>
    %394 = vector.broadcast %10 : vector<1x512xf32> to vector<8x512xf32>
    %395 = arith.addf %393, %394 : vector<8x512xf32>
    %396 = vector.extract_strided_slice %395 {offsets = [0, 0], sizes = [8, 128], strides = [1, 1]} : vector<8x512xf32> to vector<8x128xf32>
    %397 = arith.negf %396 : vector<8x128xf32>
    %398 = math.exp %397 : vector<8x128xf32>
    %cst_78 = arith.constant 1.000000e+00 : f32
    %399 = vector.broadcast %cst_78 : f32 to vector<8x128xf32>
    %400 = arith.addf %399, %398 : vector<8x128xf32>
    %401 = arith.divf %399, %400 : vector<8x128xf32>
    %402 = vector.extract_strided_slice %395 {offsets = [0, 128], sizes = [8, 128], strides = [1, 1]} : vector<8x512xf32> to vector<8x128xf32>
    %403 = arith.negf %402 : vector<8x128xf32>
    %404 = math.exp %403 : vector<8x128xf32>
    %cst_79 = arith.constant 1.000000e+00 : f32
    %405 = vector.broadcast %cst_79 : f32 to vector<8x128xf32>
    %406 = arith.addf %405, %404 : vector<8x128xf32>
    %407 = arith.divf %405, %406 : vector<8x128xf32>
    %408 = vector.extract_strided_slice %395 {offsets = [0, 256], sizes = [8, 128], strides = [1, 1]} : vector<8x512xf32> to vector<8x128xf32>
    %409 = math.tanh %408 : vector<8x128xf32>
    %410 = vector.extract_strided_slice %395 {offsets = [0, 384], sizes = [8, 128], strides = [1, 1]} : vector<8x512xf32> to vector<8x128xf32>
    %411 = arith.negf %410 : vector<8x128xf32>
    %412 = math.exp %411 : vector<8x128xf32>
    %cst_80 = arith.constant 1.000000e+00 : f32
    %413 = vector.broadcast %cst_80 : f32 to vector<8x128xf32>
    %414 = arith.addf %413, %412 : vector<8x128xf32>
    %415 = arith.divf %413, %414 : vector<8x128xf32>
    %416 = arith.mulf %407, %360 : vector<8x128xf32>
    %417 = arith.mulf %401, %409 : vector<8x128xf32>
    %418 = arith.addf %416, %417 : vector<8x128xf32>
    %419 = math.tanh %418 : vector<8x128xf32>
    %420 = arith.mulf %415, %419 : vector<8x128xf32>
    %421 = vector.extract_strided_slice %6 {offsets = [56, 0], sizes = [8, 512], strides = [1, 1]} : vector<64x512xf32> to vector<8x512xf32>
    %cst_81 = arith.constant dense<0.000000e+00> : vector<8x512xf32>
    %422 = tpu.matmul %390, %7, %cst_81 {dimension_numbers = #tpu.dot_dimension_numbers<[1], [0], [0], [1], [0, 0, 1, 1], [], []>} : vector<8x128xf32>, vector<128x512xf32>, vector<8x512xf32> -> vector<8x512xf32>
    %423 = arith.addf %421, %422 : vector<8x512xf32>
    %424 = vector.extract_strided_slice %423 {offsets = [0, 0], sizes = [8, 128], strides = [1, 1]} : vector<8x512xf32> to vector<8x128xf32>
    %425 = arith.negf %424 : vector<8x128xf32>
    %426 = math.exp %425 : vector<8x128xf32>
    %cst_82 = arith.constant 1.000000e+00 : f32
    %427 = vector.broadcast %cst_82 : f32 to vector<8x128xf32>
    %428 = arith.addf %427, %426 : vector<8x128xf32>
    %429 = arith.divf %427, %428 : vector<8x128xf32>
    %430 = vector.extract_strided_slice %423 {offsets = [0, 128], sizes = [8, 128], strides = [1, 1]} : vector<8x512xf32> to vector<8x128xf32>
    %431 = arith.negf %430 : vector<8x128xf32>
    %432 = math.exp %431 : vector<8x128xf32>
    %cst_83 = arith.constant 1.000000e+00 : f32
    %433 = vector.broadcast %cst_83 : f32 to vector<8x128xf32>
    %434 = arith.addf %433, %432 : vector<8x128xf32>
    %435 = arith.divf %433, %434 : vector<8x128xf32>
    %436 = vector.extract_strided_slice %423 {offsets = [0, 256], sizes = [8, 128], strides = [1, 1]} : vector<8x512xf32> to vector<8x128xf32>
    %437 = math.tanh %436 : vector<8x128xf32>
    %438 = vector.extract_strided_slice %423 {offsets = [0, 384], sizes = [8, 128], strides = [1, 1]} : vector<8x512xf32> to vector<8x128xf32>
    %439 = arith.negf %438 : vector<8x128xf32>
    %440 = math.exp %439 : vector<8x128xf32>
    %cst_84 = arith.constant 1.000000e+00 : f32
    %441 = vector.broadcast %cst_84 : f32 to vector<8x128xf32>
    %442 = arith.addf %441, %440 : vector<8x128xf32>
    %443 = arith.divf %441, %442 : vector<8x128xf32>
    %444 = arith.mulf %435, %388 : vector<8x128xf32>
    %445 = arith.mulf %429, %437 : vector<8x128xf32>
    %446 = arith.addf %444, %445 : vector<8x128xf32>
    %447 = math.tanh %446 : vector<8x128xf32>
    %448 = arith.mulf %443, %447 : vector<8x128xf32>
    %cst_85 = arith.constant dense<0.000000e+00> : vector<8x512xf32>
    %449 = tpu.matmul %448, %8, %cst_85 {dimension_numbers = #tpu.dot_dimension_numbers<[1], [0], [0], [1], [0, 0, 1, 1], [], []>} : vector<8x128xf32>, vector<128x512xf32>, vector<8x512xf32> -> vector<8x512xf32>
    %cst_86 = arith.constant dense<0.000000e+00> : vector<8x512xf32>
    %450 = tpu.matmul %420, %9, %cst_86 {dimension_numbers = #tpu.dot_dimension_numbers<[1], [0], [0], [1], [0, 0, 1, 1], [], []>} : vector<8x128xf32>, vector<128x512xf32>, vector<8x512xf32> -> vector<8x512xf32>
    %451 = arith.addf %449, %450 : vector<8x512xf32>
    %452 = vector.broadcast %10 : vector<1x512xf32> to vector<8x512xf32>
    %453 = arith.addf %451, %452 : vector<8x512xf32>
    %454 = vector.extract_strided_slice %453 {offsets = [0, 0], sizes = [8, 128], strides = [1, 1]} : vector<8x512xf32> to vector<8x128xf32>
    %455 = arith.negf %454 : vector<8x128xf32>
    %456 = math.exp %455 : vector<8x128xf32>
    %cst_87 = arith.constant 1.000000e+00 : f32
    %457 = vector.broadcast %cst_87 : f32 to vector<8x128xf32>
    %458 = arith.addf %457, %456 : vector<8x128xf32>
    %459 = arith.divf %457, %458 : vector<8x128xf32>
    %460 = vector.extract_strided_slice %453 {offsets = [0, 128], sizes = [8, 128], strides = [1, 1]} : vector<8x512xf32> to vector<8x128xf32>
    %461 = arith.negf %460 : vector<8x128xf32>
    %462 = math.exp %461 : vector<8x128xf32>
    %cst_88 = arith.constant 1.000000e+00 : f32
    %463 = vector.broadcast %cst_88 : f32 to vector<8x128xf32>
    %464 = arith.addf %463, %462 : vector<8x128xf32>
    %465 = arith.divf %463, %464 : vector<8x128xf32>
    %466 = vector.extract_strided_slice %453 {offsets = [0, 256], sizes = [8, 128], strides = [1, 1]} : vector<8x512xf32> to vector<8x128xf32>
    %467 = math.tanh %466 : vector<8x128xf32>
    %468 = vector.extract_strided_slice %453 {offsets = [0, 384], sizes = [8, 128], strides = [1, 1]} : vector<8x512xf32> to vector<8x128xf32>
    %469 = arith.negf %468 : vector<8x128xf32>
    %470 = math.exp %469 : vector<8x128xf32>
    %cst_89 = arith.constant 1.000000e+00 : f32
    %471 = vector.broadcast %cst_89 : f32 to vector<8x128xf32>
    %472 = arith.addf %471, %470 : vector<8x128xf32>
    %473 = arith.divf %471, %472 : vector<8x128xf32>
    %474 = arith.mulf %465, %418 : vector<8x128xf32>
    %475 = arith.mulf %459, %467 : vector<8x128xf32>
    %476 = arith.addf %474, %475 : vector<8x128xf32>
    %477 = math.tanh %476 : vector<8x128xf32>
    %478 = arith.mulf %473, %477 : vector<8x128xf32>
    %479 = tpu.concatenate %72, %130, %188, %246, %304, %362, %420, %478 in 0 : vector<8x128xf32>, vector<8x128xf32>, vector<8x128xf32>, vector<8x128xf32>, vector<8x128xf32>, vector<8x128xf32>, vector<8x128xf32>, vector<8x128xf32> -> vector<64x128xf32>
    %c0_90 = arith.constant 0 : index
    %c0_91 = arith.constant 0 : index
    %480 = vector.load %arg7[%c0_90, %c0_91] : memref<128x128xf32, #tpu.memory_space<vmem>>, vector<128x128xf32>
    %cst_92 = arith.constant dense<0.000000e+00> : vector<64x128xf32>
    %481 = tpu.matmul %479, %480, %cst_92 {dimension_numbers = #tpu.dot_dimension_numbers<[1], [0], [0], [1], [0, 0, 1, 1], [], []>} : vector<64x128xf32>, vector<128x128xf32>, vector<64x128xf32> -> vector<64x128xf32>
    %c0_93 = arith.constant 0 : index
    %c0_94 = arith.constant 0 : index
    %482 = vector.load %arg8[%c0_93, %c0_94] : memref<1x128xf32, #tpu.memory_space<vmem>>, vector<1x128xf32>
    %483 = vector.broadcast %482 : vector<1x128xf32> to vector<64x128xf32>
    %484 = arith.addf %481, %483 : vector<64x128xf32>
    %cst_95 = arith.constant dense<0xFF800000> : vector<64xf32>
    %485 = vector.multi_reduction <maximumf>, %484, %cst_95 [1] : vector<64x128xf32> to vector<64xf32>
    %486 = vector.shape_cast %485 : vector<64xf32> to vector<64x1xf32>
    %487 = vector.broadcast %486 : vector<64x1xf32> to vector<64x128xf32>
    %488 = arith.subf %484, %487 : vector<64x128xf32>
    %489 = math.exp %488 : vector<64x128xf32>
    %cst_96 = arith.constant dense<0.000000e+00> : vector<64xf32>
    %490 = vector.multi_reduction <add>, %489, %cst_96 [1] : vector<64x128xf32> to vector<64xf32>
    %491 = vector.shape_cast %490 : vector<64xf32> to vector<64x1xf32>
    %492 = math.log %491 : vector<64x1xf32>
    %493 = arith.addf %486, %492 : vector<64x1xf32>
    %494 = vector.broadcast %493 : vector<64x1xf32> to vector<64x128xf32>
    %495 = arith.subf %484, %494 : vector<64x128xf32>
    %496 = tpu.iota {dimensions = array<i32: 1>} : vector<64x128xi32>
    %c0_97 = arith.constant 0 : index
    %c0_98 = arith.constant 0 : index
    %497 = vector.load %arg9[%c0_97, %c0_98] : memref<64x1xi32, #tpu.memory_space<vmem>>, vector<64x1xi32>
    %498 = vector.broadcast %497 : vector<64x1xi32> to vector<64x128xi32>
    %499 = arith.cmpi eq, %496, %498 : vector<64x128xi32>
    %500 = arith.extui %499 : vector<64x128xi1> to vector<64x128xi32>
    %501 = arith.sitofp %500 : vector<64x128xi32> to vector<64x128xf32>
    %502 = arith.mulf %495, %501 : vector<64x128xf32>
    %cst_99 = arith.constant dense<0.000000e+00> : vector<64xf32>
    %503 = vector.multi_reduction <add>, %502, %cst_99 [1] : vector<64x128xf32> to vector<64xf32>
    %504 = vector.shape_cast %503 : vector<64xf32> to vector<64x1xf32>
    %c0_100 = arith.constant 0 : index
    %c0_101 = arith.constant 0 : index
    %505 = vector.load %arg11[%c0_100, %c0_101] : memref<64x1xf32, #tpu.memory_space<vmem>>, vector<64x1xf32>
    tpu.vector_store %arg11[%c0_100, %c0_101], %504 {strides = array<i32>} : memref<64x1xf32, #tpu.memory_space<vmem>>, vector<64x1xf32>,
    %c0_102 = arith.constant 0 : index
    %c0_103 = arith.constant 0 : index
    %506 = vector.load %arg10[%c0_102, %c0_103] : memref<64x1xf32, #tpu.memory_space<vmem>>, vector<64x1xf32>
    %507 = arith.mulf %504, %506 : vector<64x1xf32>
    %508 = vector.shape_cast %507 : vector<64x1xf32> to vector<1x64x1xf32>
    %cst_104 = arith.constant dense<0.000000e+00> : vector<1xf32>
    %509 = vector.multi_reduction <add>, %508, %cst_104 [1, 2] : vector<1x64x1xf32> to vector<1xf32>
    %510 = vector.shape_cast %509 : vector<1xf32> to vector<1x1x1xf32>
    %511 = vector.extract %510[0, 0, 0] : f32 from vector<1x1x1xf32>
    %cst_105 = arith.constant 0.000000e+00 : f32
    %512 = arith.subf %cst_105, %511 : f32
    %c0_106 = arith.constant 0 : index
    %513 = memref.load %arg12[%c0_106] : memref<1xf32, #tpu.memory_space<smem>>
    memref.store %512, %arg12[%c0_106] : memref<1xf32, #tpu.memory_space<smem>>
    return
  }
}

</mosaic_0001>

<llo_original>
// kernel: network_forward.1
$region0: #{network_forward.1}
  #allocation0 [shape = 'u32[]', space=smem, size = 0x4, offset = 0x4, fixed_abs, tag = 'smem constant byte address 0x4 - core index']
  #allocation1 [shape = 'u32[144,128]{1,0:T(1,128)}', space=vmem, size = 0x12000, scoped, tag = 'internal scratch']
  %s0 = inlined_call_operand.vmem [shape: f32[8,8,128], index: 0, kind: input, shape index: {}]
  %s1 = inlined_call_operand.vmem [shape: f32[128,512], index: 1, kind: input, shape index: {}]
  %s2 = inlined_call_operand.vmem [shape: f32[1,512], index: 2, kind: input, shape index: {}]
  %s3 = inlined_call_operand.vmem [shape: f32[128,512], index: 3, kind: input, shape index: {}]
  %s4 = inlined_call_operand.vmem [shape: f32[128,512], index: 4, kind: input, shape index: {}]
  %s5 = inlined_call_operand.vmem [shape: f32[1,512], index: 5, kind: input, shape index: {}]
  %s6 = inlined_call_operand.vmem [shape: f32[128,512], index: 6, kind: input, shape index: {}]
  %s7 = inlined_call_operand.vmem [shape: f32[128,128], index: 7, kind: input, shape index: {}]
  %s8 = inlined_call_operand.vmem [shape: f32[1,128], index: 8, kind: input, shape index: {}]
  %s9 = inlined_call_operand.vmem [shape: s32[64,1], index: 9, kind: input, shape index: {}]
  %s10 = inlined_call_operand.vmem [shape: f32[64,1], index: 10, kind: input, shape index: {}]
  %s11 = inlined_call_operand.vmem [shape: f32[64,1], index: 11, kind: output, shape index: {0}]
  %s12 = inlined_call_operand.hbm [shape: f32[1], index: 12, kind: output, shape index: {1}]
  %13 = xla_tuple %s11, %s12
  %s14 = sld [smem:[#allocation0]]
  $region62: #{network_forward.1} parent=0
    _
  %s16 = ssub.s32 1, %s14
  %s17 = scalar_select 0, %s16, %s14
  $region1: #{network_forward.1} parent=0
    #allocation2 [shape = 'u8[512]{0}', space=smem, size = 0x200, scoped, tag = 'output window, operand 1, single buffered']
    #allocation3 [shape = 's32[1]{0}', space=sflag, size = 0x4, scoped, tag = 'scoped memory for network_forward.1']
    %18 = vsyncpa [#allocation3], 0
    // Predicated region
    $region2: #{network_forward.1} parent=1 // pred_check
      _
    $region3: #{network_forward.1} parent=1 // pred_check_branch
      %20 = sbr.rel (0) target = $region5
    $region4: #{network_forward.1} parent=1 // pred_region
      _
    $region5: #{network_forward.1} parent=1 // pred_fallthru
      _
    // Predicated region
    $region6: #{network_forward.1} parent=1 // pred_check
      _
    $region7: #{network_forward.1} parent=1 // pred_check_branch
      %22 = sbr.rel (0) target = $region9
    $region8: #{network_forward.1} parent=1 // pred_region
      _
    $region9: #{network_forward.1} parent=1 // pred_fallthru
      _
    // Predicated region
    $region10: #{network_forward.1} parent=1 // pred_check
      _
    $region11: #{network_forward.1} parent=1 // pred_check_branch
      %24 = sbr.rel (0) target = $region13
    $region12: #{network_forward.1} parent=1 // pred_region
      _
    $region13: #{network_forward.1} parent=1 // pred_fallthru
      _
    // Predicated region
    $region14: #{network_forward.1} parent=1 // pred_check
      _
    $region15: #{network_forward.1} parent=1 // pred_check_branch
      %26 = sbr.rel (0) target = $region17
    $region16: #{network_forward.1} parent=1 // pred_region
      _
    $region17: #{network_forward.1} parent=1 // pred_fallthru
      _
    // Predicated region
    $region18: #{network_forward.1} parent=1 // pred_check
      _
    $region19: #{network_forward.1} parent=1 // pred_check_branch
      %28 = sbr.rel (0) target = $region21
    $region20: #{network_forward.1} parent=1 // pred_region
      _
    $region21: #{network_forward.1} parent=1 // pred_fallthru
      _
    // Predicated region
    $region22: #{network_forward.1} parent=1 // pred_check
      _
    $region23: #{network_forward.1} parent=1 // pred_check_branch
      %30 = sbr.rel (0) target = $region25
    $region24: #{network_forward.1} parent=1 // pred_region
      _
    $region25: #{network_forward.1} parent=1 // pred_fallthru
      _
    // Predicated region
    $region26: #{network_forward.1} parent=1 // pred_check
      _
    $region27: #{network_forward.1} parent=1 // pred_check_branch
      %32 = sbr.rel (0) target = $region29
    $region28: #{network_forward.1} parent=1 // pred_region
      _
    $region29: #{network_forward.1} parent=1 // pred_fallthru
      _
    // Predicated region
    $region30: #{network_forward.1} parent=1 // pred_check
      _
    $region31: #{network_forward.1} parent=1 // pred_check_branch
      %34 = sbr.rel (0) target = $region33
    $region32: #{network_forward.1} parent=1 // pred_region
      _
    $region33: #{network_forward.1} parent=1 // pred_fallthru
      _
    // Predicated region
    $region34: #{network_forward.1} parent=1 // pred_check
      _
    $region35: #{network_forward.1} parent=1 // pred_check_branch
      %36 = sbr.rel (0) target = $region37
    $region36: #{network_forward.1} parent=1 // pred_region
      _
    $region37: #{network_forward.1} parent=1 // pred_fallthru
      _
    // Predicated region
    $region38: #{network_forward.1} parent=1 // pred_check
      _
    $region39: #{network_forward.1} parent=1 // pred_check_branch
      %38 = sbr.rel (0) target = $region41
    $region40: #{network_forward.1} parent=1 // pred_region
      _
    $region41: #{network_forward.1} parent=1 // pred_fallthru
      _
    // Predicated region
    $region42: #{network_forward.1} parent=1 // pred_check
      _
    $region43: #{network_forward.1} parent=1 // pred_check_branch
      %40 = sbr.rel (0) target = $region45
    $region44: #{network_forward.1} parent=1 // pred_region
      _
    $region45: #{network_forward.1} parent=1 // pred_fallthru
      _
    %v41 = vld [vmem:[%s0] sm:$0xff]
    %v42 = vld [vmem:[%s0 + $0x8] sm:$0xff]
    %v43 = vld [vmem:[%s0 + $0x10] sm:$0xff]
    %v44 = vld [vmem:[%s0 + $0x18] sm:$0xff]
    %v45 = vld [vmem:[%s0 + $0x20] sm:$0xff]
    %v46 = vld [vmem:[%s0 + $0x28] sm:$0xff]
    %v47 = vld [vmem:[%s0 + $0x30] sm:$0xff]
    %v48 = vld [vmem:[%s0 + $0x38] sm:$0xff]
    %v49 = vld [vmem:[%s1] sm:$0xff]
    %v50 = vld [vmem:[%s1 + $0x8] sm:$0xff]
    %v51 = vld [vmem:[%s1 + $0x10] sm:$0xff]
    %v52 = vld [vmem:[%s1 + $0x18] sm:$0xff]
    %v53 = vld [vmem:[%s1 + $0x20] sm:$0xff]
    %v54 = vld [vmem:[%s1 + $0x28] sm:$0xff]
    %v55 = vld [vmem:[%s1 + $0x30] sm:$0xff]
    %v56 = vld [vmem:[%s1 + $0x38] sm:$0xff]
    %v57 = vld [vmem:[%s1 + $0x40] sm:$0xff]
    %v58 = vld [vmem:[%s1 + $0x48] sm:$0xff]
    %v59 = vld [vmem:[%s1 + $0x50] sm:$0xff]
    %v60 = vld [vmem:[%s1 + $0x58] sm:$0xff]
    %v61 = vld [vmem:[%s1 + $0x60] sm:$0xff]
    %v62 = vld [vmem:[%s1 + $0x68] sm:$0xff]
    %v63 = vld [vmem:[%s1 + $0x70] sm:$0xff]
    %v64 = vld [vmem:[%s1 + $0x78] sm:$0xff]
    %v65 = vld [vmem:[%s1 + $0x80] sm:$0xff]
    %v66 = vld [vmem:[%s1 + $0x88] sm:$0xff]
    %v67 = vld [vmem:[%s1 + $0x90] sm:$0xff]
    %v68 = vld [vmem:[%s1 + $0x98] sm:$0xff]
    %v69 = vld [vmem:[%s1 + $0xa0] sm:$0xff]
    %v70 = vld [vmem:[%s1 + $0xa8] sm:$0xff]
    %v71 = vld [vmem:[%s1 + $0xb0] sm:$0xff]
    %v72 = vld [vmem:[%s1 + $0xb8] sm:$0xff]
    %v73 = vld [vmem:[%s1 + $0xc0] sm:$0xff]
    %v74 = vld [vmem:[%s1 + $0xc8] sm:$0xff]
    %v75 = vld [vmem:[%s1 + $0xd0] sm:$0xff]
    %v76 = vld [vmem:[%s1 + $0xd8] sm:$0xff]
    %v77 = vld [vmem:[%s1 + $0xe0] sm:$0xff]
    %v78 = vld [vmem:[%s1 + $0xe8] sm:$0xff]
    %v79 = vld [vmem:[%s1 + $0xf0] sm:$0xff]
    %v80 = vld [vmem:[%s1 + $0xf8] sm:$0xff]
    %v81 = vld [vmem:[%s1 + $0x100] sm:$0xff]
    %v82 = vld [vmem:[%s1 + $0x108] sm:$0xff]
    %v83 = vld [vmem:[%s1 + $0x110] sm:$0xff]
    %v84 = vld [vmem:[%s1 + $0x118] sm:$0xff]
    %v85 = vld [vmem:[%s1 + $0x120] sm:$0xff]
    %v86 = vld [vmem:[%s1 + $0x128] sm:$0xff]
    %v87 = vld [vmem:[%s1 + $0x130] sm:$0xff]
    %v88 = vld [vmem:[%s1 + $0x138] sm:$0xff]
    %v89 = vld [vmem:[%s1 + $0x140] sm:$0xff]
    %v90 = vld [vmem:[%s1 + $0x148] sm:$0xff]
    %v91 = vld [vmem:[%s1 + $0x150] sm:$0xff]
    %v92 = vld [vmem:[%s1 + $0x158] sm:$0xff]
    %v93 = vld [vmem:[%s1 + $0x160] sm:$0xff]
    %v94 = vld [vmem:[%s1 + $0x168] sm:$0xff]
    %v95 = vld [vmem:[%s1 + $0x170] sm:$0xff]
    %v96 = vld [vmem:[%s1 + $0x178] sm:$0xff]
    %v97 = vld [vmem:[%s1 + $0x180] sm:$0xff]
    %v98 = vld [vmem:[%s1 + $0x188] sm:$0xff]
    %v99 = vld [vmem:[%s1 + $0x190] sm:$0xff]
    %v100 = vld [vmem:[%s1 + $0x198] sm:$0xff]
    %v101 = vld [vmem:[%s1 + $0x1a0] sm:$0xff]
    %v102 = vld [vmem:[%s1 + $0x1a8] sm:$0xff]
    %v103 = vld [vmem:[%s1 + $0x1b0] sm:$0xff]
    %v104 = vld [vmem:[%s1 + $0x1b8] sm:$0xff]
    %v105 = vld [vmem:[%s1 + $0x1c0] sm:$0xff]
    %v106 = vld [vmem:[%s1 + $0x1c8] sm:$0xff]
    %v107 = vld [vmem:[%s1 + $0x1d0] sm:$0xff]
    %v108 = vld [vmem:[%s1 + $0x1d8] sm:$0xff]
    %v109 = vld [vmem:[%s1 + $0x1e0] sm:$0xff]
    %v110 = vld [vmem:[%s1 + $0x1e8] sm:$0xff]
    %v111 = vld [vmem:[%s1 + $0x1f0] sm:$0xff]
    %v112 = vld [vmem:[%s1 + $0x1f8] sm:$0xff]
    %v113 = vld [vmem:[%s2] sm:$0xf]
    %v115 = vlaneseq
    %v116 = vshrl.u32 %v115, 7
    %v117 = vsub.s32 0, %v116
    %v118 = vrot.slane %v113, %v117
    %v119 = vlaneseq
    %v120 = vshrl.u32 %v119, 7
    %v121 = vsub.s32 1, %v120
    %v122 = vrot.slane %v113, %v121
    %v123 = vlaneseq
    %v124 = vshrl.u32 %v123, 7
    %v125 = vsub.s32 2, %v124
    %v126 = vrot.slane %v113, %v125
    %v127 = vlaneseq
    %v128 = vshrl.u32 %v127, 7
    %v129 = vsub.s32 3, %v128
    %v130 = vrot.slane %v113, %v129
    %135 = vmatprep.subr.mxu0 %v50
    %136 = vmatpush1.msra.mxu0 %v49
    %137 = vmatprep.subr.mxu0 %v54
    %138 = vmatpush1.msra.mxu0 %v53
    %139 = vmatprep.subr.mxu0 %v58
    %140 = vmatpush1.msra.mxu0 %v57
    %141 = vmatprep.subr.mxu0 %v62
    %142 = vmatpush1.msra.mxu0 %v61
    %143 = vmatprep.subr.mxu0 %v66
    %144 = vmatpush1.msra.mxu0 %v65
    %145 = vmatprep.subr.mxu0 %v70
    %146 = vmatpush1.msra.mxu0 %v69
    %147 = vmatprep.subr.mxu0 %v74
    %148 = vmatpush1.msra.mxu0 %v73
    %149 = vmatprep.subr.mxu0 %v78
    %150 = vmatpush1.msra.mxu0 %v77
    %151 = vmatprep.subr.mxu0 %v82
    %152 = vmatpush1.msra.mxu0 %v81
    %153 = vmatprep.subr.mxu0 %v86
    %154 = vmatpush1.msra.mxu0 %v85
    %155 = vmatprep.subr.mxu0 %v90
    %156 = vmatpush1.msra.mxu0 %v89
    %157 = vmatprep.subr.mxu0 %v94
    %158 = vmatpush1.msra.mxu0 %v93
    %159 = vmatprep.subr.mxu0 %v98
    %160 = vmatpush1.msra.mxu0 %v97
    %161 = vmatprep.subr.mxu0 %v102
    %162 = vmatpush1.msra.mxu0 %v101
    %163 = vmatprep.subr.mxu0 %v106
    %164 = vmatpush1.msra.mxu0 %v105
    %165 = vmatprep.subr.mxu0 %v110
    %166 = vmatpush1.msra.mxu0 %v109
    %167 = vmatprep.subr.mxu0 0.0
    %168 = vmatpush1.msra.mxu0 0.0
    %169 = vmatprep.subr.mxu0 0.0
    %170 = vmatpush1.msra.mxu0 0.0
    %171 = vmatprep.subr.mxu0 0.0
    %172 = vmatpush1.msra.mxu0 0.0
    %173 = vmatprep.subr.mxu0 0.0
    %174 = vmatpush1.msra.mxu0 0.0
    %175 = vmatprep.subr.mxu0 0.0
    %176 = vmatpush1.msra.mxu0 0.0
    %177 = vmatprep.subr.mxu0 0.0
    %178 = vmatpush1.msra.mxu0 0.0
    %179 = vmatprep.subr.mxu0 0.0
    %180 = vmatpush1.msra.mxu0 0.0
    %181 = vmatprep.subr.mxu0 0.0
    %182 = vmatpush1.msra.mxu0 0.0
    %183 = vmatprep.subr.mxu0 0.0
    %184 = vmatpush1.msra.mxu0 0.0
    %185 = vmatprep.subr.mxu0 0.0
    %186 = vmatpush1.msra.mxu0 0.0
    %187 = vmatprep.subr.mxu0 0.0
    %188 = vmatpush1.msra.mxu0 0.0
    %189 = vmatprep.subr.mxu0 0.0
    %190 = vmatpush1.msra.mxu0 0.0
    %191 = vmatprep.subr.mxu0 0.0
    %192 = vmatpush1.msra.mxu0 0.0
    %193 = vmatprep.subr.mxu0 0.0
    %194 = vmatpush1.msra.mxu0 0.0
    %195 = vmatprep.subr.mxu0 0.0
    %196 = vmatpush1.msra.mxu0 0.0
    %197 = vmatprep.subr.mxu0 0.0
    %198 = vmatpush1.msra.mxu0 0.0
    %199 = vmatprep.mubr.f32.mxu0 0.0
    %200 = vmatmul.mubr.f32.gmra.mrb[0].mxu0 %v41
    %v201 = vpop.f32.mrb[0].mxu0
    %v202 = vadd.f32 %v118, %v201
    %v203 = vpop.f32.mrb[0].mxu0
    %v204 = vadd.f32 %v122, %v203
    %205 = vmatprep.mubr.f32.mxu0 0.0
    %206 = vmatmul.mubr.f32.gmra.mrb[0].mxu0 %v42
    %v207 = vpop.f32.mrb[0].mxu0
    %v208 = vadd.f32 %v118, %v207
    %v209 = vpop.f32.mrb[0].mxu0
    %v210 = vadd.f32 %v122, %v209
    %211 = vmatprep.mubr.f32.mxu0 0.0
    %212 = vmatmul.mubr.f32.gmra.mrb[0].mxu0 %v43
    %v213 = vpop.f32.mrb[0].mxu0
    %v214 = vadd.f32 %v118, %v213
    %v215 = vpop.f32.mrb[0].mxu0
    %v216 = vadd.f32 %v122, %v215
    %217 = vmatprep.mubr.f32.mxu0 0.0
    %218 = vmatmul.mubr.f32.gmra.mrb[0].mxu0 %v44
    %v219 = vpop.f32.mrb[0].mxu0
    %v220 = vadd.f32 %v118, %v219
    %v221 = vpop.f32.mrb[0].mxu0
    %v222 = vadd.f32 %v122, %v221
    %223 = vmatprep.mubr.f32.mxu0 0.0
    %224 = vmatmul.mubr.f32.gmra.mrb[0].mxu0 %v45
    %v225 = vpop.f32.mrb[0].mxu0
    %v226 = vadd.f32 %v118, %v225
    %v227 = vpop.f32.mrb[0].mxu0
    %v228 = vadd.f32 %v122, %v227
    %229 = vmatprep.mubr.f32.mxu0 0.0
    %230 = vmatmul.mubr.f32.gmra.mrb[0].mxu0 %v46
    %v231 = vpop.f32.mrb[0].mxu0
    %v232 = vadd.f32 %v118, %v231
    %v233 = vpop.f32.mrb[0].mxu0
    %v234 = vadd.f32 %v122, %v233
    %235 = vmatprep.mubr.f32.mxu0 0.0
    %236 = vmatmul.mubr.f32.gmra.mrb[0].mxu0 %v47
    %v237 = vpop.f32.mrb[0].mxu0
    %v238 = vadd.f32 %v118, %v237
    %v239 = vpop.f32.mrb[0].mxu0
    %v240 = vadd.f32 %v122, %v239
    %241 = vmatprep.mubr.f32.mxu0 0.0
    %242 = vmatmul.mubr.f32.gmra.mrb[0].mxu0 %v48
    %v243 = vpop.f32.mrb[0].mxu0
    %v244 = vadd.f32 %v118, %v243
    %v245 = vpop.f32.mrb[0].mxu0
    %v246 = vadd.f32 %v122, %v245
    %247 = vdwg.mxu0
    %248 = vmatprep.subr.mxu0 %v52
    %249 = vmatpush1.msra.mxu0 %v51
    %250 = vmatprep.subr.mxu0 %v56
    %251 = vmatpush1.msra.mxu0 %v55
    %252 = vmatprep.subr.mxu0 %v60
    %253 = vmatpush1.msra.mxu0 %v59
    %254 = vmatprep.subr.mxu0 %v64
    %255 = vmatpush1.msra.mxu0 %v63
    %256 = vmatprep.subr.mxu0 %v68
    %257 = vmatpush1.msra.mxu0 %v67
    %258 = vmatprep.subr.mxu0 %v72
    %259 = vmatpush1.msra.mxu0 %v71
    %260 = vmatprep.subr.mxu0 %v76
    %261 = vmatpush1.msra.mxu0 %v75
    %262 = vmatprep.subr.mxu0 %v80
    %263 = vmatpush1.msra.mxu0 %v79
    %264 = vmatprep.subr.mxu0 %v84
    %265 = vmatpush1.msra.mxu0 %v83
    %266 = vmatprep.subr.mxu0 %v88
    %267 = vmatpush1.msra.mxu0 %v87
    %268 = vmatprep.subr.mxu0 %v92
    %269 = vmatpush1.msra.mxu0 %v91
    %270 = vmatprep.subr.mxu0 %v96
    %271 = vmatpush1.msra.mxu0 %v95
    %272 = vmatprep.subr.mxu0 %v100
    %273 = vmatpush1.msra.mxu0 %v99
    %274 = vmatprep.subr.mxu0 %v104
    %275 = vmatpush1.msra.mxu0 %v103
    %276 = vmatprep.subr.mxu0 %v108
    %277 = vmatpush1.msra.mxu0 %v107
    %278 = vmatprep.subr.mxu0 %v112
    %279 = vmatpush1.msra.mxu0 %v111
    %280 = vmatprep.subr.mxu0 0.0
    %281 = vmatpush1.msra.mxu0 0.0
    %282 = vmatprep.subr.mxu0 0.0
    %283 = vmatpush1.msra.mxu0 0.0
    %284 = vmatprep.subr.mxu0 0.0
    %285 = vmatpush1.msra.mxu0 0.0
    %286 = vmatprep.subr.mxu0 0.0
    %287 = vmatpush1.msra.mxu0 0.0
    %288 = vmatprep.subr.mxu0 0.0
    %289 = vmatpush1.msra.mxu0 0.0
    %290 = vmatprep.subr.mxu0 0.0
    %291 = vmatpush1.msra.mxu0 0.0
    %292 = vmatprep.subr.mxu0 0.0
    %293 = vmatpush1.msra.mxu0 0.0
    %294 = vmatprep.subr.mxu0 0.0
    %295 = vmatpush1.msra.mxu0 0.0
    %296 = vmatprep.subr.mxu0 0.0
    %297 = vmatpush1.msra.mxu0 0.0
    %298 = vmatprep.subr.mxu0 0.0
    %299 = vmatpush1.msra.mxu0 0.0
    %300 = vmatprep.subr.mxu0 0.0
    %301 = vmatpush1.msra.mxu0 0.0
    %302 = vmatprep.subr.mxu0 0.0
    %303 = vmatpush1.msra.mxu0 0.0
    %304 = vmatprep.subr.mxu0 0.0
    %305 = vmatpush1.msra.mxu0 0.0
    %306 = vmatprep.subr.mxu0 0.0
    %307 = vmatpush1.msra.mxu0 0.0
    %308 = vmatprep.subr.mxu0 0.0
    %309 = vmatpush1.msra.mxu0 0.0
    %310 = vmatprep.subr.mxu0 0.0
    %311 = vmatpush1.msra.mxu0 0.0
    %312 = vmatprep.mubr.f32.mxu0 0.0
    %313 = vmatmul.mubr.f32.gmra.mrb[0].mxu0 %v41
    %v314 = vpop.f32.mrb[0].mxu0
    %v315 = vadd.f32 %v126, %v314
    %v316 = vpop.f32.mrb[0].mxu0
    %v317 = vadd.f32 %v130, %v316
    %318 = vmatprep.mubr.f32.mxu0 0.0
    %319 = vmatmul.mubr.f32.gmra.mrb[0].mxu0 %v42
    %v320 = vpop.f32.mrb[0].mxu0
    %v321 = vadd.f32 %v126, %v320
    %v322 = vpop.f32.mrb[0].mxu0
    %v323 = vadd.f32 %v130, %v322
    %324 = vmatprep.mubr.f32.mxu0 0.0
    %325 = vmatmul.mubr.f32.gmra.mrb[0].mxu0 %v43
    %v326 = vpop.f32.mrb[0].mxu0
    %v327 = vadd.f32 %v126, %v326
    %v328 = vpop.f32.mrb[0].mxu0
    %v329 = vadd.f32 %v130, %v328
    %330 = vmatprep.mubr.f32.mxu0 0.0
    %331 = vmatmul.mubr.f32.gmra.mrb[0].mxu0 %v44
    %v332 = vpop.f32.mrb[0].mxu0
    %v333 = vadd.f32 %v126, %v332
    %v334 = vpop.f32.mrb[0].mxu0
    %v335 = vadd.f32 %v130, %v334
    %336 = vmatprep.mubr.f32.mxu0 0.0
    %337 = vmatmul.mubr.f32.gmra.mrb[0].mxu0 %v45
    %v338 = vpop.f32.mrb[0].mxu0
    %v339 = vadd.f32 %v126, %v338
    %v340 = vpop.f32.mrb[0].mxu0
    %v341 = vadd.f32 %v130, %v340
    %342 = vmatprep.mubr.f32.mxu0 0.0
    %343 = vmatmul.mubr.f32.gmra.mrb[0].mxu0 %v46
    %v344 = vpop.f32.mrb[0].mxu0
    %v345 = vadd.f32 %v126, %v344
    %v346 = vpop.f32.mrb[0].mxu0
    %v347 = vadd.f32 %v130, %v346
    %348 = vmatprep.mubr.f32.mxu0 0.0
    %349 = vmatmul.mubr.f32.gmra.mrb[0].mxu0 %v47
    %v350 = vpop.f32.mrb[0].mxu0
    %v351 = vadd.f32 %v126, %v350
    %v352 = vpop.f32.mrb[0].mxu0
    %v353 = vadd.f32 %v130, %v352
    %354 = vmatprep.mubr.f32.mxu0 0.0
    %355 = vmatmul.mubr.f32.gmra.mrb[0].mxu0 %v48
    %v356 = vpop.f32.mrb[0].mxu0
    %v357 = vadd.f32 %v126, %v356
    %v358 = vpop.f32.mrb[0].mxu0
    %v359 = vadd.f32 %v130, %v358
    %360 = vdwg.mxu0
    %v361 = vld [vmem:[%s3] sm:$0xff]
    %v362 = vld [vmem:[%s3 + $0x8] sm:$0xff]
    %v363 = vld [vmem:[%s3 + $0x10] sm:$0xff]
    %v364 = vld [vmem:[%s3 + $0x18] sm:$0xff]
    %v365 = vld [vmem:[%s3 + $0x20] sm:$0xff]
    %v366 = vld [vmem:[%s3 + $0x28] sm:$0xff]
    %v367 = vld [vmem:[%s3 + $0x30] sm:$0xff]
    %v368 = vld [vmem:[%s3 + $0x38] sm:$0xff]
    %v369 = vld [vmem:[%s3 + $0x40] sm:$0xff]
    %v370 = vld [vmem:[%s3 + $0x48] sm:$0xff]
    %v371 = vld [vmem:[%s3 + $0x50] sm:$0xff]
    %v372 = vld [vmem:[%s3 + $0x58] sm:$0xff]
    %v373 = vld [vmem:[%s3 + $0x60] sm:$0xff]
    %v374 = vld [vmem:[%s3 + $0x68] sm:$0xff]
    %v375 = vld [vmem:[%s3 + $0x70] sm:$0xff]
    %v376 = vld [vmem:[%s3 + $0x78] sm:$0xff]
    %v377 = vld [vmem:[%s3 + $0x80] sm:$0xff]
    %v378 = vld [vmem:[%s3 + $0x88] sm:$0xff]
    %v379 = vld [vmem:[%s3 + $0x90] sm:$0xff]
    %v380 = vld [vmem:[%s3 + $0x98] sm:$0xff]
    %v381 = vld [vmem:[%s3 + $0xa0] sm:$0xff]
    %v382 = vld [vmem:[%s3 + $0xa8] sm:$0xff]
    %v383 = vld [vmem:[%s3 + $0xb0] sm:$0xff]
    %v384 = vld [vmem:[%s3 + $0xb8] sm:$0xff]
    %v385 = vld [vmem:[%s3 + $0xc0] sm:$0xff]
    %v386 = vld [vmem:[%s3 + $0xc8] sm:$0xff]
    %v387 = vld [vmem:[%s3 + $0xd0] sm:$0xff]
    %v388 = vld [vmem:[%s3 + $0xd8] sm:$0xff]
    %v389 = vld [vmem:[%s3 + $0xe0] sm:$0xff]
    %v390 = vld [vmem:[%s3 + $0xe8] sm:$0xff]
    %v391 = vld [vmem:[%s3 + $0xf0] sm:$0xff]
    %v392 = vld [vmem:[%s3 + $0xf8] sm:$0xff]
    %v393 = vld [vmem:[%s3 + $0x100] sm:$0xff]
    %v394 = vld [vmem:[%s3 + $0x108] sm:$0xff]
    %v395 = vld [vmem:[%s3 + $0x110] sm:$0xff]
    %v396 = vld [vmem:[%s3 + $0x118] sm:$0xff]
    %v397 = vld [vmem:[%s3 + $0x120] sm:$0xff]
    %v398 = vld [vmem:[%s3 + $0x128] sm:$0xff]
    %v399 = vld [vmem:[%s3 + $0x130] sm:$0xff]
    %v400 = vld [vmem:[%s3 + $0x138] sm:$0xff]
    %v401 = vld [vmem:[%s3 + $0x140] sm:$0xff]
    %v402 = vld [vmem:[%s3 + $0x148] sm:$0xff]
    %v403 = vld [vmem:[%s3 + $0x150] sm:$0xff]
    %v404 = vld [vmem:[%s3 + $0x158] sm:$0xff]
    %v405 = vld [vmem:[%s3 + $0x160] sm:$0xff]
    %v406 = vld [vmem:[%s3 + $0x168] sm:$0xff]
    %v407 = vld [vmem:[%s3 + $0x170] sm:$0xff]
    %v408 = vld [vmem:[%s3 + $0x178] sm:$0xff]
    %v409 = vld [vmem:[%s3 + $0x180] sm:$0xff]
    %v410 = vld [vmem:[%s3 + $0x188] sm:$0xff]
    %v411 = vld [vmem:[%s3 + $0x190] sm:$0xff]
    %v412 = vld [vmem:[%s3 + $0x198] sm:$0xff]
    %v413 = vld [vmem:[%s3 + $0x1a0] sm:$0xff]
    %v414 = vld [vmem:[%s3 + $0x1a8] sm:$0xff]
    %v415 = vld [vmem:[%s3 + $0x1b0] sm:$0xff]
    %v416 = vld [vmem:[%s3 + $0x1b8] sm:$0xff]
    %v417 = vld [vmem:[%s3 + $0x1c0] sm:$0xff]
    %v418 = vld [vmem:[%s3 + $0x1c8] sm:$0xff]
    %v419 = vld [vmem:[%s3 + $0x1d0] sm:$0xff]
    %v420 = vld [vmem:[%s3 + $0x1d8] sm:$0xff]
    %v421 = vld [vmem:[%s3 + $0x1e0] sm:$0xff]
    %v422 = vld [vmem:[%s3 + $0x1e8] sm:$0xff]
    %v423 = vld [vmem:[%s3 + $0x1f0] sm:$0xff]
    %v424 = vld [vmem:[%s3 + $0x1f8] sm:$0xff]
    %v425 = vld [vmem:[%s4] sm:$0xff]
    %v426 = vld [vmem:[%s4 + $0x8] sm:$0xff]
    %v427 = vld [vmem:[%s4 + $0x10] sm:$0xff]
    %v428 = vld [vmem:[%s4 + $0x18] sm:$0xff]
    %v429 = vld [vmem:[%s4 + $0x20] sm:$0xff]
    %v430 = vld [vmem:[%s4 + $0x28] sm:$0xff]
    %v431 = vld [vmem:[%s4 + $0x30] sm:$0xff]
    %v432 = vld [vmem:[%s4 + $0x38] sm:$0xff]
    %v433 = vld [vmem:[%s4 + $0x40] sm:$0xff]
    %v434 = vld [vmem:[%s4 + $0x48] sm:$0xff]
    %v435 = vld [vmem:[%s4 + $0x50] sm:$0xff]
    %v436 = vld [vmem:[%s4 + $0x58] sm:$0xff]
    %v437 = vld [vmem:[%s4 + $0x60] sm:$0xff]
    %v438 = vld [vmem:[%s4 + $0x68] sm:$0xff]
    %v439 = vld [vmem:[%s4 + $0x70] sm:$0xff]
    %v440 = vld [vmem:[%s4 + $0x78] sm:$0xff]
    %v441 = vld [vmem:[%s4 + $0x80] sm:$0xff]
    %v442 = vld [vmem:[%s4 + $0x88] sm:$0xff]
    %v443 = vld [vmem:[%s4 + $0x90] sm:$0xff]
    %v444 = vld [vmem:[%s4 + $0x98] sm:$0xff]
    %v445 = vld [vmem:[%s4 + $0xa0] sm:$0xff]
    %v446 = vld [vmem:[%s4 + $0xa8] sm:$0xff]
    %v447 = vld [vmem:[%s4 + $0xb0] sm:$0xff]
    %v448 = vld [vmem:[%s4 + $0xb8] sm:$0xff]
    %v449 = vld [vmem:[%s4 + $0xc0] sm:$0xff]
    %v450 = vld [vmem:[%s4 + $0xc8] sm:$0xff]
    %v451 = vld [vmem:[%s4 + $0xd0] sm:$0xff]
    %v452 = vld [vmem:[%s4 + $0xd8] sm:$0xff]
    %v453 = vld [vmem:[%s4 + $0xe0] sm:$0xff]
    %v454 = vld [vmem:[%s4 + $0xe8] sm:$0xff]
    %v455 = vld [vmem:[%s4 + $0xf0] sm:$0xff]
    %v456 = vld [vmem:[%s4 + $0xf8] sm:$0xff]
    %v457 = vld [vmem:[%s4 + $0x100] sm:$0xff]
    %v458 = vld [vmem:[%s4 + $0x108] sm:$0xff]
    %v459 = vld [vmem:[%s4 + $0x110] sm:$0xff]
    %v460 = vld [vmem:[%s4 + $0x118] sm:$0xff]
    %v461 = vld [vmem:[%s4 + $0x120] sm:$0xff]
    %v462 = vld [vmem:[%s4 + $0x128] sm:$0xff]
    %v463 = vld [vmem:[%s4 + $0x130] sm:$0xff]
    %v464 = vld [vmem:[%s4 + $0x138] sm:$0xff]
    %v465 = vld [vmem:[%s4 + $0x140] sm:$0xff]
    %v466 = vld [vmem:[%s4 + $0x148] sm:$0xff]
    %v467 = vld [vmem:[%s4 + $0x150] sm:$0xff]
    %v468 = vld [vmem:[%s4 + $0x158] sm:$0xff]
    %v469 = vld [vmem:[%s4 + $0x160] sm:$0xff]
    %v470 = vld [vmem:[%s4 + $0x168] sm:$0xff]
    %v471 = vld [vmem:[%s4 + $0x170] sm:$0xff]
    %v472 = vld [vmem:[%s4 + $0x178] sm:$0xff]
    %v473 = vld [vmem:[%s4 + $0x180] sm:$0xff]
    %v474 = vld [vmem:[%s4 + $0x188] sm:$0xff]
    %v475 = vld [vmem:[%s4 + $0x190] sm:$0xff]
    %v476 = vld [vmem:[%s4 + $0x198] sm:$0xff]
    %v477 = vld [vmem:[%s4 + $0x1a0] sm:$0xff]
    %v478 = vld [vmem:[%s4 + $0x1a8] sm:$0xff]
    %v479 = vld [vmem:[%s4 + $0x1b0] sm:$0xff]
    %v480 = vld [vmem:[%s4 + $0x1b8] sm:$0xff]
    %v481 = vld [vmem:[%s4 + $0x1c0] sm:$0xff]
    %v482 = vld [vmem:[%s4 + $0x1c8] sm:$0xff]
    %v483 = vld [vmem:[%s4 + $0x1d0] sm:$0xff]
    %v484 = vld [vmem:[%s4 + $0x1d8] sm:$0xff]
    %v485 = vld [vmem:[%s4 + $0x1e0] sm:$0xff]
    %v486 = vld [vmem:[%s4 + $0x1e8] sm:$0xff]
    %v487 = vld [vmem:[%s4 + $0x1f0] sm:$0xff]
    %v488 = vld [vmem:[%s4 + $0x1f8] sm:$0xff]
    %v489 = vld [vmem:[%s6] sm:$0xff]
    %v490 = vld [vmem:[%s6 + $0x8] sm:$0xff]
    %v491 = vld [vmem:[%s6 + $0x10] sm:$0xff]
    %v492 = vld [vmem:[%s6 + $0x18] sm:$0xff]
    %v493 = vld [vmem:[%s6 + $0x20] sm:$0xff]
    %v494 = vld [vmem:[%s6 + $0x28] sm:$0xff]
    %v495 = vld [vmem:[%s6 + $0x30] sm:$0xff]
    %v496 = vld [vmem:[%s6 + $0x38] sm:$0xff]
    %v497 = vld [vmem:[%s6 + $0x40] sm:$0xff]
    %v498 = vld [vmem:[%s6 + $0x48] sm:$0xff]
    %v499 = vld [vmem:[%s6 + $0x50] sm:$0xff]
    %v500 = vld [vmem:[%s6 + $0x58] sm:$0xff]
    %v501 = vld [vmem:[%s6 + $0x60] sm:$0xff]
    %v502 = vld [vmem:[%s6 + $0x68] sm:$0xff]
    %v503 = vld [vmem:[%s6 + $0x70] sm:$0xff]
    %v504 = vld [vmem:[%s6 + $0x78] sm:$0xff]
    %v505 = vld [vmem:[%s6 + $0x80] sm:$0xff]
    %v506 = vld [vmem:[%s6 + $0x88] sm:$0xff]
    %v507 = vld [vmem:[%s6 + $0x90] sm:$0xff]
    %v508 = vld [vmem:[%s6 + $0x98] sm:$0xff]
    %v509 = vld [vmem:[%s6 + $0xa0] sm:$0xff]
    %v510 = vld [vmem:[%s6 + $0xa8] sm:$0xff]
    %v511 = vld [vmem:[%s6 + $0xb0] sm:$0xff]
    %v512 = vld [vmem:[%s6 + $0xb8] sm:$0xff]
    %v513 = vld [vmem:[%s6 + $0xc0] sm:$0xff]
    %v514 = vld [vmem:[%s6 + $0xc8] sm:$0xff]
    %v515 = vld [vmem:[%s6 + $0xd0] sm:$0xff]
    %v516 = vld [vmem:[%s6 + $0xd8] sm:$0xff]
    %v517 = vld [vmem:[%s6 + $0xe0] sm:$0xff]
    %v518 = vld [vmem:[%s6 + $0xe8] sm:$0xff]
    %v519 = vld [vmem:[%s6 + $0xf0] sm:$0xff]
    %v520 = vld [vmem:[%s6 + $0xf8] sm:$0xff]
    %v521 = vld [vmem:[%s6 + $0x100] sm:$0xff]
    %v522 = vld [vmem:[%s6 + $0x108] sm:$0xff]
    %v523 = vld [vmem:[%s6 + $0x110] sm:$0xff]
    %v524 = vld [vmem:[%s6 + $0x118] sm:$0xff]
    %v525 = vld [vmem:[%s6 + $0x120] sm:$0xff]
    %v526 = vld [vmem:[%s6 + $0x128] sm:$0xff]
    %v527 = vld [vmem:[%s6 + $0x130] sm:$0xff]
    %v528 = vld [vmem:[%s6 + $0x138] sm:$0xff]
    %v529 = vld [vmem:[%s6 + $0x140] sm:$0xff]
    %v530 = vld [vmem:[%s6 + $0x148] sm:$0xff]
    %v531 = vld [vmem:[%s6 + $0x150] sm:$0xff]
    %v532 = vld [vmem:[%s6 + $0x158] sm:$0xff]
    %v533 = vld [vmem:[%s6 + $0x160] sm:$0xff]
    %v534 = vld [vmem:[%s6 + $0x168] sm:$0xff]
    %v535 = vld [vmem:[%s6 + $0x170] sm:$0xff]
    %v536 = vld [vmem:[%s6 + $0x178] sm:$0xff]
    %v537 = vld [vmem:[%s6 + $0x180] sm:$0xff]
    %v538 = vld [vmem:[%s6 + $0x188] sm:$0xff]
    %v539 = vld [vmem:[%s6 + $0x190] sm:$0xff]
    %v540 = vld [vmem:[%s6 + $0x198] sm:$0xff]
    %v541 = vld [vmem:[%s6 + $0x1a0] sm:$0xff]
    %v542 = vld [vmem:[%s6 + $0x1a8] sm:$0xff]
    %v543 = vld [vmem:[%s6 + $0x1b0] sm:$0xff]
    %v544 = vld [vmem:[%s6 + $0x1b8] sm:$0xff]
    %v545 = vld [vmem:[%s6 + $0x1c0] sm:$0xff]
    %v546 = vld [vmem:[%s6 + $0x1c8] sm:$0xff]
    %v547 = vld [vmem:[%s6 + $0x1d0] sm:$0xff]
    %v548 = vld [vmem:[%s6 + $0x1d8] sm:$0xff]
    %v549 = vld [vmem:[%s6 + $0x1e0] sm:$0xff]
    %v550 = vld [vmem:[%s6 + $0x1e8] sm:$0xff]
    %v551 = vld [vmem:[%s6 + $0x1f0] sm:$0xff]
    %v552 = vld [vmem:[%s6 + $0x1f8] sm:$0xff]
    %v553 = vld [vmem:[%s5] sm:$0xf]
    %554 = vmatprep.subr.mxu0 %v362
    %555 = vmatpush1.msra.mxu0 %v361
    %556 = vmatprep.subr.mxu0 %v366
    %557 = vmatpush1.msra.mxu0 %v365
    %558 = vmatprep.subr.mxu0 %v370
    %559 = vmatpush1.msra.mxu0 %v369
    %560 = vmatprep.subr.mxu0 %v374
    %561 = vmatpush1.msra.mxu0 %v373
    %562 = vmatprep.subr.mxu0 %v378
    %563 = vmatpush1.msra.mxu0 %v377
    %564 = vmatprep.subr.mxu0 %v382
    %565 = vmatpush1.msra.mxu0 %v381
    %566 = vmatprep.subr.mxu0 %v386
    %567 = vmatpush1.msra.mxu0 %v385
    %568 = vmatprep.subr.mxu0 %v390
    %569 = vmatpush1.msra.mxu0 %v389
    %570 = vmatprep.subr.mxu0 %v394
    %571 = vmatpush1.msra.mxu0 %v393
    %572 = vmatprep.subr.mxu0 %v398
    %573 = vmatpush1.msra.mxu0 %v397
    %574 = vmatprep.subr.mxu0 %v402
    %575 = vmatpush1.msra.mxu0 %v401
    %576 = vmatprep.subr.mxu0 %v406
    %577 = vmatpush1.msra.mxu0 %v405
    %578 = vmatprep.subr.mxu0 %v410
    %579 = vmatpush1.msra.mxu0 %v409
    %580 = vmatprep.subr.mxu0 %v414
    %581 = vmatpush1.msra.mxu0 %v413
    %582 = vmatprep.subr.mxu0 %v418
    %583 = vmatpush1.msra.mxu0 %v417
    %584 = vmatprep.subr.mxu0 %v422
    %585 = vmatpush1.msra.mxu0 %v421
    %586 = vmatprep.subr.mxu0 0.0
    %587 = vmatpush1.msra.mxu0 0.0
    %588 = vmatprep.subr.mxu0 0.0
    %589 = vmatpush1.msra.mxu0 0.0
    %590 = vmatprep.subr.mxu0 0.0
    %591 = vmatpush1.msra.mxu0 0.0
    %592 = vmatprep.subr.mxu0 0.0
    %593 = vmatpush1.msra.mxu0 0.0
    %594 = vmatprep.subr.mxu0 0.0
    %595 = vmatpush1.msra.mxu0 0.0
    %596 = vmatprep.subr.mxu0 0.0
    %597 = vmatpush1.msra.mxu0 0.0
    %598 = vmatprep.subr.mxu0 0.0
    %599 = vmatpush1.msra.mxu0 0.0
    %600 = vmatprep.subr.mxu0 0.0
    %601 = vmatpush1.msra.mxu0 0.0
    %602 = vmatprep.subr.mxu0 0.0
    %603 = vmatpush1.msra.mxu0 0.0
    %604 = vmatprep.subr.mxu0 0.0
    %605 = vmatpush1.msra.mxu0 0.0
    %606 = vmatprep.subr.mxu0 0.0
    %607 = vmatpush1.msra.mxu0 0.0
    %608 = vmatprep.subr.mxu0 0.0
    %609 = vmatpush1.msra.mxu0 0.0
    %610 = vmatprep.subr.mxu0 0.0
    %611 = vmatpush1.msra.mxu0 0.0
    %612 = vmatprep.subr.mxu0 0.0
    %613 = vmatpush1.msra.mxu0 0.0
    %614 = vmatprep.subr.mxu0 0.0
    %615 = vmatpush1.msra.mxu0 0.0
    %616 = vmatprep.subr.mxu0 0.0
    %617 = vmatpush1.msra.mxu0 0.0
    %618 = vmatprep.mubr.f32.mxu0 0.0
    %619 = vmatmul.mubr.f32.gmra.mrb[0].mxu0 0.0
    %v620 = vpop.f32.mrb[0].mxu0
    %v621 = vadd.f32 0.0, %v620
    %v622 = vpop.f32.mrb[0].mxu0
    %v623 = vadd.f32 0.0, %v622
    %624 = vdwg.mxu0
    %625 = vmatprep.subr.mxu0 %v364
    %626 = vmatpush1.msra.mxu0 %v363
    %627 = vmatprep.subr.mxu0 %v368
    %628 = vmatpush1.msra.mxu0 %v367
    %629 = vmatprep.subr.mxu0 %v372
    %630 = vmatpush1.msra.mxu0 %v371
    %631 = vmatprep.subr.mxu0 %v376
    %632 = vmatpush1.msra.mxu0 %v375
    %633 = vmatprep.subr.mxu0 %v380
    %634 = vmatpush1.msra.mxu0 %v379
    %635 = vmatprep.subr.mxu0 %v384
    %636 = vmatpush1.msra.mxu0 %v383
    %637 = vmatprep.subr.mxu0 %v388
    %638 = vmatpush1.msra.mxu0 %v387
    %639 = vmatprep.subr.mxu0 %v392
    %640 = vmatpush1.msra.mxu0 %v391
    %641 = vmatprep.subr.mxu0 %v396
    %642 = vmatpush1.msra.mxu0 %v395
    %643 = vmatprep.subr.mxu0 %v400
    %644 = vmatpush1.msra.mxu0 %v399
    %645 = vmatprep.subr.mxu0 %v404
    %646 = vmatpush1.msra.mxu0 %v403
    %647 = vmatprep.subr.mxu0 %v408
    %648 = vmatpush1.msra.mxu0 %v407
    %649 = vmatprep.subr.mxu0 %v412
    %650 = vmatpush1.msra.mxu0 %v411
    %651 = vmatprep.subr.mxu0 %v416
    %652 = vmatpush1.msra.mxu0 %v415
    %653 = vmatprep.subr.mxu0 %v420
    %654 = vmatpush1.msra.mxu0 %v419
    %655 = vmatprep.subr.mxu0 %v424
    %656 = vmatpush1.msra.mxu0 %v423
    %657 = vmatprep.subr.mxu0 0.0
    %658 = vmatpush1.msra.mxu0 0.0
    %659 = vmatprep.subr.mxu0 0.0
    %660 = vmatpush1.msra.mxu0 0.0
    %661 = vmatprep.subr.mxu0 0.0
    %662 = vmatpush1.msra.mxu0 0.0
    %663 = vmatprep.subr.mxu0 0.0
    %664 = vmatpush1.msra.mxu0 0.0
    %665 = vmatprep.subr.mxu0 0.0
    %666 = vmatpush1.msra.mxu0 0.0
    %667 = vmatprep.subr.mxu0 0.0
    %668 = vmatpush1.msra.mxu0 0.0
    %669 = vmatprep.subr.mxu0 0.0
    %670 = vmatpush1.msra.mxu0 0.0
    %671 = vmatprep.subr.mxu0 0.0
    %672 = vmatpush1.msra.mxu0 0.0
    %673 = vmatprep.subr.mxu0 0.0
    %674 = vmatpush1.msra.mxu0 0.0
    %675 = vmatprep.subr.mxu0 0.0
    %676 = vmatpush1.msra.mxu0 0.0
    %677 = vmatprep.subr.mxu0 0.0
    %678 = vmatpush1.msra.mxu0 0.0
    %679 = vmatprep.subr.mxu0 0.0
    %680 = vmatpush1.msra.mxu0 0.0
    %681 = vmatprep.subr.mxu0 0.0
    %682 = vmatpush1.msra.mxu0 0.0
    %683 = vmatprep.subr.mxu0 0.0
    %684 = vmatpush1.msra.mxu0 0.0
    %685 = vmatprep.subr.mxu0 0.0
    %686 = vmatpush1.msra.mxu0 0.0
    %687 = vmatprep.subr.mxu0 0.0
    %688 = vmatpush1.msra.mxu0 0.0
    %689 = vmatprep.mubr.f32.mxu0 0.0
    %690 = vmatmul.mubr.f32.gmra.mrb[0].mxu0 0.0
    %v691 = vpop.f32.mrb[0].mxu0
    %v692 = vadd.f32 0.0, %v691
    %v693 = vpop.f32.mrb[0].mxu0
    %v694 = vadd.f32 0.0, %v693
    %695 = vdwg.mxu0
    %v696 = vadd.f32 %v202, %v621
    %v697 = vadd.f32 %v204, %v623
    %v698 = vadd.f32 %v315, %v692
    %v699 = vadd.f32 %v317, %v694
    %v700 = vxor.u32 %v696, 2147483648
    %v701 = vmul.f32 %v700, 1.442695
    %v702 = vpow.pop %v701
    %v703 = vadd.f32 %v702, 1.0
    %v704 = vrcp.pop %v703
    %v705 = vmul.f32 1.0, %v704
    %v706 = vxor.u32 %v697, 2147483648
    %v707 = vmul.f32 %v706, 1.442695
    %v708 = vpow.pop %v707
    %v709 = vadd.f32 %v708, 1.0
    %v710 = vrcp.pop %v709
    %v711 = vmul.f32 1.0, %v710
    %v712 = vtanh.pop %v698
    %v713 = vxor.u32 %v699, 2147483648
    %v714 = vmul.f32 %v713, 1.442695
    %v715 = vpow.pop %v714
    %v716 = vadd.f32 %v715, 1.0
    %v717 = vrcp.pop %v716
    %v718 = vmul.f32 1.0, %v717
    %v719 = vmul.f32 %v711, 0.0
    %v720 = vmul.f32 %v705, %v712
    %v721 = vadd.f32 %v719, %v720
    %v722 = vtanh.pop %v721
    %v723 = vmul.f32 %v718, %v722
    %724 = vmatprep.subr.mxu0 %v490
    %725 = vmatpush1.msra.mxu0 %v489
    %726 = vmatprep.subr.mxu0 %v494
    %727 = vmatpush1.msra.mxu0 %v493
    %728 = vmatprep.subr.mxu0 %v498
    %729 = vmatpush1.msra.mxu0 %v497
    %730 = vmatprep.subr.mxu0 %v502
    %731 = vmatpush1.msra.mxu0 %v501
    %732 = vmatprep.subr.mxu0 %v506
    %733 = vmatpush1.msra.mxu0 %v505
    %734 = vmatprep.subr.mxu0 %v510
    %735 = vmatpush1.msra.mxu0 %v509
    %736 = vmatprep.subr.mxu0 %v514
    %737 = vmatpush1.msra.mxu0 %v513
    %738 = vmatprep.subr.mxu0 %v518
    %739 = vmatpush1.msra.mxu0 %v517
    %740 = vmatprep.subr.mxu0 %v522
    %741 = vmatpush1.msra.mxu0 %v521
    %742 = vmatprep.subr.mxu0 %v526
    %743 = vmatpush1.msra.mxu0 %v525
    %744 = vmatprep.subr.mxu0 %v530
    %745 = vmatpush1.msra.mxu0 %v529
    %746 = vmatprep.subr.mxu0 %v534
    %747 = vmatpush1.msra.mxu0 %v533
    %748 = vmatprep.subr.mxu0 %v538
    %749 = vmatpush1.msra.mxu0 %v537
    %750 = vmatprep.subr.mxu0 %v542
    %751 = vmatpush1.msra.mxu0 %v541
    %752 = vmatprep.subr.mxu0 %v546
    %753 = vmatpush1.msra.mxu0 %v545
    %754 = vmatprep.subr.mxu0 %v550
    %755 = vmatpush1.msra.mxu0 %v549
    %756 = vmatprep.subr.mxu0 0.0
    %757 = vmatpush1.msra.mxu0 0.0
    %758 = vmatprep.subr.mxu0 0.0
    %759 = vmatpush1.msra.mxu0 0.0
    %760 = vmatprep.subr.mxu0 0.0
    %761 = vmatpush1.msra.mxu0 0.0
    %762 = vmatprep.subr.mxu0 0.0
    %763 = vmatpush1.msra.mxu0 0.0
    %764 = vmatprep.subr.mxu0 0.0
    %765 = vmatpush1.msra.mxu0 0.0
    %766 = vmatprep.subr.mxu0 0.0
    %767 = vmatpush1.msra.mxu0 0.0
    %768 = vmatprep.subr.mxu0 0.0
    %769 = vmatpush1.msra.mxu0 0.0
    %770 = vmatprep.subr.mxu0 0.0
    %771 = vmatpush1.msra.mxu0 0.0
    %772 = vmatprep.subr.mxu0 0.0
    %773 = vmatpush1.msra.mxu0 0.0
    %774 = vmatprep.subr.mxu0 0.0
    %775 = vmatpush1.msra.mxu0 0.0
    %776 = vmatprep.subr.mxu0 0.0
    %777 = vmatpush1.msra.mxu0 0.0
    %778 = vmatprep.subr.mxu0 0.0
    %779 = vmatpush1.msra.mxu0 0.0
    %780 = vmatprep.subr.mxu0 0.0
    %781 = vmatpush1.msra.mxu0 0.0
    %782 = vmatprep.subr.mxu0 0.0
    %783 = vmatpush1.msra.mxu0 0.0
    %784 = vmatprep.subr.mxu0 0.0
    %785 = vmatpush1.msra.mxu0 0.0
    %786 = vmatprep.subr.mxu0 0.0
    %787 = vmatpush1.msra.mxu0 0.0
    %788 = vmatprep.mubr.f32.mxu0 0.0
    %789 = vmatmul.mubr.f32.gmra.mrb[0].mxu0 0.0
    %v790 = vpop.f32.mrb[0].mxu0
    %v791 = vadd.f32 0.0, %v790
    %v792 = vpop.f32.mrb[0].mxu0
    %v793 = vadd.f32 0.0, %v792
    %794 = vdwg.mxu0
    %795 = vmatprep.subr.mxu0 %v492
    %796 = vmatpush1.msra.mxu0 %v491
    %797 = vmatprep.subr.mxu0 %v496
    %798 = vmatpush1.msra.mxu0 %v495
    %799 = vmatprep.subr.mxu0 %v500
    %800 = vmatpush1.msra.mxu0 %v499
    %801 = vmatprep.subr.mxu0 %v504
    %802 = vmatpush1.msra.mxu0 %v503
    %803 = vmatprep.subr.mxu0 %v508
    %804 = vmatpush1.msra.mxu0 %v507
    %805 = vmatprep.subr.mxu0 %v512
    %806 = vmatpush1.msra.mxu0 %v511
    %807 = vmatprep.subr.mxu0 %v516
    %808 = vmatpush1.msra.mxu0 %v515
    %809 = vmatprep.subr.mxu0 %v520
    %810 = vmatpush1.msra.mxu0 %v519
    %811 = vmatprep.subr.mxu0 %v524
    %812 = vmatpush1.msra.mxu0 %v523
    %813 = vmatprep.subr.mxu0 %v528
    %814 = vmatpush1.msra.mxu0 %v527
    %815 = vmatprep.subr.mxu0 %v532
    %816 = vmatpush1.msra.mxu0 %v531
    %817 = vmatprep.subr.mxu0 %v536
    %818 = vmatpush1.msra.mxu0 %v535
    %819 = vmatprep.subr.mxu0 %v540
    %820 = vmatpush1.msra.mxu0 %v539
    %821 = vmatprep.subr.mxu0 %v544
    %822 = vmatpush1.msra.mxu0 %v543
    %823 = vmatprep.subr.mxu0 %v548
    %824 = vmatpush1.msra.mxu0 %v547
    %825 = vmatprep.subr.mxu0 %v552
    %826 = vmatpush1.msra.mxu0 %v551
    %827 = vmatprep.subr.mxu0 0.0
    %828 = vmatpush1.msra.mxu0 0.0
    %829 = vmatprep.subr.mxu0 0.0
    %830 = vmatpush1.msra.mxu0 0.0
    %831 = vmatprep.subr.mxu0 0.0
    %832 = vmatpush1.msra.mxu0 0.0
    %833 = vmatprep.subr.mxu0 0.0
    %834 = vmatpush1.msra.mxu0 0.0
    %835 = vmatprep.subr.mxu0 0.0
    %836 = vmatpush1.msra.mxu0 0.0
    %837 = vmatprep.subr.mxu0 0.0
    %838 = vmatpush1.msra.mxu0 0.0
    %839 = vmatprep.subr.mxu0 0.0
    %840 = vmatpush1.msra.mxu0 0.0
    %841 = vmatprep.subr.mxu0 0.0
    %842 = vmatpush1.msra.mxu0 0.0
    %843 = vmatprep.subr.mxu0 0.0
    %844 = vmatpush1.msra.mxu0 0.0
    %845 = vmatprep.subr.mxu0 0.0
    %846 = vmatpush1.msra.mxu0 0.0
    %847 = vmatprep.subr.mxu0 0.0
    %848 = vmatpush1.msra.mxu0 0.0
    %849 = vmatprep.subr.mxu0 0.0
    %850 = vmatpush1.msra.mxu0 0.0
    %851 = vmatprep.subr.mxu0 0.0
    %852 = vmatpush1.msra.mxu0 0.0
    %853 = vmatprep.subr.mxu0 0.0
    %854 = vmatpush1.msra.mxu0 0.0
    %855 = vmatprep.subr.mxu0 0.0
    %856 = vmatpush1.msra.mxu0 0.0
    %857 = vmatprep.subr.mxu0 0.0
    %858 = vmatpush1.msra.mxu0 0.0
    %859 = vmatprep.mubr.f32.mxu0 0.0
    %860 = vmatmul.mubr.f32.gmra.mrb[0].mxu0 0.0
    %v861 = vpop.f32.mrb[0].mxu0
    %v862 = vadd.f32 0.0, %v861
    %v863 = vpop.f32.mrb[0].mxu0
    %v864 = vadd.f32 0.0, %v863
    %865 = vdwg.mxu0
    %866 = vmatprep.subr.mxu0 %v426
    %867 = vmatpush1.msra.mxu0 %v425
    %868 = vmatprep.subr.mxu0 %v430
    %869 = vmatpush1.msra.mxu0 %v429
    %870 = vmatprep.subr.mxu0 %v434
    %871 = vmatpush1.msra.mxu0 %v433
    %872 = vmatprep.subr.mxu0 %v438
    %873 = vmatpush1.msra.mxu0 %v437
    %874 = vmatprep.subr.mxu0 %v442
    %875 = vmatpush1.msra.mxu0 %v441
    %876 = vmatprep.subr.mxu0 %v446
    %877 = vmatpush1.msra.mxu0 %v445
    %878 = vmatprep.subr.mxu0 %v450
    %879 = vmatpush1.msra.mxu0 %v449
    %880 = vmatprep.subr.mxu0 %v454
    %881 = vmatpush1.msra.mxu0 %v453
    %882 = vmatprep.subr.mxu0 %v458
    %883 = vmatpush1.msra.mxu0 %v457
    %884 = vmatprep.subr.mxu0 %v462
    %885 = vmatpush1.msra.mxu0 %v461
    %886 = vmatprep.subr.mxu0 %v466
    %887 = vmatpush1.msra.mxu0 %v465
    %888 = vmatprep.subr.mxu0 %v470
    %889 = vmatpush1.msra.mxu0 %v469
    %890 = vmatprep.subr.mxu0 %v474
    %891 = vmatpush1.msra.mxu0 %v473
    %892 = vmatprep.subr.mxu0 %v478
    %893 = vmatpush1.msra.mxu0 %v477
    %894 = vmatprep.subr.mxu0 %v482
    %895 = vmatpush1.msra.mxu0 %v481
    %896 = vmatprep.subr.mxu0 %v486
    %897 = vmatpush1.msra.mxu0 %v485
    %898 = vmatprep.subr.mxu0 0.0
    %899 = vmatpush1.msra.mxu0 0.0
    %900 = vmatprep.subr.mxu0 0.0
    %901 = vmatpush1.msra.mxu0 0.0
    %902 = vmatprep.subr.mxu0 0.0
    %903 = vmatpush1.msra.mxu0 0.0
    %904 = vmatprep.subr.mxu0 0.0
    %905 = vmatpush1.msra.mxu0 0.0
    %906 = vmatprep.subr.mxu0 0.0
    %907 = vmatpush1.msra.mxu0 0.0
    %908 = vmatprep.subr.mxu0 0.0
    %909 = vmatpush1.msra.mxu0 0.0
    %910 = vmatprep.subr.mxu0 0.0
    %911 = vmatpush1.msra.mxu0 0.0
    %912 = vmatprep.subr.mxu0 0.0
    %913 = vmatpush1.msra.mxu0 0.0
    %914 = vmatprep.subr.mxu0 0.0
    %915 = vmatpush1.msra.mxu0 0.0
    %916 = vmatprep.subr.mxu0 0.0
    %917 = vmatpush1.msra.mxu0 0.0
    %918 = vmatprep.subr.mxu0 0.0
    %919 = vmatpush1.msra.mxu0 0.0
    %920 = vmatprep.subr.mxu0 0.0
    %921 = vmatpush1.msra.mxu0 0.0
    %922 = vmatprep.subr.mxu0 0.0
    %923 = vmatpush1.msra.mxu0 0.0
    %924 = vmatprep.subr.mxu0 0.0
    %925 = vmatpush1.msra.mxu0 0.0
    %926 = vmatprep.subr.mxu0 0.0
    %927 = vmatpush1.msra.mxu0 0.0
    %928 = vmatprep.subr.mxu0 0.0
    %929 = vmatpush1.msra.mxu0 0.0
    %930 = vmatprep.mubr.f32.mxu0 0.0
    %931 = vmatmul.mubr.f32.gmra.mrb[0].mxu0 %v723
    %v932 = vpop.f32.mrb[0].mxu0
    %v933 = vadd.f32 %v791, %v932
    %v934 = vpop.f32.mrb[0].mxu0
    %v935 = vadd.f32 %v793, %v934
    %936 = vdwg.mxu0
    %937 = vmatprep.subr.mxu0 %v428
    %938 = vmatpush1.msra.mxu0 %v427
    %939 = vmatprep.subr.mxu0 %v432
    %940 = vmatpush1.msra.mxu0 %v431
    %941 = vmatprep.subr.mxu0 %v436
    %942 = vmatpush1.msra.mxu0 %v435
    %943 = vmatprep.subr.mxu0 %v440
    %944 = vmatpush1.msra.mxu0 %v439
    %945 = vmatprep.subr.mxu0 %v444
    %946 = vmatpush1.msra.mxu0 %v443
    %947 = vmatprep.subr.mxu0 %v448
    %948 = vmatpush1.msra.mxu0 %v447
    %949 = vmatprep.subr.mxu0 %v452
    %950 = vmatpush1.msra.mxu0 %v451
    %951 = vmatprep.subr.mxu0 %v456
    %952 = vmatpush1.msra.mxu0 %v455
    %953 = vmatprep.subr.mxu0 %v460
    %954 = vmatpush1.msra.mxu0 %v459
    %955 = vmatprep.subr.mxu0 %v464
    %956 = vmatpush1.msra.mxu0 %v463
    %957 = vmatprep.subr.mxu0 %v468
    %958 = vmatpush1.msra.mxu0 %v467
    %959 = vmatprep.subr.mxu0 %v472
    %960 = vmatpush1.msra.mxu0 %v471
    %961 = vmatprep.subr.mxu0 %v476
    %962 = vmatpush1.msra.mxu0 %v475
    %963 = vmatprep.subr.mxu0 %v480
    %964 = vmatpush1.msra.mxu0 %v479
    %965 = vmatprep.subr.mxu0 %v484
    %966 = vmatpush1.msra.mxu0 %v483
    %967 = vmatprep.subr.mxu0 %v488
    %968 = vmatpush1.msra.mxu0 %v487
    %969 = vmatprep.subr.mxu0 0.0
    %970 = vmatpush1.msra.mxu0 0.0
    %971 = vmatprep.subr.mxu0 0.0
    %972 = vmatpush1.msra.mxu0 0.0
    %973 = vmatprep.subr.mxu0 0.0
    %974 = vmatpush1.msra.mxu0 0.0
    %975 = vmatprep.subr.mxu0 0.0
    %976 = vmatpush1.msra.mxu0 0.0
    %977 = vmatprep.subr.mxu0 0.0
    %978 = vmatpush1.msra.mxu0 0.0
    %979 = vmatprep.subr.mxu0 0.0
    %980 = vmatpush1.msra.mxu0 0.0
    %981 = vmatprep.subr.mxu0 0.0
    %982 = vmatpush1.msra.mxu0 0.0
    %983 = vmatprep.subr.mxu0 0.0
    %984 = vmatpush1.msra.mxu0 0.0
    %985 = vmatprep.subr.mxu0 0.0
    %986 = vmatpush1.msra.mxu0 0.0
    %987 = vmatprep.subr.mxu0 0.0
    %988 = vmatpush1.msra.mxu0 0.0
    %989 = vmatprep.subr.mxu0 0.0
    %990 = vmatpush1.msra.mxu0 0.0
    %991 = vmatprep.subr.mxu0 0.0
    %992 = vmatpush1.msra.mxu0 0.0
    %993 = vmatprep.subr.mxu0 0.0
    %994 = vmatpush1.msra.mxu0 0.0
    %995 = vmatprep.subr.mxu0 0.0
    %996 = vmatpush1.msra.mxu0 0.0
    %997 = vmatprep.subr.mxu0 0.0
    %998 = vmatpush1.msra.mxu0 0.0
    %999 = vmatprep.subr.mxu0 0.0
    %1000 = vmatpush1.msra.mxu0 0.0
    %1001 = vmatprep.mubr.f32.mxu0 0.0
    %1002 = vmatmul.mubr.f32.gmra.mrb[0].mxu0 %v723
    %v1003 = vpop.f32.mrb[0].mxu0
    %v1004 = vadd.f32 %v862, %v1003
    %v1005 = vpop.f32.mrb[0].mxu0
    %v1006 = vadd.f32 %v864, %v1005
    %1007 = vdwg.mxu0
    %v1009 = vlaneseq
    %v1010 = vshrl.u32 %v1009, 7
    %v1011 = vsub.s32 0, %v1010
    %v1012 = vrot.slane %v553, %v1011
    %v1013 = vlaneseq
    %v1014 = vshrl.u32 %v1013, 7
    %v1015 = vsub.s32 1, %v1014
    %v1016 = vrot.slane %v553, %v1015
    %v1017 = vlaneseq
    %v1018 = vshrl.u32 %v1017, 7
    %v1019 = vsub.s32 2, %v1018
    %v1020 = vrot.slane %v553, %v1019
    %v1021 = vlaneseq
    %v1022 = vshrl.u32 %v1021, 7
    %v1023 = vsub.s32 3, %v1022
    %v1024 = vrot.slane %v553, %v1023
    %v1029 = vadd.f32 %v933, %v1012
    %v1030 = vadd.f32 %v935, %v1016
    %v1031 = vadd.f32 %v1004, %v1020
    %v1032 = vadd.f32 %v1006, %v1024
    %v1033 = vxor.u32 %v1029, 2147483648
    %v1034 = vmul.f32 %v1033, 1.442695
    %v1035 = vpow.pop %v1034
    %v1036 = vadd.f32 %v1035, 1.0
    %v1037 = vrcp.pop %v1036
    %v1038 = vmul.f32 1.0, %v1037
    %v1039 = vxor.u32 %v1030, 2147483648
    %v1040 = vmul.f32 %v1039, 1.442695
    %v1041 = vpow.pop %v1040
    %v1042 = vadd.f32 %v1041, 1.0
    %v1043 = vrcp.pop %v1042
    %v1044 = vmul.f32 1.0, %v1043
    %v1045 = vtanh.pop %v1031
    %v1046 = vxor.u32 %v1032, 2147483648
    %v1047 = vmul.f32 %v1046, 1.442695
    %v1048 = vpow.pop %v1047
    %v1049 = vadd.f32 %v1048, 1.0
    %v1050 = vrcp.pop %v1049
    %v1051 = vmul.f32 1.0, %v1050
    %v1052 = vmul.f32 %v1044, 0.0
    %v1053 = vmul.f32 %v1038, %v1045
    %v1054 = vadd.f32 %v1052, %v1053
    %v1055 = vtanh.pop %v1054
    %v1056 = vmul.f32 %v1051, %v1055
    %1057 = vmatprep.subr.mxu0 %v362
    %1058 = vmatpush1.msra.mxu0 %v361
    %1059 = vmatprep.subr.mxu0 %v366
    %1060 = vmatpush1.msra.mxu0 %v365
    %1061 = vmatprep.subr.mxu0 %v370
    %1062 = vmatpush1.msra.mxu0 %v369
    %1063 = vmatprep.subr.mxu0 %v374
    %1064 = vmatpush1.msra.mxu0 %v373
    %1065 = vmatprep.subr.mxu0 %v378
    %1066 = vmatpush1.msra.mxu0 %v377
    %1067 = vmatprep.subr.mxu0 %v382
    %1068 = vmatpush1.msra.mxu0 %v381
    %1069 = vmatprep.subr.mxu0 %v386
    %1070 = vmatpush1.msra.mxu0 %v385
    %1071 = vmatprep.subr.mxu0 %v390
    %1072 = vmatpush1.msra.mxu0 %v389
    %1073 = vmatprep.subr.mxu0 %v394
    %1074 = vmatpush1.msra.mxu0 %v393
    %1075 = vmatprep.subr.mxu0 %v398
    %1076 = vmatpush1.msra.mxu0 %v397
    %1077 = vmatprep.subr.mxu0 %v402
    %1078 = vmatpush1.msra.mxu0 %v401
    %1079 = vmatprep.subr.mxu0 %v406
    %1080 = vmatpush1.msra.mxu0 %v405
    %1081 = vmatprep.subr.mxu0 %v410
    %1082 = vmatpush1.msra.mxu0 %v409
    %1083 = vmatprep.subr.mxu0 %v414
    %1084 = vmatpush1.msra.mxu0 %v413
    %1085 = vmatprep.subr.mxu0 %v418
    %1086 = vmatpush1.msra.mxu0 %v417
    %1087 = vmatprep.subr.mxu0 %v422
    %1088 = vmatpush1.msra.mxu0 %v421
    %1089 = vmatprep.subr.mxu0 0.0
    %1090 = vmatpush1.msra.mxu0 0.0
    %1091 = vmatprep.subr.mxu0 0.0
    %1092 = vmatpush1.msra.mxu0 0.0
    %1093 = vmatprep.subr.mxu0 0.0
    %1094 = vmatpush1.msra.mxu0 0.0
    %1095 = vmatprep.subr.mxu0 0.0
    %1096 = vmatpush1.msra.mxu0 0.0
    %1097 = vmatprep.subr.mxu0 0.0
    %1098 = vmatpush1.msra.mxu0 0.0
    %1099 = vmatprep.subr.mxu0 0.0
    %1100 = vmatpush1.msra.mxu0 0.0
    %1101 = vmatprep.subr.mxu0 0.0
    %1102 = vmatpush1.msra.mxu0 0.0
    %1103 = vmatprep.subr.mxu0 0.0
    %1104 = vmatpush1.msra.mxu0 0.0
    %1105 = vmatprep.subr.mxu0 0.0
    %1106 = vmatpush1.msra.mxu0 0.0
    %1107 = vmatprep.subr.mxu0 0.0
    %1108 = vmatpush1.msra.mxu0 0.0
    %1109 = vmatprep.subr.mxu0 0.0
    %1110 = vmatpush1.msra.mxu0 0.0
    %1111 = vmatprep.subr.mxu0 0.0
    %1112 = vmatpush1.msra.mxu0 0.0
    %1113 = vmatprep.subr.mxu0 0.0
    %1114 = vmatpush1.msra.mxu0 0.0
    %1115 = vmatprep.subr.mxu0 0.0
    %1116 = vmatpush1.msra.mxu0 0.0
    %1117 = vmatprep.subr.mxu0 0.0
    %1118 = vmatpush1.msra.mxu0 0.0
    %1119 = vmatprep.subr.mxu0 0.0
    %1120 = vmatpush1.msra.mxu0 0.0
    %1121 = vmatprep.mubr.f32.mxu0 0.0
    %1122 = vmatmul.mubr.f32.gmra.mrb[0].mxu0 %v723
    %v1123 = vpop.f32.mrb[0].mxu0
    %v1124 = vadd.f32 0.0, %v1123
    %v1125 = vpop.f32.mrb[0].mxu0
    %v1126 = vadd.f32 0.0, %v1125
    %1127 = vdwg.mxu0
    %1128 = vmatprep.subr.mxu0 %v364
    %1129 = vmatpush1.msra.mxu0 %v363
    %1130 = vmatprep.subr.mxu0 %v368
    %1131 = vmatpush1.msra.mxu0 %v367
    %1132 = vmatprep.subr.mxu0 %v372
    %1133 = vmatpush1.msra.mxu0 %v371
    %1134 = vmatprep.subr.mxu0 %v376
    %1135 = vmatpush1.msra.mxu0 %v375
    %1136 = vmatprep.subr.mxu0 %v380
    %1137 = vmatpush1.msra.mxu0 %v379
    %1138 = vmatprep.subr.mxu0 %v384
    %1139 = vmatpush1.msra.mxu0 %v383
    %1140 = vmatprep.subr.mxu0 %v388
    %1141 = vmatpush1.msra.mxu0 %v387
    %1142 = vmatprep.subr.mxu0 %v392
    %1143 = vmatpush1.msra.mxu0 %v391
    %1144 = vmatprep.subr.mxu0 %v396
    %1145 = vmatpush1.msra.mxu0 %v395
    %1146 = vmatprep.subr.mxu0 %v400
    %1147 = vmatpush1.msra.mxu0 %v399
    %1148 = vmatprep.subr.mxu0 %v404
    %1149 = vmatpush1.msra.mxu0 %v403
    %1150 = vmatprep.subr.mxu0 %v408
    %1151 = vmatpush1.msra.mxu0 %v407
    %1152 = vmatprep.subr.mxu0 %v412
    %1153 = vmatpush1.msra.mxu0 %v411
    %1154 = vmatprep.subr.mxu0 %v416
    %1155 = vmatpush1.msra.mxu0 %v415
    %1156 = vmatprep.subr.mxu0 %v420
    %1157 = vmatpush1.msra.mxu0 %v419
    %1158 = vmatprep.subr.mxu0 %v424
    %1159 = vmatpush1.msra.mxu0 %v423
    %1160 = vmatprep.subr.mxu0 0.0
    %1161 = vmatpush1.msra.mxu0 0.0
    %1162 = vmatprep.subr.mxu0 0.0
    %1163 = vmatpush1.msra.mxu0 0.0
    %1164 = vmatprep.subr.mxu0 0.0
    %1165 = vmatpush1.msra.mxu0 0.0
    %1166 = vmatprep.subr.mxu0 0.0
    %1167 = vmatpush1.msra.mxu0 0.0
    %1168 = vmatprep.subr.mxu0 0.0
    %1169 = vmatpush1.msra.mxu0 0.0
    %1170 = vmatprep.subr.mxu0 0.0
    %1171 = vmatpush1.msra.mxu0 0.0
    %1172 = vmatprep.subr.mxu0 0.0
    %1173 = vmatpush1.msra.mxu0 0.0
    %1174 = vmatprep.subr.mxu0 0.0
    %1175 = vmatpush1.msra.mxu0 0.0
    %1176 = vmatprep.subr.mxu0 0.0
    %1177 = vmatpush1.msra.mxu0 0.0
    %1178 = vmatprep.subr.mxu0 0.0
    %1179 = vmatpush1.msra.mxu0 0.0
    %1180 = vmatprep.subr.mxu0 0.0
    %1181 = vmatpush1.msra.mxu0 0.0
    %1182 = vmatprep.subr.mxu0 0.0
    %1183 = vmatpush1.msra.mxu0 0.0
    %1184 = vmatprep.subr.mxu0 0.0
    %1185 = vmatpush1.msra.mxu0 0.0
    %1186 = vmatprep.subr.mxu0 0.0
    %1187 = vmatpush1.msra.mxu0 0.0
    %1188 = vmatprep.subr.mxu0 0.0
    %1189 = vmatpush1.msra.mxu0 0.0
    %1190 = vmatprep.subr.mxu0 0.0
    %1191 = vmatpush1.msra.mxu0 0.0
    %1192 = vmatprep.mubr.f32.mxu0 0.0
    %1193 = vmatmul.mubr.f32.gmra.mrb[0].mxu0 %v723
    %v1194 = vpop.f32.mrb[0].mxu0
    %v1195 = vadd.f32 0.0, %v1194
    %v1196 = vpop.f32.mrb[0].mxu0
    %v1197 = vadd.f32 0.0, %v1196
    %1198 = vdwg.mxu0
    %v1199 = vadd.f32 %v208, %v1124
    %v1200 = vadd.f32 %v210, %v1126
    %v1201 = vadd.f32 %v321, %v1195
    %v1202 = vadd.f32 %v323, %v1197
    %v1203 = vxor.u32 %v1199, 2147483648
    %v1204 = vmul.f32 %v1203, 1.442695
    %v1205 = vpow.pop %v1204
    %v1206 = vadd.f32 %v1205, 1.0
    %v1207 = vrcp.pop %v1206
    %v1208 = vmul.f32 1.0, %v1207
    %v1209 = vxor.u32 %v1200, 2147483648
    %v1210 = vmul.f32 %v1209, 1.442695
    %v1211 = vpow.pop %v1210
    %v1212 = vadd.f32 %v1211, 1.0
    %v1213 = vrcp.pop %v1212
    %v1214 = vmul.f32 1.0, %v1213
    %v1215 = vtanh.pop %v1201
    %v1216 = vxor.u32 %v1202, 2147483648
    %v1217 = vmul.f32 %v1216, 1.442695
    %v1218 = vpow.pop %v1217
    %v1219 = vadd.f32 %v1218, 1.0
    %v1220 = vrcp.pop %v1219
    %v1221 = vmul.f32 1.0, %v1220
    %v1222 = vmul.f32 %v1214, %v721
    %v1223 = vmul.f32 %v1208, %v1215
    %v1224 = vadd.f32 %v1222, %v1223
    %v1225 = vtanh.pop %v1224
    %v1226 = vmul.f32 %v1221, %v1225
    %1227 = vmatprep.subr.mxu0 %v490
    %1228 = vmatpush1.msra.mxu0 %v489
    %1229 = vmatprep.subr.mxu0 %v494
    %1230 = vmatpush1.msra.mxu0 %v493
    %1231 = vmatprep.subr.mxu0 %v498
    %1232 = vmatpush1.msra.mxu0 %v497
    %1233 = vmatprep.subr.mxu0 %v502
    %1234 = vmatpush1.msra.mxu0 %v501
    %1235 = vmatprep.subr.mxu0 %v506
    %1236 = vmatpush1.msra.mxu0 %v505
    %1237 = vmatprep.subr.mxu0 %v510
    %1238 = vmatpush1.msra.mxu0 %v509
    %1239 = vmatprep.subr.mxu0 %v514
    %1240 = vmatpush1.msra.mxu0 %v513
    %1241 = vmatprep.subr.mxu0 %v518
    %1242 = vmatpush1.msra.mxu0 %v517
    %1243 = vmatprep.subr.mxu0 %v522
    %1244 = vmatpush1.msra.mxu0 %v521
    %1245 = vmatprep.subr.mxu0 %v526
    %1246 = vmatpush1.msra.mxu0 %v525
    %1247 = vmatprep.subr.mxu0 %v530
    %1248 = vmatpush1.msra.mxu0 %v529
    %1249 = vmatprep.subr.mxu0 %v534
    %1250 = vmatpush1.msra.mxu0 %v533
    %1251 = vmatprep.subr.mxu0 %v538
    %1252 = vmatpush1.msra.mxu0 %v537
    %1253 = vmatprep.subr.mxu0 %v542
    %1254 = vmatpush1.msra.mxu0 %v541
    %1255 = vmatprep.subr.mxu0 %v546
    %1256 = vmatpush1.msra.mxu0 %v545
    %1257 = vmatprep.subr.mxu0 %v550
    %1258 = vmatpush1.msra.mxu0 %v549
    %1259 = vmatprep.subr.mxu0 0.0
    %1260 = vmatpush1.msra.mxu0 0.0
    %1261 = vmatprep.subr.mxu0 0.0
    %1262 = vmatpush1.msra.mxu0 0.0
    %1263 = vmatprep.subr.mxu0 0.0
    %1264 = vmatpush1.msra.mxu0 0.0
    %1265 = vmatprep.subr.mxu0 0.0
    %1266 = vmatpush1.msra.mxu0 0.0
    %1267 = vmatprep.subr.mxu0 0.0
    %1268 = vmatpush1.msra.mxu0 0.0
    %1269 = vmatprep.subr.mxu0 0.0
    %1270 = vmatpush1.msra.mxu0 0.0
    %1271 = vmatprep.subr.mxu0 0.0
    %1272 = vmatpush1.msra.mxu0 0.0
    %1273 = vmatprep.subr.mxu0 0.0
    %1274 = vmatpush1.msra.mxu0 0.0
    %1275 = vmatprep.subr.mxu0 0.0
    %1276 = vmatpush1.msra.mxu0 0.0
    %1277 = vmatprep.subr.mxu0 0.0
    %1278 = vmatpush1.msra.mxu0 0.0
    %1279 = vmatprep.subr.mxu0 0.0
    %1280 = vmatpush1.msra.mxu0 0.0
    %1281 = vmatprep.subr.mxu0 0.0
    %1282 = vmatpush1.msra.mxu0 0.0
    %1283 = vmatprep.subr.mxu0 0.0
    %1284 = vmatpush1.msra.mxu0 0.0
    %1285 = vmatprep.subr.mxu0 0.0
    %1286 = vmatpush1.msra.mxu0 0.0
    %1287 = vmatprep.subr.mxu0 0.0
    %1288 = vmatpush1.msra.mxu0 0.0
    %1289 = vmatprep.subr.mxu0 0.0
    %1290 = vmatpush1.msra.mxu0 0.0
    %1291 = vmatprep.mubr.f32.mxu0 0.0
    %1292 = vmatmul.mubr.f32.gmra.mrb[0].mxu0 %v1056
    %v1293 = vpop.f32.mrb[0].mxu0
    %v1294 = vadd.f32 0.0, %v1293
    %v1295 = vpop.f32.mrb[0].mxu0
    %v1296 = vadd.f32 0.0, %v1295
    %1297 = vdwg.mxu0
    %1298 = vmatprep.subr.mxu0 %v492
    %1299 = vmatpush1.msra.mxu0 %v491
    %1300 = vmatprep.subr.mxu0 %v496
    %1301 = vmatpush1.msra.mxu0 %v495
    %1302 = vmatprep.subr.mxu0 %v500
    %1303 = vmatpush1.msra.mxu0 %v499
    %1304 = vmatprep.subr.mxu0 %v504
    %1305 = vmatpush1.msra.mxu0 %v503
    %1306 = vmatprep.subr.mxu0 %v508
    %1307 = vmatpush1.msra.mxu0 %v507
    %1308 = vmatprep.subr.mxu0 %v512
    %1309 = vmatpush1.msra.mxu0 %v511
    %1310 = vmatprep.subr.mxu0 %v516
    %1311 = vmatpush1.msra.mxu0 %v515
    %1312 = vmatprep.subr.mxu0 %v520
    %1313 = vmatpush1.msra.mxu0 %v519
    %1314 = vmatprep.subr.mxu0 %v524
    %1315 = vmatpush1.msra.mxu0 %v523
    %1316 = vmatprep.subr.mxu0 %v528
    %1317 = vmatpush1.msra.mxu0 %v527
    %1318 = vmatprep.subr.mxu0 %v532
    %1319 = vmatpush1.msra.mxu0 %v531
    %1320 = vmatprep.subr.mxu0 %v536
    %1321 = vmatpush1.msra.mxu0 %v535
    %1322 = vmatprep.subr.mxu0 %v540
    %1323 = vmatpush1.msra.mxu0 %v539
    %1324 = vmatprep.subr.mxu0 %v544
    %1325 = vmatpush1.msra.mxu0 %v543
    %1326 = vmatprep.subr.mxu0 %v548
    %1327 = vmatpush1.msra.mxu0 %v547
    %1328 = vmatprep.subr.mxu0 %v552
    %1329 = vmatpush1.msra.mxu0 %v551
    %1330 = vmatprep.subr.mxu0 0.0
    %1331 = vmatpush1.msra.mxu0 0.0
    %1332 = vmatprep.subr.mxu0 0.0
    %1333 = vmatpush1.msra.mxu0 0.0
    %1334 = vmatprep.subr.mxu0 0.0
    %1335 = vmatpush1.msra.mxu0 0.0
    %1336 = vmatprep.subr.mxu0 0.0
    %1337 = vmatpush1.msra.mxu0 0.0
    %1338 = vmatprep.subr.mxu0 0.0
    %1339 = vmatpush1.msra.mxu0 0.0
    %1340 = vmatprep.subr.mxu0 0.0
    %1341 = vmatpush1.msra.mxu0 0.0
    %1342 = vmatprep.subr.mxu0 0.0
    %1343 = vmatpush1.msra.mxu0 0.0
    %1344 = vmatprep.subr.mxu0 0.0
    %1345 = vmatpush1.msra.mxu0 0.0
    %1346 = vmatprep.subr.mxu0 0.0
    %1347 = vmatpush1.msra.mxu0 0.0
    %1348 = vmatprep.subr.mxu0 0.0
    %1349 = vmatpush1.msra.mxu0 0.0
    %1350 = vmatprep.subr.mxu0 0.0
    %1351 = vmatpush1.msra.mxu0 0.0
    %1352 = vmatprep.subr.mxu0 0.0
    %1353 = vmatpush1.msra.mxu0 0.0
    %1354 = vmatprep.subr.mxu0 0.0
    %1355 = vmatpush1.msra.mxu0 0.0
    %1356 = vmatprep.subr.mxu0 0.0
    %1357 = vmatpush1.msra.mxu0 0.0
    %1358 = vmatprep.subr.mxu0 0.0
    %1359 = vmatpush1.msra.mxu0 0.0
    %1360 = vmatprep.subr.mxu0 0.0
    %1361 = vmatpush1.msra.mxu0 0.0
    %1362 = vmatprep.mubr.f32.mxu0 0.0
    %1363 = vmatmul.mubr.f32.gmra.mrb[0].mxu0 %v1056
    %v1364 = vpop.f32.mrb[0].mxu0
    %v1365 = vadd.f32 0.0, %v1364
    %v1366 = vpop.f32.mrb[0].mxu0
    %v1367 = vadd.f32 0.0, %v1366
    %1368 = vdwg.mxu0
    %1369 = vmatprep.subr.mxu0 %v426
    %1370 = vmatpush1.msra.mxu0 %v425
    %1371 = vmatprep.subr.mxu0 %v430
    %1372 = vmatpush1.msra.mxu0 %v429
    %1373 = vmatprep.subr.mxu0 %v434
    %1374 = vmatpush1.msra.mxu0 %v433
    %1375 = vmatprep.subr.mxu0 %v438
    %1376 = vmatpush1.msra.mxu0 %v437
    %1377 = vmatprep.subr.mxu0 %v442
    %1378 = vmatpush1.msra.mxu0 %v441
    %1379 = vmatprep.subr.mxu0 %v446
    %1380 = vmatpush1.msra.mxu0 %v445
    %1381 = vmatprep.subr.mxu0 %v450
    %1382 = vmatpush1.msra.mxu0 %v449
    %1383 = vmatprep.subr.mxu0 %v454
    %1384 = vmatpush1.msra.mxu0 %v453
    %1385 = vmatprep.subr.mxu0 %v458
    %1386 = vmatpush1.msra.mxu0 %v457
    %1387 = vmatprep.subr.mxu0 %v462
    %1388 = vmatpush1.msra.mxu0 %v461
    %1389 = vmatprep.subr.mxu0 %v466
    %1390 = vmatpush1.msra.mxu0 %v465
    %1391 = vmatprep.subr.mxu0 %v470
    %1392 = vmatpush1.msra.mxu0 %v469
    %1393 = vmatprep.subr.mxu0 %v474
    %1394 = vmatpush1.msra.mxu0 %v473
    %1395 = vmatprep.subr.mxu0 %v478
    %1396 = vmatpush1.msra.mxu0 %v477
    %1397 = vmatprep.subr.mxu0 %v482
    %1398 = vmatpush1.msra.mxu0 %v481
    %1399 = vmatprep.subr.mxu0 %v486
    %1400 = vmatpush1.msra.mxu0 %v485
    %1401 = vmatprep.subr.mxu0 0.0
    %1402 = vmatpush1.msra.mxu0 0.0
    %1403 = vmatprep.subr.mxu0 0.0
    %1404 = vmatpush1.msra.mxu0 0.0
    %1405 = vmatprep.subr.mxu0 0.0
    %1406 = vmatpush1.msra.mxu0 0.0
    %1407 = vmatprep.subr.mxu0 0.0
    %1408 = vmatpush1.msra.mxu0 0.0
    %1409 = vmatprep.subr.mxu0 0.0
    %1410 = vmatpush1.msra.mxu0 0.0
    %1411 = vmatprep.subr.mxu0 0.0
    %1412 = vmatpush1.msra.mxu0 0.0
    %1413 = vmatprep.subr.mxu0 0.0
    %1414 = vmatpush1.msra.mxu0 0.0
    %1415 = vmatprep.subr.mxu0 0.0
    %1416 = vmatpush1.msra.mxu0 0.0
    %1417 = vmatprep.subr.mxu0 0.0
    %1418 = vmatpush1.msra.mxu0 0.0
    %1419 = vmatprep.subr.mxu0 0.0
    %1420 = vmatpush1.msra.mxu0 0.0
    %1421 = vmatprep.subr.mxu0 0.0
    %1422 = vmatpush1.msra.mxu0 0.0
    %1423 = vmatprep.subr.mxu0 0.0
    %1424 = vmatpush1.msra.mxu0 0.0
    %1425 = vmatprep.subr.mxu0 0.0
    %1426 = vmatpush1.msra.mxu0 0.0
    %1427 = vmatprep.subr.mxu0 0.0
    %1428 = vmatpush1.msra.mxu0 0.0
    %1429 = vmatprep.subr.mxu0 0.0
    %1430 = vmatpush1.msra.mxu0 0.0
    %1431 = vmatprep.subr.mxu0 0.0
    %1432 = vmatpush1.msra.mxu0 0.0
    %1433 = vmatprep.mubr.f32.mxu0 0.0
    %1434 = vmatmul.mubr.f32.gmra.mrb[0].mxu0 %v1226
    %v1435 = vpop.f32.mrb[0].mxu0
    %v1436 = vadd.f32 %v1294, %v1435
    %v1437 = vpop.f32.mrb[0].mxu0
    %v1438 = vadd.f32 %v1296, %v1437
    %1439 = vdwg.mxu0
    %1440 = vmatprep.subr.mxu0 %v428
    %1441 = vmatpush1.msra.mxu0 %v427
    %1442 = vmatprep.subr.mxu0 %v432
    %1443 = vmatpush1.msra.mxu0 %v431
    %1444 = vmatprep.subr.mxu0 %v436
    %1445 = vmatpush1.msra.mxu0 %v435
    %1446 = vmatprep.subr.mxu0 %v440
    %1447 = vmatpush1.msra.mxu0 %v439
    %1448 = vmatprep.subr.mxu0 %v444
    %1449 = vmatpush1.msra.mxu0 %v443
    %1450 = vmatprep.subr.mxu0 %v448
    %1451 = vmatpush1.msra.mxu0 %v447
    %1452 = vmatprep.subr.mxu0 %v452
    %1453 = vmatpush1.msra.mxu0 %v451
    %1454 = vmatprep.subr.mxu0 %v456
    %1455 = vmatpush1.msra.mxu0 %v455
    %1456 = vmatprep.subr.mxu0 %v460
    %1457 = vmatpush1.msra.mxu0 %v459
    %1458 = vmatprep.subr.mxu0 %v464
    %1459 = vmatpush1.msra.mxu0 %v463
    %1460 = vmatprep.subr.mxu0 %v468
    %1461 = vmatpush1.msra.mxu0 %v467
    %1462 = vmatprep.subr.mxu0 %v472
    %1463 = vmatpush1.msra.mxu0 %v471
    %1464 = vmatprep.subr.mxu0 %v476
    %1465 = vmatpush1.msra.mxu0 %v475
    %1466 = vmatprep.subr.mxu0 %v480
    %1467 = vmatpush1.msra.mxu0 %v479
    %1468 = vmatprep.subr.mxu0 %v484
    %1469 = vmatpush1.msra.mxu0 %v483
    %1470 = vmatprep.subr.mxu0 %v488
    %1471 = vmatpush1.msra.mxu0 %v487
    %1472 = vmatprep.subr.mxu0 0.0
    %1473 = vmatpush1.msra.mxu0 0.0
    %1474 = vmatprep.subr.mxu0 0.0
    %1475 = vmatpush1.msra.mxu0 0.0
    %1476 = vmatprep.subr.mxu0 0.0
    %1477 = vmatpush1.msra.mxu0 0.0
    %1478 = vmatprep.subr.mxu0 0.0
    %1479 = vmatpush1.msra.mxu0 0.0
    %1480 = vmatprep.subr.mxu0 0.0
    %1481 = vmatpush1.msra.mxu0 0.0
    %1482 = vmatprep.subr.mxu0 0.0
    %1483 = vmatpush1.msra.mxu0 0.0
    %1484 = vmatprep.subr.mxu0 0.0
    %1485 = vmatpush1.msra.mxu0 0.0
    %1486 = vmatprep.subr.mxu0 0.0
    %1487 = vmatpush1.msra.mxu0 0.0
    %1488 = vmatprep.subr.mxu0 0.0
    %1489 = vmatpush1.msra.mxu0 0.0
    %1490 = vmatprep.subr.mxu0 0.0
    %1491 = vmatpush1.msra.mxu0 0.0
    %1492 = vmatprep.subr.mxu0 0.0
    %1493 = vmatpush1.msra.mxu0 0.0
    %1494 = vmatprep.subr.mxu0 0.0
    %1495 = vmatpush1.msra.mxu0 0.0
    %1496 = vmatprep.subr.mxu0 0.0
    %1497 = vmatpush1.msra.mxu0 0.0
    %1498 = vmatprep.subr.mxu0 0.0
    %1499 = vmatpush1.msra.mxu0 0.0
    %1500 = vmatprep.subr.mxu0 0.0
    %1501 = vmatpush1.msra.mxu0 0.0
    %1502 = vmatprep.subr.mxu0 0.0
    %1503 = vmatpush1.msra.mxu0 0.0
    %1504 = vmatprep.mubr.f32.mxu0 0.0
    %1505 = vmatmul.mubr.f32.gmra.mrb[0].mxu0 %v1226
    %v1506 = vpop.f32.mrb[0].mxu0
    %v1507 = vadd.f32 %v1365, %v1506
    %v1508 = vpop.f32.mrb[0].mxu0
    %v1509 = vadd.f32 %v1367, %v1508
    %1510 = vdwg.mxu0
    %v1511 = vadd.f32 %v1436, %v1012
    %v1512 = vadd.f32 %v1438, %v1016
    %v1513 = vadd.f32 %v1507, %v1020
    %v1514 = vadd.f32 %v1509, %v1024
    %v1515 = vxor.u32 %v1511, 2147483648
    %v1516 = vmul.f32 %v1515, 1.442695
    %v1517 = vpow.pop %v1516
    %v1518 = vadd.f32 %v1517, 1.0
    %v1519 = vrcp.pop %v1518
    %v1520 = vmul.f32 1.0, %v1519
    %v1521 = vxor.u32 %v1512, 2147483648
    %v1522 = vmul.f32 %v1521, 1.442695
    %v1523 = vpow.pop %v1522
    %v1524 = vadd.f32 %v1523, 1.0
    %v1525 = vrcp.pop %v1524
    %v1526 = vmul.f32 1.0, %v1525
    %v1527 = vtanh.pop %v1513
    %v1528 = vxor.u32 %v1514, 2147483648
    %v1529 = vmul.f32 %v1528, 1.442695
    %v1530 = vpow.pop %v1529
    %v1531 = vadd.f32 %v1530, 1.0
    %v1532 = vrcp.pop %v1531
    %v1533 = vmul.f32 1.0, %v1532
    %v1534 = vmul.f32 %v1526, %v1054
    %v1535 = vmul.f32 %v1520, %v1527
    %v1536 = vadd.f32 %v1534, %v1535
    %v1537 = vtanh.pop %v1536
    %v1538 = vmul.f32 %v1533, %v1537
    %1539 = vmatprep.subr.mxu0 %v362
    %1540 = vmatpush1.msra.mxu0 %v361
    %1541 = vmatprep.subr.mxu0 %v366
    %1542 = vmatpush1.msra.mxu0 %v365
    %1543 = vmatprep.subr.mxu0 %v370
    %1544 = vmatpush1.msra.mxu0 %v369
    %1545 = vmatprep.subr.mxu0 %v374
    %1546 = vmatpush1.msra.mxu0 %v373
    %1547 = vmatprep.subr.mxu0 %v378
    %1548 = vmatpush1.msra.mxu0 %v377
    %1549 = vmatprep.subr.mxu0 %v382
    %1550 = vmatpush1.msra.mxu0 %v381
    %1551 = vmatprep.subr.mxu0 %v386
    %1552 = vmatpush1.msra.mxu0 %v385
    %1553 = vmatprep.subr.mxu0 %v390
    %1554 = vmatpush1.msra.mxu0 %v389
    %1555 = vmatprep.subr.mxu0 %v394
    %1556 = vmatpush1.msra.mxu0 %v393
    %1557 = vmatprep.subr.mxu0 %v398
    %1558 = vmatpush1.msra.mxu0 %v397
    %1559 = vmatprep.subr.mxu0 %v402
    %1560 = vmatpush1.msra.mxu0 %v401
    %1561 = vmatprep.subr.mxu0 %v406
    %1562 = vmatpush1.msra.mxu0 %v405
    %1563 = vmatprep.subr.mxu0 %v410
    %1564 = vmatpush1.msra.mxu0 %v409
    %1565 = vmatprep.subr.mxu0 %v414
    %1566 = vmatpush1.msra.mxu0 %v413
    %1567 = vmatprep.subr.mxu0 %v418
    %1568 = vmatpush1.msra.mxu0 %v417
    %1569 = vmatprep.subr.mxu0 %v422
    %1570 = vmatpush1.msra.mxu0 %v421
    %1571 = vmatprep.subr.mxu0 0.0
    %1572 = vmatpush1.msra.mxu0 0.0
    %1573 = vmatprep.subr.mxu0 0.0
    %1574 = vmatpush1.msra.mxu0 0.0
    %1575 = vmatprep.subr.mxu0 0.0
    %1576 = vmatpush1.msra.mxu0 0.0
    %1577 = vmatprep.subr.mxu0 0.0
    %1578 = vmatpush1.msra.mxu0 0.0
    %1579 = vmatprep.subr.mxu0 0.0
    %1580 = vmatpush1.msra.mxu0 0.0
    %1581 = vmatprep.subr.mxu0 0.0
    %1582 = vmatpush1.msra.mxu0 0.0
    %1583 = vmatprep.subr.mxu0 0.0
    %1584 = vmatpush1.msra.mxu0 0.0
    %1585 = vmatprep.subr.mxu0 0.0
    %1586 = vmatpush1.msra.mxu0 0.0
    %1587 = vmatprep.subr.mxu0 0.0
    %1588 = vmatpush1.msra.mxu0 0.0
    %1589 = vmatprep.subr.mxu0 0.0
    %1590 = vmatpush1.msra.mxu0 0.0
    %1591 = vmatprep.subr.mxu0 0.0
    %1592 = vmatpush1.msra.mxu0 0.0
    %1593 = vmatprep.subr.mxu0 0.0
    %1594 = vmatpush1.msra.mxu0 0.0
    %1595 = vmatprep.subr.mxu0 0.0
    %1596 = vmatpush1.msra.mxu0 0.0
    %1597 = vmatprep.subr.mxu0 0.0
    %1598 = vmatpush1.msra.mxu0 0.0
    %1599 = vmatprep.subr.mxu0 0.0
    %1600 = vmatpush1.msra.mxu0 0.0
    %1601 = vmatprep.subr.mxu0 0.0
    %1602 = vmatpush1.msra.mxu0 0.0
    %1603 = vmatprep.mubr.f32.mxu0 0.0
    %1604 = vmatmul.mubr.f32.gmra.mrb[0].mxu0 %v1226
    %v1605 = vpop.f32.mrb[0].mxu0
    %v1606 = vadd.f32 0.0, %v1605
    %v1607 = vpop.f32.mrb[0].mxu0
    %v1608 = vadd.f32 0.0, %v1607
    %1609 = vdwg.mxu0
    %1610 = vmatprep.subr.mxu0 %v364
    %1611 = vmatpush1.msra.mxu0 %v363
    %1612 = vmatprep.subr.mxu0 %v368
    %1613 = vmatpush1.msra.mxu0 %v367
    %1614 = vmatprep.subr.mxu0 %v372
    %1615 = vmatpush1.msra.mxu0 %v371
    %1616 = vmatprep.subr.mxu0 %v376
    %1617 = vmatpush1.msra.mxu0 %v375
    %1618 = vmatprep.subr.mxu0 %v380
    %1619 = vmatpush1.msra.mxu0 %v379
    %1620 = vmatprep.subr.mxu0 %v384
    %1621 = vmatpush1.msra.mxu0 %v383
    %1622 = vmatprep.subr.mxu0 %v388
    %1623 = vmatpush1.msra.mxu0 %v387
    %1624 = vmatprep.subr.mxu0 %v392
    %1625 = vmatpush1.msra.mxu0 %v391
    %1626 = vmatprep.subr.mxu0 %v396
    %1627 = vmatpush1.msra.mxu0 %v395
    %1628 = vmatprep.subr.mxu0 %v400
    %1629 = vmatpush1.msra.mxu0 %v399
    %1630 = vmatprep.subr.mxu0 %v404
    %1631 = vmatpush1.msra.mxu0 %v403
    %1632 = vmatprep.subr.mxu0 %v408
    %1633 = vmatpush1.msra.mxu0 %v407
    %1634 = vmatprep.subr.mxu0 %v412
    %1635 = vmatpush1.msra.mxu0 %v411
    %1636 = vmatprep.subr.mxu0 %v416
    %1637 = vmatpush1.msra.mxu0 %v415
    %1638 = vmatprep.subr.mxu0 %v420
    %1639 = vmatpush1.msra.mxu0 %v419
    %1640 = vmatprep.subr.mxu0 %v424
    %1641 = vmatpush1.msra.mxu0 %v423
    %1642 = vmatprep.subr.mxu0 0.0
    %1643 = vmatpush1.msra.mxu0 0.0
    %1644 = vmatprep.subr.mxu0 0.0
    %1645 = vmatpush1.msra.mxu0 0.0
    %1646 = vmatprep.subr.mxu0 0.0
    %1647 = vmatpush1.msra.mxu0 0.0
    %1648 = vmatprep.subr.mxu0 0.0
    %1649 = vmatpush1.msra.mxu0 0.0
    %1650 = vmatprep.subr.mxu0 0.0
    %1651 = vmatpush1.msra.mxu0 0.0
    %1652 = vmatprep.subr.mxu0 0.0
    %1653 = vmatpush1.msra.mxu0 0.0
    %1654 = vmatprep.subr.mxu0 0.0
    %1655 = vmatpush1.msra.mxu0 0.0
    %1656 = vmatprep.subr.mxu0 0.0
    %1657 = vmatpush1.msra.mxu0 0.0
    %1658 = vmatprep.subr.mxu0 0.0
    %1659 = vmatpush1.msra.mxu0 0.0
    %1660 = vmatprep.subr.mxu0 0.0
    %1661 = vmatpush1.msra.mxu0 0.0
    %1662 = vmatprep.subr.mxu0 0.0
    %1663 = vmatpush1.msra.mxu0 0.0
    %1664 = vmatprep.subr.mxu0 0.0
    %1665 = vmatpush1.msra.mxu0 0.0
    %1666 = vmatprep.subr.mxu0 0.0
    %1667 = vmatpush1.msra.mxu0 0.0
    %1668 = vmatprep.subr.mxu0 0.0
    %1669 = vmatpush1.msra.mxu0 0.0
    %1670 = vmatprep.subr.mxu0 0.0
    %1671 = vmatpush1.msra.mxu0 0.0
    %1672 = vmatprep.subr.mxu0 0.0
    %1673 = vmatpush1.msra.mxu0 0.0
    %1674 = vmatprep.mubr.f32.mxu0 0.0
    %1675 = vmatmul.mubr.f32.gmra.mrb[0].mxu0 %v1226
    %v1676 = vpop.f32.mrb[0].mxu0
    %v1677 = vadd.f32 0.0, %v1676
    %v1678 = vpop.f32.mrb[0].mxu0
    %v1679 = vadd.f32 0.0, %v1678
    %1680 = vdwg.mxu0
    %v1681 = vadd.f32 %v214, %v1606
    %v1682 = vadd.f32 %v216, %v1608
    %v1683 = vadd.f32 %v327, %v1677
    %v1684 = vadd.f32 %v329, %v1679
    %v1685 = vxor.u32 %v1681, 2147483648
    %v1686 = vmul.f32 %v1685, 1.442695
    %v1687 = vpow.pop %v1686
    %v1688 = vadd.f32 %v1687, 1.0
    %v1689 = vrcp.pop %v1688
    %v1690 = vmul.f32 1.0, %v1689
    %v1691 = vxor.u32 %v1682, 2147483648
    %v1692 = vmul.f32 %v1691, 1.442695
    %v1693 = vpow.pop %v1692
    %v1694 = vadd.f32 %v1693, 1.0
    %v1695 = vrcp.pop %v1694
    %v1696 = vmul.f32 1.0, %v1695
    %v1697 = vtanh.pop %v1683
    %v1698 = vxor.u32 %v1684, 2147483648
    %v1699 = vmul.f32 %v1698, 1.442695
    %v1700 = vpow.pop %v1699
    %v1701 = vadd.f32 %v1700, 1.0
    %v1702 = vrcp.pop %v1701
    %v1703 = vmul.f32 1.0, %v1702
    %v1704 = vmul.f32 %v1696, %v1224
    %v1705 = vmul.f32 %v1690, %v1697
    %v1706 = vadd.f32 %v1704, %v1705
    %v1707 = vtanh.pop %v1706
    %v1708 = vmul.f32 %v1703, %v1707
    %1709 = vmatprep.subr.mxu0 %v490
    %1710 = vmatpush1.msra.mxu0 %v489
    %1711 = vmatprep.subr.mxu0 %v494
    %1712 = vmatpush1.msra.mxu0 %v493
    %1713 = vmatprep.subr.mxu0 %v498
    %1714 = vmatpush1.msra.mxu0 %v497
    %1715 = vmatprep.subr.mxu0 %v502
    %1716 = vmatpush1.msra.mxu0 %v501
    %1717 = vmatprep.subr.mxu0 %v506
    %1718 = vmatpush1.msra.mxu0 %v505
    %1719 = vmatprep.subr.mxu0 %v510
    %1720 = vmatpush1.msra.mxu0 %v509
    %1721 = vmatprep.subr.mxu0 %v514
    %1722 = vmatpush1.msra.mxu0 %v513
    %1723 = vmatprep.subr.mxu0 %v518
    %1724 = vmatpush1.msra.mxu0 %v517
    %1725 = vmatprep.subr.mxu0 %v522
    %1726 = vmatpush1.msra.mxu0 %v521
    %1727 = vmatprep.subr.mxu0 %v526
    %1728 = vmatpush1.msra.mxu0 %v525
    %1729 = vmatprep.subr.mxu0 %v530
    %1730 = vmatpush1.msra.mxu0 %v529
    %1731 = vmatprep.subr.mxu0 %v534
    %1732 = vmatpush1.msra.mxu0 %v533
    %1733 = vmatprep.subr.mxu0 %v538
    %1734 = vmatpush1.msra.mxu0 %v537
    %1735 = vmatprep.subr.mxu0 %v542
    %1736 = vmatpush1.msra.mxu0 %v541
    %1737 = vmatprep.subr.mxu0 %v546
    %1738 = vmatpush1.msra.mxu0 %v545
    %1739 = vmatprep.subr.mxu0 %v550
    %1740 = vmatpush1.msra.mxu0 %v549
    %1741 = vmatprep.subr.mxu0 0.0
    %1742 = vmatpush1.msra.mxu0 0.0
    %1743 = vmatprep.subr.mxu0 0.0
    %1744 = vmatpush1.msra.mxu0 0.0
    %1745 = vmatprep.subr.mxu0 0.0
    %1746 = vmatpush1.msra.mxu0 0.0
    %1747 = vmatprep.subr.mxu0 0.0
    %1748 = vmatpush1.msra.mxu0 0.0
    %1749 = vmatprep.subr.mxu0 0.0
    %1750 = vmatpush1.msra.mxu0 0.0
    %1751 = vmatprep.subr.mxu0 0.0
    %1752 = vmatpush1.msra.mxu0 0.0
    %1753 = vmatprep.subr.mxu0 0.0
    %1754 = vmatpush1.msra.mxu0 0.0
    %1755 = vmatprep.subr.mxu0 0.0
    %1756 = vmatpush1.msra.mxu0 0.0
    %1757 = vmatprep.subr.mxu0 0.0
    %1758 = vmatpush1.msra.mxu0 0.0
    %1759 = vmatprep.subr.mxu0 0.0
    %1760 = vmatpush1.msra.mxu0 0.0
    %1761 = vmatprep.subr.mxu0 0.0
    %1762 = vmatpush1.msra.mxu0 0.0
    %1763 = vmatprep.subr.mxu0 0.0
    %1764 = vmatpush1.msra.mxu0 0.0
    %1765 = vmatprep.subr.mxu0 0.0
    %1766 = vmatpush1.msra.mxu0 0.0
    %1767 = vmatprep.subr.mxu0 0.0
    %1768 = vmatpush1.msra.mxu0 0.0
    %1769 = vmatprep.subr.mxu0 0.0
    %1770 = vmatpush1.msra.mxu0 0.0
    %1771 = vmatprep.subr.mxu0 0.0
    %1772 = vmatpush1.msra.mxu0 0.0
    %1773 = vmatprep.mubr.f32.mxu0 0.0
    %1774 = vmatmul.mubr.f32.gmra.mrb[0].mxu0 %v1538
    %v1775 = vpop.f32.mrb[0].mxu0
    %v1776 = vadd.f32 0.0, %v1775
    %v1777 = vpop.f32.mrb[0].mxu0
    %v1778 = vadd.f32 0.0, %v1777
    %1779 = vdwg.mxu0
    %1780 = vmatprep.subr.mxu0 %v492
    %1781 = vmatpush1.msra.mxu0 %v491
    %1782 = vmatprep.subr.mxu0 %v496
    %1783 = vmatpush1.msra.mxu0 %v495
    %1784 = vmatprep.subr.mxu0 %v500
    %1785 = vmatpush1.msra.mxu0 %v499
    %1786 = vmatprep.subr.mxu0 %v504
    %1787 = vmatpush1.msra.mxu0 %v503
    %1788 = vmatprep.subr.mxu0 %v508
    %1789 = vmatpush1.msra.mxu0 %v507
    %1790 = vmatprep.subr.mxu0 %v512
    %1791 = vmatpush1.msra.mxu0 %v511
    %1792 = vmatprep.subr.mxu0 %v516
    %1793 = vmatpush1.msra.mxu0 %v515
    %1794 = vmatprep.subr.mxu0 %v520
    %1795 = vmatpush1.msra.mxu0 %v519
    %1796 = vmatprep.subr.mxu0 %v524
    %1797 = vmatpush1.msra.mxu0 %v523
    %1798 = vmatprep.subr.mxu0 %v528
    %1799 = vmatpush1.msra.mxu0 %v527
    %1800 = vmatprep.subr.mxu0 %v532
    %1801 = vmatpush1.msra.mxu0 %v531
    %1802 = vmatprep.subr.mxu0 %v536
    %1803 = vmatpush1.msra.mxu0 %v535
    %1804 = vmatprep.subr.mxu0 %v540
    %1805 = vmatpush1.msra.mxu0 %v539
    %1806 = vmatprep.subr.mxu0 %v544
    %1807 = vmatpush1.msra.mxu0 %v543
    %1808 = vmatprep.subr.mxu0 %v548
    %1809 = vmatpush1.msra.mxu0 %v547
    %1810 = vmatprep.subr.mxu0 %v552
    %1811 = vmatpush1.msra.mxu0 %v551
    %1812 = vmatprep.subr.mxu0 0.0
    %1813 = vmatpush1.msra.mxu0 0.0
    %1814 = vmatprep.subr.mxu0 0.0
    %1815 = vmatpush1.msra.mxu0 0.0
    %1816 = vmatprep.subr.mxu0 0.0
    %1817 = vmatpush1.msra.mxu0 0.0
    %1818 = vmatprep.subr.mxu0 0.0
    %1819 = vmatpush1.msra.mxu0 0.0
    %1820 = vmatprep.subr.mxu0 0.0
    %1821 = vmatpush1.msra.mxu0 0.0
    %1822 = vmatprep.subr.mxu0 0.0
    %1823 = vmatpush1.msra.mxu0 0.0
    %1824 = vmatprep.subr.mxu0 0.0
    %1825 = vmatpush1.msra.mxu0 0.0
    %1826 = vmatprep.subr.mxu0 0.0
    %1827 = vmatpush1.msra.mxu0 0.0
    %1828 = vmatprep.subr.mxu0 0.0
    %1829 = vmatpush1.msra.mxu0 0.0
    %1830 = vmatprep.subr.mxu0 0.0
    %1831 = vmatpush1.msra.mxu0 0.0
    %1832 = vmatprep.subr.mxu0 0.0
    %1833 = vmatpush1.msra.mxu0 0.0
    %1834 = vmatprep.subr.mxu0 0.0
    %1835 = vmatpush1.msra.mxu0 0.0
    %1836 = vmatprep.subr.mxu0 0.0
    %1837 = vmatpush1.msra.mxu0 0.0
    %1838 = vmatprep.subr.mxu0 0.0
    %1839 = vmatpush1.msra.mxu0 0.0
    %1840 = vmatprep.subr.mxu0 0.0
    %1841 = vmatpush1.msra.mxu0 0.0
    %1842 = vmatprep.subr.mxu0 0.0
    %1843 = vmatpush1.msra.mxu0 0.0
    %1844 = vmatprep.mubr.f32.mxu0 0.0
    %1845 = vmatmul.mubr.f32.gmra.mrb[0].mxu0 %v1538
    %v1846 = vpop.f32.mrb[0].mxu0
    %v1847 = vadd.f32 0.0, %v1846
    %v1848 = vpop.f32.mrb[0].mxu0
    %v1849 = vadd.f32 0.0, %v1848
    %1850 = vdwg.mxu0
    %1851 = vmatprep.subr.mxu0 %v426
    %1852 = vmatpush1.msra.mxu0 %v425
    %1853 = vmatprep.subr.mxu0 %v430
    %1854 = vmatpush1.msra.mxu0 %v429
    %1855 = vmatprep.subr.mxu0 %v434
    %1856 = vmatpush1.msra.mxu0 %v433
    %1857 = vmatprep.subr.mxu0 %v438
    %1858 = vmatpush1.msra.mxu0 %v437
    %1859 = vmatprep.subr.mxu0 %v442
    %1860 = vmatpush1.msra.mxu0 %v441
    %1861 = vmatprep.subr.mxu0 %v446
    %1862 = vmatpush1.msra.mxu0 %v445
    %1863 = vmatprep.subr.mxu0 %v450
    %1864 = vmatpush1.msra.mxu0 %v449
    %1865 = vmatprep.subr.mxu0 %v454
    %1866 = vmatpush1.msra.mxu0 %v453
    %1867 = vmatprep.subr.mxu0 %v458
    %1868 = vmatpush1.msra.mxu0 %v457
    %1869 = vmatprep.subr.mxu0 %v462
    %1870 = vmatpush1.msra.mxu0 %v461
    %1871 = vmatprep.subr.mxu0 %v466
    %1872 = vmatpush1.msra.mxu0 %v465
    %1873 = vmatprep.subr.mxu0 %v470
    %1874 = vmatpush1.msra.mxu0 %v469
    %1875 = vmatprep.subr.mxu0 %v474
    %1876 = vmatpush1.msra.mxu0 %v473
    %1877 = vmatprep.subr.mxu0 %v478
    %1878 = vmatpush1.msra.mxu0 %v477
    %1879 = vmatprep.subr.mxu0 %v482
    %1880 = vmatpush1.msra.mxu0 %v481
    %1881 = vmatprep.subr.mxu0 %v486
    %1882 = vmatpush1.msra.mxu0 %v485
    %1883 = vmatprep.subr.mxu0 0.0
    %1884 = vmatpush1.msra.mxu0 0.0
    %1885 = vmatprep.subr.mxu0 0.0
    %1886 = vmatpush1.msra.mxu0 0.0
    %1887 = vmatprep.subr.mxu0 0.0
    %1888 = vmatpush1.msra.mxu0 0.0
    %1889 = vmatprep.subr.mxu0 0.0
    %1890 = vmatpush1.msra.mxu0 0.0
    %1891 = vmatprep.subr.mxu0 0.0
    %1892 = vmatpush1.msra.mxu0 0.0
    %1893 = vmatprep.subr.mxu0 0.0
    %1894 = vmatpush1.msra.mxu0 0.0
    %1895 = vmatprep.subr.mxu0 0.0
    %1896 = vmatpush1.msra.mxu0 0.0
    %1897 = vmatprep.subr.mxu0 0.0
    %1898 = vmatpush1.msra.mxu0 0.0
    %1899 = vmatprep.subr.mxu0 0.0
    %1900 = vmatpush1.msra.mxu0 0.0
    %1901 = vmatprep.subr.mxu0 0.0
    %1902 = vmatpush1.msra.mxu0 0.0
    %1903 = vmatprep.subr.mxu0 0.0
    %1904 = vmatpush1.msra.mxu0 0.0
    %1905 = vmatprep.subr.mxu0 0.0
    %1906 = vmatpush1.msra.mxu0 0.0
    %1907 = vmatprep.subr.mxu0 0.0
    %1908 = vmatpush1.msra.mxu0 0.0
    %1909 = vmatprep.subr.mxu0 0.0
    %1910 = vmatpush1.msra.mxu0 0.0
    %1911 = vmatprep.subr.mxu0 0.0
    %1912 = vmatpush1.msra.mxu0 0.0
    %1913 = vmatprep.subr.mxu0 0.0
    %1914 = vmatpush1.msra.mxu0 0.0
    %1915 = vmatprep.mubr.f32.mxu0 0.0
    %1916 = vmatmul.mubr.f32.gmra.mrb[0].mxu0 %v1708
    %v1917 = vpop.f32.mrb[0].mxu0
    %v1918 = vadd.f32 %v1776, %v1917
    %v1919 = vpop.f32.mrb[0].mxu0
    %v1920 = vadd.f32 %v1778, %v1919
    %1921 = vdwg.mxu0
    %1922 = vmatprep.subr.mxu0 %v428
    %1923 = vmatpush1.msra.mxu0 %v427
    %1924 = vmatprep.subr.mxu0 %v432
    %1925 = vmatpush1.msra.mxu0 %v431
    %1926 = vmatprep.subr.mxu0 %v436
    %1927 = vmatpush1.msra.mxu0 %v435
    %1928 = vmatprep.subr.mxu0 %v440
    %1929 = vmatpush1.msra.mxu0 %v439
    %1930 = vmatprep.subr.mxu0 %v444
    %1931 = vmatpush1.msra.mxu0 %v443
    %1932 = vmatprep.subr.mxu0 %v448
    %1933 = vmatpush1.msra.mxu0 %v447
    %1934 = vmatprep.subr.mxu0 %v452
    %1935 = vmatpush1.msra.mxu0 %v451
    %1936 = vmatprep.subr.mxu0 %v456
    %1937 = vmatpush1.msra.mxu0 %v455
    %1938 = vmatprep.subr.mxu0 %v460
    %1939 = vmatpush1.msra.mxu0 %v459
    %1940 = vmatprep.subr.mxu0 %v464
    %1941 = vmatpush1.msra.mxu0 %v463
    %1942 = vmatprep.subr.mxu0 %v468
    %1943 = vmatpush1.msra.mxu0 %v467
    %1944 = vmatprep.subr.mxu0 %v472
    %1945 = vmatpush1.msra.mxu0 %v471
    %1946 = vmatprep.subr.mxu0 %v476
    %1947 = vmatpush1.msra.mxu0 %v475
    %1948 = vmatprep.subr.mxu0 %v480
    %1949 = vmatpush1.msra.mxu0 %v479
    %1950 = vmatprep.subr.mxu0 %v484
    %1951 = vmatpush1.msra.mxu0 %v483
    %1952 = vmatprep.subr.mxu0 %v488
    %1953 = vmatpush1.msra.mxu0 %v487
    %1954 = vmatprep.subr.mxu0 0.0
    %1955 = vmatpush1.msra.mxu0 0.0
    %1956 = vmatprep.subr.mxu0 0.0
    %1957 = vmatpush1.msra.mxu0 0.0
    %1958 = vmatprep.subr.mxu0 0.0
    %1959 = vmatpush1.msra.mxu0 0.0
    %1960 = vmatprep.subr.mxu0 0.0
    %1961 = vmatpush1.msra.mxu0 0.0
    %1962 = vmatprep.subr.mxu0 0.0
    %1963 = vmatpush1.msra.mxu0 0.0
    %1964 = vmatprep.subr.mxu0 0.0
    %1965 = vmatpush1.msra.mxu0 0.0
    %1966 = vmatprep.subr.mxu0 0.0
    %1967 = vmatpush1.msra.mxu0 0.0
    %1968 = vmatprep.subr.mxu0 0.0
    %1969 = vmatpush1.msra.mxu0 0.0
    %1970 = vmatprep.subr.mxu0 0.0
    %1971 = vmatpush1.msra.mxu0 0.0
    %1972 = vmatprep.subr.mxu0 0.0
    %1973 = vmatpush1.msra.mxu0 0.0
    %1974 = vmatprep.subr.mxu0 0.0
    %1975 = vmatpush1.msra.mxu0 0.0
    %1976 = vmatprep.subr.mxu0 0.0
    %1977 = vmatpush1.msra.mxu0 0.0
    %1978 = vmatprep.subr.mxu0 0.0
    %1979 = vmatpush1.msra.mxu0 0.0
    %1980 = vmatprep.subr.mxu0 0.0
    %1981 = vmatpush1.msra.mxu0 0.0
    %1982 = vmatprep.subr.mxu0 0.0
    %1983 = vmatpush1.msra.mxu0 0.0
    %1984 = vmatprep.subr.mxu0 0.0
    %1985 = vmatpush1.msra.mxu0 0.0
    %1986 = vmatprep.mubr.f32.mxu0 0.0
    %1987 = vmatmul.mubr.f32.gmra.mrb[0].mxu0 %v1708
    %v1988 = vpop.f32.mrb[0].mxu0
    %v1989 = vadd.f32 %v1847, %v1988
    %v1990 = vpop.f32.mrb[0].mxu0
    %v1991 = vadd.f32 %v1849, %v1990
    %1992 = vdwg.mxu0
    %v1993 = vadd.f32 %v1918, %v1012
    %v1994 = vadd.f32 %v1920, %v1016
    %v1995 = vadd.f32 %v1989, %v1020
    %v1996 = vadd.f32 %v1991, %v1024
    %v1997 = vxor.u32 %v1993, 2147483648
    %v1998 = vmul.f32 %v1997, 1.442695
    %v1999 = vpow.pop %v1998
    %v2000 = vadd.f32 %v1999, 1.0
    %v2001 = vrcp.pop %v2000
    %v2002 = vmul.f32 1.0, %v2001
    %v2003 = vxor.u32 %v1994, 2147483648
    %v2004 = vmul.f32 %v2003, 1.442695
    %v2005 = vpow.pop %v2004
    %v2006 = vadd.f32 %v2005, 1.0
    %v2007 = vrcp.pop %v2006
    %v2008 = vmul.f32 1.0, %v2007
    %v2009 = vtanh.pop %v1995
    %v2010 = vxor.u32 %v1996, 2147483648
    %v2011 = vmul.f32 %v2010, 1.442695
    %v2012 = vpow.pop %v2011
    %v2013 = vadd.f32 %v2012, 1.0
    %v2014 = vrcp.pop %v2013
    %v2015 = vmul.f32 1.0, %v2014
    %v2016 = vmul.f32 %v2008, %v1536
    %v2017 = vmul.f32 %v2002, %v2009
    %v2018 = vadd.f32 %v2016, %v2017
    %v2019 = vtanh.pop %v2018
    %v2020 = vmul.f32 %v2015, %v2019
    %2021 = vmatprep.subr.mxu0 %v362
    %2022 = vmatpush1.msra.mxu0 %v361
    %2023 = vmatprep.subr.mxu0 %v366
    %2024 = vmatpush1.msra.mxu0 %v365
    %2025 = vmatprep.subr.mxu0 %v370
    %2026 = vmatpush1.msra.mxu0 %v369
    %2027 = vmatprep.subr.mxu0 %v374
    %2028 = vmatpush1.msra.mxu0 %v373
    %2029 = vmatprep.subr.mxu0 %v378
    %2030 = vmatpush1.msra.mxu0 %v377
    %2031 = vmatprep.subr.mxu0 %v382
    %2032 = vmatpush1.msra.mxu0 %v381
    %2033 = vmatprep.subr.mxu0 %v386
    %2034 = vmatpush1.msra.mxu0 %v385
    %2035 = vmatprep.subr.mxu0 %v390
    %2036 = vmatpush1.msra.mxu0 %v389
    %2037 = vmatprep.subr.mxu0 %v394
    %2038 = vmatpush1.msra.mxu0 %v393
    %2039 = vmatprep.subr.mxu0 %v398
    %2040 = vmatpush1.msra.mxu0 %v397
    %2041 = vmatprep.subr.mxu0 %v402
    %2042 = vmatpush1.msra.mxu0 %v401
    %2043 = vmatprep.subr.mxu0 %v406
    %2044 = vmatpush1.msra.mxu0 %v405
    %2045 = vmatprep.subr.mxu0 %v410
    %2046 = vmatpush1.msra.mxu0 %v409
    %2047 = vmatprep.subr.mxu0 %v414
    %2048 = vmatpush1.msra.mxu0 %v413
    %2049 = vmatprep.subr.mxu0 %v418
    %2050 = vmatpush1.msra.mxu0 %v417
    %2051 = vmatprep.subr.mxu0 %v422
    %2052 = vmatpush1.msra.mxu0 %v421
    %2053 = vmatprep.subr.mxu0 0.0
    %2054 = vmatpush1.msra.mxu0 0.0
    %2055 = vmatprep.subr.mxu0 0.0
    %2056 = vmatpush1.msra.mxu0 0.0
    %2057 = vmatprep.subr.mxu0 0.0
    %2058 = vmatpush1.msra.mxu0 0.0
    %2059 = vmatprep.subr.mxu0 0.0
    %2060 = vmatpush1.msra.mxu0 0.0
    %2061 = vmatprep.subr.mxu0 0.0
    %2062 = vmatpush1.msra.mxu0 0.0
    %2063 = vmatprep.subr.mxu0 0.0
    %2064 = vmatpush1.msra.mxu0 0.0
    %2065 = vmatprep.subr.mxu0 0.0
    %2066 = vmatpush1.msra.mxu0 0.0
    %2067 = vmatprep.subr.mxu0 0.0
    %2068 = vmatpush1.msra.mxu0 0.0
    %2069 = vmatprep.subr.mxu0 0.0
    %2070 = vmatpush1.msra.mxu0 0.0
    %2071 = vmatprep.subr.mxu0 0.0
    %2072 = vmatpush1.msra.mxu0 0.0
    %2073 = vmatprep.subr.mxu0 0.0
    %2074 = vmatpush1.msra.mxu0 0.0
    %2075 = vmatprep.subr.mxu0 0.0
    %2076 = vmatpush1.msra.mxu0 0.0
    %2077 = vmatprep.subr.mxu0 0.0
    %2078 = vmatpush1.msra.mxu0 0.0
    %2079 = vmatprep.subr.mxu0 0.0
    %2080 = vmatpush1.msra.mxu0 0.0
    %2081 = vmatprep.subr.mxu0 0.0
    %2082 = vmatpush1.msra.mxu0 0.0
    %2083 = vmatprep.subr.mxu0 0.0
    %2084 = vmatpush1.msra.mxu0 0.0
    %2085 = vmatprep.mubr.f32.mxu0 0.0
    %2086 = vmatmul.mubr.f32.gmra.mrb[0].mxu0 %v1708
    %v2087 = vpop.f32.mrb[0].mxu0
    %v2088 = vadd.f32 0.0, %v2087
    %v2089 = vpop.f32.mrb[0].mxu0
    %v2090 = vadd.f32 0.0, %v2089
    %2091 = vdwg.mxu0
    %2092 = vmatprep.subr.mxu0 %v364
    %2093 = vmatpush1.msra.mxu0 %v363
    %2094 = vmatprep.subr.mxu0 %v368
    %2095 = vmatpush1.msra.mxu0 %v367
    %2096 = vmatprep.subr.mxu0 %v372
    %2097 = vmatpush1.msra.mxu0 %v371
    %2098 = vmatprep.subr.mxu0 %v376
    %2099 = vmatpush1.msra.mxu0 %v375
    %2100 = vmatprep.subr.mxu0 %v380
    %2101 = vmatpush1.msra.mxu0 %v379
    %2102 = vmatprep.subr.mxu0 %v384
    %2103 = vmatpush1.msra.mxu0 %v383
    %2104 = vmatprep.subr.mxu0 %v388
    %2105 = vmatpush1.msra.mxu0 %v387
    %2106 = vmatprep.subr.mxu0 %v392
    %2107 = vmatpush1.msra.mxu0 %v391
    %2108 = vmatprep.subr.mxu0 %v396
    %2109 = vmatpush1.msra.mxu0 %v395
    %2110 = vmatprep.subr.mxu0 %v400
    %2111 = vmatpush1.msra.mxu0 %v399
    %2112 = vmatprep.subr.mxu0 %v404
    %2113 = vmatpush1.msra.mxu0 %v403
    %2114 = vmatprep.subr.mxu0 %v408
    %2115 = vmatpush1.msra.mxu0 %v407
    %2116 = vmatprep.subr.mxu0 %v412
    %2117 = vmatpush1.msra.mxu0 %v411
    %2118 = vmatprep.subr.mxu0 %v416
    %2119 = vmatpush1.msra.mxu0 %v415
    %2120 = vmatprep.subr.mxu0 %v420
    %2121 = vmatpush1.msra.mxu0 %v419
    %2122 = vmatprep.subr.mxu0 %v424
    %2123 = vmatpush1.msra.mxu0 %v423
    %2124 = vmatprep.subr.mxu0 0.0
    %2125 = vmatpush1.msra.mxu0 0.0
    %2126 = vmatprep.subr.mxu0 0.0
    %2127 = vmatpush1.msra.mxu0 0.0
    %2128 = vmatprep.subr.mxu0 0.0
    %2129 = vmatpush1.msra.mxu0 0.0
    %2130 = vmatprep.subr.mxu0 0.0
    %2131 = vmatpush1.msra.mxu0 0.0
    %2132 = vmatprep.subr.mxu0 0.0
    %2133 = vmatpush1.msra.mxu0 0.0
    %2134 = vmatprep.subr.mxu0 0.0
    %2135 = vmatpush1.msra.mxu0 0.0
    %2136 = vmatprep.subr.mxu0 0.0
    %2137 = vmatpush1.msra.mxu0 0.0
    %2138 = vmatprep.subr.mxu0 0.0
    %2139 = vmatpush1.msra.mxu0 0.0
    %2140 = vmatprep.subr.mxu0 0.0
    %2141 = vmatpush1.msra.mxu0 0.0
    %2142 = vmatprep.subr.mxu0 0.0
    %2143 = vmatpush1.msra.mxu0 0.0
    %2144 = vmatprep.subr.mxu0 0.0
    %2145 = vmatpush1.msra.mxu0 0.0
    %2146 = vmatprep.subr.mxu0 0.0
    %2147 = vmatpush1.msra.mxu0 0.0
    %2148 = vmatprep.subr.mxu0 0.0
    %2149 = vmatpush1.msra.mxu0 0.0
    %2150 = vmatprep.subr.mxu0 0.0
    %2151 = vmatpush1.msra.mxu0 0.0
    %2152 = vmatprep.subr.mxu0 0.0
    %2153 = vmatpush1.msra.mxu0 0.0
    %2154 = vmatprep.subr.mxu0 0.0
    %2155 = vmatpush1.msra.mxu0 0.0
    %2156 = vmatprep.mubr.f32.mxu0 0.0
    %2157 = vmatmul.mubr.f32.gmra.mrb[0].mxu0 %v1708
    %v2158 = vpop.f32.mrb[0].mxu0
    %v2159 = vadd.f32 0.0, %v2158
    %v2160 = vpop.f32.mrb[0].mxu0
    %v2161 = vadd.f32 0.0, %v2160
    %2162 = vdwg.mxu0
    %v2163 = vadd.f32 %v220, %v2088
    %v2164 = vadd.f32 %v222, %v2090
    %v2165 = vadd.f32 %v333, %v2159
    %v2166 = vadd.f32 %v335, %v2161
    %v2167 = vxor.u32 %v2163, 2147483648
    %v2168 = vmul.f32 %v2167, 1.442695
    %v2169 = vpow.pop %v2168
    %v2170 = vadd.f32 %v2169, 1.0
    %v2171 = vrcp.pop %v2170
    %v2172 = vmul.f32 1.0, %v2171
    %v2173 = vxor.u32 %v2164, 2147483648
    %v2174 = vmul.f32 %v2173, 1.442695
    %v2175 = vpow.pop %v2174
    %v2176 = vadd.f32 %v2175, 1.0
    %v2177 = vrcp.pop %v2176
    %v2178 = vmul.f32 1.0, %v2177
    %v2179 = vtanh.pop %v2165
    %v2180 = vxor.u32 %v2166, 2147483648
    %v2181 = vmul.f32 %v2180, 1.442695
    %v2182 = vpow.pop %v2181
    %v2183 = vadd.f32 %v2182, 1.0
    %v2184 = vrcp.pop %v2183
    %v2185 = vmul.f32 1.0, %v2184
    %v2186 = vmul.f32 %v2178, %v1706
    %v2187 = vmul.f32 %v2172, %v2179
    %v2188 = vadd.f32 %v2186, %v2187
    %v2189 = vtanh.pop %v2188
    %v2190 = vmul.f32 %v2185, %v2189
    %2191 = vmatprep.subr.mxu0 %v490
    %2192 = vmatpush1.msra.mxu0 %v489
    %2193 = vmatprep.subr.mxu0 %v494
    %2194 = vmatpush1.msra.mxu0 %v493
    %2195 = vmatprep.subr.mxu0 %v498
    %2196 = vmatpush1.msra.mxu0 %v497
    %2197 = vmatprep.subr.mxu0 %v502
    %2198 = vmatpush1.msra.mxu0 %v501
    %2199 = vmatprep.subr.mxu0 %v506
    %2200 = vmatpush1.msra.mxu0 %v505
    %2201 = vmatprep.subr.mxu0 %v510
    %2202 = vmatpush1.msra.mxu0 %v509
    %2203 = vmatprep.subr.mxu0 %v514
    %2204 = vmatpush1.msra.mxu0 %v513
    %2205 = vmatprep.subr.mxu0 %v518
    %2206 = vmatpush1.msra.mxu0 %v517
    %2207 = vmatprep.subr.mxu0 %v522
    %2208 = vmatpush1.msra.mxu0 %v521
    %2209 = vmatprep.subr.mxu0 %v526
    %2210 = vmatpush1.msra.mxu0 %v525
    %2211 = vmatprep.subr.mxu0 %v530
    %2212 = vmatpush1.msra.mxu0 %v529
    %2213 = vmatprep.subr.mxu0 %v534
    %2214 = vmatpush1.msra.mxu0 %v533
    %2215 = vmatprep.subr.mxu0 %v538
    %2216 = vmatpush1.msra.mxu0 %v537
    %2217 = vmatprep.subr.mxu0 %v542
    %2218 = vmatpush1.msra.mxu0 %v541
    %2219 = vmatprep.subr.mxu0 %v546
    %2220 = vmatpush1.msra.mxu0 %v545
    %2221 = vmatprep.subr.mxu0 %v550
    %2222 = vmatpush1.msra.mxu0 %v549
    %2223 = vmatprep.subr.mxu0 0.0
    %2224 = vmatpush1.msra.mxu0 0.0
    %2225 = vmatprep.subr.mxu0 0.0
    %2226 = vmatpush1.msra.mxu0 0.0
    %2227 = vmatprep.subr.mxu0 0.0
    %2228 = vmatpush1.msra.mxu0 0.0
    %2229 = vmatprep.subr.mxu0 0.0
    %2230 = vmatpush1.msra.mxu0 0.0
    %2231 = vmatprep.subr.mxu0 0.0
    %2232 = vmatpush1.msra.mxu0 0.0
    %2233 = vmatprep.subr.mxu0 0.0
    %2234 = vmatpush1.msra.mxu0 0.0
    %2235 = vmatprep.subr.mxu0 0.0
    %2236 = vmatpush1.msra.mxu0 0.0
    %2237 = vmatprep.subr.mxu0 0.0
    %2238 = vmatpush1.msra.mxu0 0.0
    %2239 = vmatprep.subr.mxu0 0.0
    %2240 = vmatpush1.msra.mxu0 0.0
    %2241 = vmatprep.subr.mxu0 0.0
    %2242 = vmatpush1.msra.mxu0 0.0
    %2243 = vmatprep.subr.mxu0 0.0
    %2244 = vmatpush1.msra.mxu0 0.0
    %2245 = vmatprep.subr.mxu0 0.0
    %2246 = vmatpush1.msra.mxu0 0.0
    %2247 = vmatprep.subr.mxu0 0.0
    %2248 = vmatpush1.msra.mxu0 0.0
    %2249 = vmatprep.subr.mxu0 0.0
    %2250 = vmatpush1.msra.mxu0 0.0
    %2251 = vmatprep.subr.mxu0 0.0
    %2252 = vmatpush1.msra.mxu0 0.0
    %2253 = vmatprep.subr.mxu0 0.0
    %2254 = vmatpush1.msra.mxu0 0.0
    %2255 = vmatprep.mubr.f32.mxu0 0.0
    %2256 = vmatmul.mubr.f32.gmra.mrb[0].mxu0 %v2020
    %v2257 = vpop.f32.mrb[0].mxu0
    %v2258 = vadd.f32 0.0, %v2257
    %v2259 = vpop.f32.mrb[0].mxu0
    %v2260 = vadd.f32 0.0, %v2259
    %2261 = vdwg.mxu0
    %2262 = vmatprep.subr.mxu0 %v492
    %2263 = vmatpush1.msra.mxu0 %v491
    %2264 = vmatprep.subr.mxu0 %v496
    %2265 = vmatpush1.msra.mxu0 %v495
    %2266 = vmatprep.subr.mxu0 %v500
    %2267 = vmatpush1.msra.mxu0 %v499
    %2268 = vmatprep.subr.mxu0 %v504
    %2269 = vmatpush1.msra.mxu0 %v503
    %2270 = vmatprep.subr.mxu0 %v508
    %2271 = vmatpush1.msra.mxu0 %v507
    %2272 = vmatprep.subr.mxu0 %v512
    %2273 = vmatpush1.msra.mxu0 %v511
    %2274 = vmatprep.subr.mxu0 %v516
    %2275 = vmatpush1.msra.mxu0 %v515
    %2276 = vmatprep.subr.mxu0 %v520
    %2277 = vmatpush1.msra.mxu0 %v519
    %2278 = vmatprep.subr.mxu0 %v524
    %2279 = vmatpush1.msra.mxu0 %v523
    %2280 = vmatprep.subr.mxu0 %v528
    %2281 = vmatpush1.msra.mxu0 %v527
    %2282 = vmatprep.subr.mxu0 %v532
    %2283 = vmatpush1.msra.mxu0 %v531
    %2284 = vmatprep.subr.mxu0 %v536
    %2285 = vmatpush1.msra.mxu0 %v535
    %2286 = vmatprep.subr.mxu0 %v540
    %2287 = vmatpush1.msra.mxu0 %v539
    %2288 = vmatprep.subr.mxu0 %v544
    %2289 = vmatpush1.msra.mxu0 %v543
    %2290 = vmatprep.subr.mxu0 %v548
    %2291 = vmatpush1.msra.mxu0 %v547
    %2292 = vmatprep.subr.mxu0 %v552
    %2293 = vmatpush1.msra.mxu0 %v551
    %2294 = vmatprep.subr.mxu0 0.0
    %2295 = vmatpush1.msra.mxu0 0.0
    %2296 = vmatprep.subr.mxu0 0.0
    %2297 = vmatpush1.msra.mxu0 0.0
    %2298 = vmatprep.subr.mxu0 0.0
    %2299 = vmatpush1.msra.mxu0 0.0
    %2300 = vmatprep.subr.mxu0 0.0
    %2301 = vmatpush1.msra.mxu0 0.0
    %2302 = vmatprep.subr.mxu0 0.0
    %2303 = vmatpush1.msra.mxu0 0.0
    %2304 = vmatprep.subr.mxu0 0.0
    %2305 = vmatpush1.msra.mxu0 0.0
    %2306 = vmatprep.subr.mxu0 0.0
    %2307 = vmatpush1.msra.mxu0 0.0
    %2308 = vmatprep.subr.mxu0 0.0
    %2309 = vmatpush1.msra.mxu0 0.0
    %2310 = vmatprep.subr.mxu0 0.0
    %2311 = vmatpush1.msra.mxu0 0.0
    %2312 = vmatprep.subr.mxu0 0.0
    %2313 = vmatpush1.msra.mxu0 0.0
    %2314 = vmatprep.subr.mxu0 0.0
    %2315 = vmatpush1.msra.mxu0 0.0
    %2316 = vmatprep.subr.mxu0 0.0
    %2317 = vmatpush1.msra.mxu0 0.0
    %2318 = vmatprep.subr.mxu0 0.0
    %2319 = vmatpush1.msra.mxu0 0.0
    %2320 = vmatprep.subr.mxu0 0.0
    %2321 = vmatpush1.msra.mxu0 0.0
    %2322 = vmatprep.subr.mxu0 0.0
    %2323 = vmatpush1.msra.mxu0 0.0
    %2324 = vmatprep.subr.mxu0 0.0
    %2325 = vmatpush1.msra.mxu0 0.0
    %2326 = vmatprep.mubr.f32.mxu0 0.0
    %2327 = vmatmul.mubr.f32.gmra.mrb[0].mxu0 %v2020
    %v2328 = vpop.f32.mrb[0].mxu0
    %v2329 = vadd.f32 0.0, %v2328
    %v2330 = vpop.f32.mrb[0].mxu0
    %v2331 = vadd.f32 0.0, %v2330
    %2332 = vdwg.mxu0
    %2333 = vmatprep.subr.mxu0 %v426
    %2334 = vmatpush1.msra.mxu0 %v425
    %2335 = vmatprep.subr.mxu0 %v430
    %2336 = vmatpush1.msra.mxu0 %v429
    %2337 = vmatprep.subr.mxu0 %v434
    %2338 = vmatpush1.msra.mxu0 %v433
    %2339 = vmatprep.subr.mxu0 %v438
    %2340 = vmatpush1.msra.mxu0 %v437
    %2341 = vmatprep.subr.mxu0 %v442
    %2342 = vmatpush1.msra.mxu0 %v441
    %2343 = vmatprep.subr.mxu0 %v446
    %2344 = vmatpush1.msra.mxu0 %v445
    %2345 = vmatprep.subr.mxu0 %v450
    %2346 = vmatpush1.msra.mxu0 %v449
    %2347 = vmatprep.subr.mxu0 %v454
    %2348 = vmatpush1.msra.mxu0 %v453
    %2349 = vmatprep.subr.mxu0 %v458
    %2350 = vmatpush1.msra.mxu0 %v457
    %2351 = vmatprep.subr.mxu0 %v462
    %2352 = vmatpush1.msra.mxu0 %v461
    %2353 = vmatprep.subr.mxu0 %v466
    %2354 = vmatpush1.msra.mxu0 %v465
    %2355 = vmatprep.subr.mxu0 %v470
    %2356 = vmatpush1.msra.mxu0 %v469
    %2357 = vmatprep.subr.mxu0 %v474
    %2358 = vmatpush1.msra.mxu0 %v473
    %2359 = vmatprep.subr.mxu0 %v478
    %2360 = vmatpush1.msra.mxu0 %v477
    %2361 = vmatprep.subr.mxu0 %v482
    %2362 = vmatpush1.msra.mxu0 %v481
    %2363 = vmatprep.subr.mxu0 %v486
    %2364 = vmatpush1.msra.mxu0 %v485
    %2365 = vmatprep.subr.mxu0 0.0
    %2366 = vmatpush1.msra.mxu0 0.0
    %2367 = vmatprep.subr.mxu0 0.0
    %2368 = vmatpush1.msra.mxu0 0.0
    %2369 = vmatprep.subr.mxu0 0.0
    %2370 = vmatpush1.msra.mxu0 0.0
    %2371 = vmatprep.subr.mxu0 0.0
    %2372 = vmatpush1.msra.mxu0 0.0
    %2373 = vmatprep.subr.mxu0 0.0
    %2374 = vmatpush1.msra.mxu0 0.0
    %2375 = vmatprep.subr.mxu0 0.0
    %2376 = vmatpush1.msra.mxu0 0.0
    %2377 = vmatprep.subr.mxu0 0.0
    %2378 = vmatpush1.msra.mxu0 0.0
    %2379 = vmatprep.subr.mxu0 0.0
    %2380 = vmatpush1.msra.mxu0 0.0
    %2381 = vmatprep.subr.mxu0 0.0
    %2382 = vmatpush1.msra.mxu0 0.0
    %2383 = vmatprep.subr.mxu0 0.0
    %2384 = vmatpush1.msra.mxu0 0.0
    %2385 = vmatprep.subr.mxu0 0.0
    %2386 = vmatpush1.msra.mxu0 0.0
    %2387 = vmatprep.subr.mxu0 0.0
    %2388 = vmatpush1.msra.mxu0 0.0
    %2389 = vmatprep.subr.mxu0 0.0
    %2390 = vmatpush1.msra.mxu0 0.0
    %2391 = vmatprep.subr.mxu0 0.0
    %2392 = vmatpush1.msra.mxu0 0.0
    %2393 = vmatprep.subr.mxu0 0.0
    %2394 = vmatpush1.msra.mxu0 0.0
    %2395 = vmatprep.subr.mxu0 0.0
    %2396 = vmatpush1.msra.mxu0 0.0
    %2397 = vmatprep.mubr.f32.mxu0 0.0
    %2398 = vmatmul.mubr.f32.gmra.mrb[0].mxu0 %v2190
    %v2399 = vpop.f32.mrb[0].mxu0
    %v2400 = vadd.f32 %v2258, %v2399
    %v2401 = vpop.f32.mrb[0].mxu0
    %v2402 = vadd.f32 %v2260, %v2401
    %2403 = vdwg.mxu0
    %2404 = vmatprep.subr.mxu0 %v428
    %2405 = vmatpush1.msra.mxu0 %v427
    %2406 = vmatprep.subr.mxu0 %v432
    %2407 = vmatpush1.msra.mxu0 %v431
    %2408 = vmatprep.subr.mxu0 %v436
    %2409 = vmatpush1.msra.mxu0 %v435
    %2410 = vmatprep.subr.mxu0 %v440
    %2411 = vmatpush1.msra.mxu0 %v439
    %2412 = vmatprep.subr.mxu0 %v444
    %2413 = vmatpush1.msra.mxu0 %v443
    %2414 = vmatprep.subr.mxu0 %v448
    %2415 = vmatpush1.msra.mxu0 %v447
    %2416 = vmatprep.subr.mxu0 %v452
    %2417 = vmatpush1.msra.mxu0 %v451
    %2418 = vmatprep.subr.mxu0 %v456
    %2419 = vmatpush1.msra.mxu0 %v455
    %2420 = vmatprep.subr.mxu0 %v460
    %2421 = vmatpush1.msra.mxu0 %v459
    %2422 = vmatprep.subr.mxu0 %v464
    %2423 = vmatpush1.msra.mxu0 %v463
    %2424 = vmatprep.subr.mxu0 %v468
    %2425 = vmatpush1.msra.mxu0 %v467
    %2426 = vmatprep.subr.mxu0 %v472
    %2427 = vmatpush1.msra.mxu0 %v471
    %2428 = vmatprep.subr.mxu0 %v476
    %2429 = vmatpush1.msra.mxu0 %v475
    %2430 = vmatprep.subr.mxu0 %v480
    %2431 = vmatpush1.msra.mxu0 %v479
    %2432 = vmatprep.subr.mxu0 %v484
    %2433 = vmatpush1.msra.mxu0 %v483
    %2434 = vmatprep.subr.mxu0 %v488
    %2435 = vmatpush1.msra.mxu0 %v487
    %2436 = vmatprep.subr.mxu0 0.0
    %2437 = vmatpush1.msra.mxu0 0.0
    %2438 = vmatprep.subr.mxu0 0.0
    %2439 = vmatpush1.msra.mxu0 0.0
    %2440 = vmatprep.subr.mxu0 0.0
    %2441 = vmatpush1.msra.mxu0 0.0
    %2442 = vmatprep.subr.mxu0 0.0
    %2443 = vmatpush1.msra.mxu0 0.0
    %2444 = vmatprep.subr.mxu0 0.0
    %2445 = vmatpush1.msra.mxu0 0.0
    %2446 = vmatprep.subr.mxu0 0.0
    %2447 = vmatpush1.msra.mxu0 0.0
    %2448 = vmatprep.subr.mxu0 0.0
    %2449 = vmatpush1.msra.mxu0 0.0
    %2450 = vmatprep.subr.mxu0 0.0
    %2451 = vmatpush1.msra.mxu0 0.0
    %2452 = vmatprep.subr.mxu0 0.0
    %2453 = vmatpush1.msra.mxu0 0.0
    %2454 = vmatprep.subr.mxu0 0.0
    %2455 = vmatpush1.msra.mxu0 0.0
    %2456 = vmatprep.subr.mxu0 0.0
    %2457 = vmatpush1.msra.mxu0 0.0
    %2458 = vmatprep.subr.mxu0 0.0
    %2459 = vmatpush1.msra.mxu0 0.0
    %2460 = vmatprep.subr.mxu0 0.0
    %2461 = vmatpush1.msra.mxu0 0.0
    %2462 = vmatprep.subr.mxu0 0.0
    %2463 = vmatpush1.msra.mxu0 0.0
    %2464 = vmatprep.subr.mxu0 0.0
    %2465 = vmatpush1.msra.mxu0 0.0
    %2466 = vmatprep.subr.mxu0 0.0
    %2467 = vmatpush1.msra.mxu0 0.0
    %2468 = vmatprep.mubr.f32.mxu0 0.0
    %2469 = vmatmul.mubr.f32.gmra.mrb[0].mxu0 %v2190
    %v2470 = vpop.f32.mrb[0].mxu0
    %v2471 = vadd.f32 %v2329, %v2470
    %v2472 = vpop.f32.mrb[0].mxu0
    %v2473 = vadd.f32 %v2331, %v2472
    %2474 = vdwg.mxu0
    %v2475 = vadd.f32 %v2400, %v1012
    %v2476 = vadd.f32 %v2402, %v1016
    %v2477 = vadd.f32 %v2471, %v1020
    %v2478 = vadd.f32 %v2473, %v1024
    %v2479 = vxor.u32 %v2475, 2147483648
    %v2480 = vmul.f32 %v2479, 1.442695
    %v2481 = vpow.pop %v2480
    %v2482 = vadd.f32 %v2481, 1.0
    %v2483 = vrcp.pop %v2482
    %v2484 = vmul.f32 1.0, %v2483
    %v2485 = vxor.u32 %v2476, 2147483648
    %v2486 = vmul.f32 %v2485, 1.442695
    %v2487 = vpow.pop %v2486
    %v2488 = vadd.f32 %v2487, 1.0
    %v2489 = vrcp.pop %v2488
    %v2490 = vmul.f32 1.0, %v2489
    %v2491 = vtanh.pop %v2477
    %v2492 = vxor.u32 %v2478, 2147483648
    %v2493 = vmul.f32 %v2492, 1.442695
    %v2494 = vpow.pop %v2493
    %v2495 = vadd.f32 %v2494, 1.0
    %v2496 = vrcp.pop %v2495
    %v2497 = vmul.f32 1.0, %v2496
    %v2498 = vmul.f32 %v2490, %v2018
    %v2499 = vmul.f32 %v2484, %v2491
    %v2500 = vadd.f32 %v2498, %v2499
    %v2501 = vtanh.pop %v2500
    %v2502 = vmul.f32 %v2497, %v2501
    %2503 = vmatprep.subr.mxu0 %v362
    %2504 = vmatpush1.msra.mxu0 %v361
    %2505 = vmatprep.subr.mxu0 %v366
    %2506 = vmatpush1.msra.mxu0 %v365
    %2507 = vmatprep.subr.mxu0 %v370
    %2508 = vmatpush1.msra.mxu0 %v369
    %2509 = vmatprep.subr.mxu0 %v374
    %2510 = vmatpush1.msra.mxu0 %v373
    %2511 = vmatprep.subr.mxu0 %v378
    %2512 = vmatpush1.msra.mxu0 %v377
    %2513 = vmatprep.subr.mxu0 %v382
    %2514 = vmatpush1.msra.mxu0 %v381
    %2515 = vmatprep.subr.mxu0 %v386
    %2516 = vmatpush1.msra.mxu0 %v385
    %2517 = vmatprep.subr.mxu0 %v390
    %2518 = vmatpush1.msra.mxu0 %v389
    %2519 = vmatprep.subr.mxu0 %v394
    %2520 = vmatpush1.msra.mxu0 %v393
    %2521 = vmatprep.subr.mxu0 %v398
    %2522 = vmatpush1.msra.mxu0 %v397
    %2523 = vmatprep.subr.mxu0 %v402
    %2524 = vmatpush1.msra.mxu0 %v401
    %2525 = vmatprep.subr.mxu0 %v406
    %2526 = vmatpush1.msra.mxu0 %v405
    %2527 = vmatprep.subr.mxu0 %v410
    %2528 = vmatpush1.msra.mxu0 %v409
    %2529 = vmatprep.subr.mxu0 %v414
    %2530 = vmatpush1.msra.mxu0 %v413
    %2531 = vmatprep.subr.mxu0 %v418
    %2532 = vmatpush1.msra.mxu0 %v417
    %2533 = vmatprep.subr.mxu0 %v422
    %2534 = vmatpush1.msra.mxu0 %v421
    %2535 = vmatprep.subr.mxu0 0.0
    %2536 = vmatpush1.msra.mxu0 0.0
    %2537 = vmatprep.subr.mxu0 0.0
    %2538 = vmatpush1.msra.mxu0 0.0
    %2539 = vmatprep.subr.mxu0 0.0
    %2540 = vmatpush1.msra.mxu0 0.0
    %2541 = vmatprep.subr.mxu0 0.0
    %2542 = vmatpush1.msra.mxu0 0.0
    %2543 = vmatprep.subr.mxu0 0.0
    %2544 = vmatpush1.msra.mxu0 0.0
    %2545 = vmatprep.subr.mxu0 0.0
    %2546 = vmatpush1.msra.mxu0 0.0
    %2547 = vmatprep.subr.mxu0 0.0
    %2548 = vmatpush1.msra.mxu0 0.0
    %2549 = vmatprep.subr.mxu0 0.0
    %2550 = vmatpush1.msra.mxu0 0.0
    %2551 = vmatprep.subr.mxu0 0.0
    %2552 = vmatpush1.msra.mxu0 0.0
    %2553 = vmatprep.subr.mxu0 0.0
    %2554 = vmatpush1.msra.mxu0 0.0
    %2555 = vmatprep.subr.mxu0 0.0
    %2556 = vmatpush1.msra.mxu0 0.0
    %2557 = vmatprep.subr.mxu0 0.0
    %2558 = vmatpush1.msra.mxu0 0.0
    %2559 = vmatprep.subr.mxu0 0.0
    %2560 = vmatpush1.msra.mxu0 0.0
    %2561 = vmatprep.subr.mxu0 0.0
    %2562 = vmatpush1.msra.mxu0 0.0
    %2563 = vmatprep.subr.mxu0 0.0
    %2564 = vmatpush1.msra.mxu0 0.0
    %2565 = vmatprep.subr.mxu0 0.0
    %2566 = vmatpush1.msra.mxu0 0.0
    %2567 = vmatprep.mubr.f32.mxu0 0.0
    %2568 = vmatmul.mubr.f32.gmra.mrb[0].mxu0 %v2190
    %v2569 = vpop.f32.mrb[0].mxu0
    %v2570 = vadd.f32 0.0, %v2569
    %v2571 = vpop.f32.mrb[0].mxu0
    %v2572 = vadd.f32 0.0, %v2571
    %2573 = vdwg.mxu0
    %2574 = vmatprep.subr.mxu0 %v364
    %2575 = vmatpush1.msra.mxu0 %v363
    %2576 = vmatprep.subr.mxu0 %v368
    %2577 = vmatpush1.msra.mxu0 %v367
    %2578 = vmatprep.subr.mxu0 %v372
    %2579 = vmatpush1.msra.mxu0 %v371
    %2580 = vmatprep.subr.mxu0 %v376
    %2581 = vmatpush1.msra.mxu0 %v375
    %2582 = vmatprep.subr.mxu0 %v380
    %2583 = vmatpush1.msra.mxu0 %v379
    %2584 = vmatprep.subr.mxu0 %v384
    %2585 = vmatpush1.msra.mxu0 %v383
    %2586 = vmatprep.subr.mxu0 %v388
    %2587 = vmatpush1.msra.mxu0 %v387
    %2588 = vmatprep.subr.mxu0 %v392
    %2589 = vmatpush1.msra.mxu0 %v391
    %2590 = vmatprep.subr.mxu0 %v396
    %2591 = vmatpush1.msra.mxu0 %v395
    %2592 = vmatprep.subr.mxu0 %v400
    %2593 = vmatpush1.msra.mxu0 %v399
    %2594 = vmatprep.subr.mxu0 %v404
    %2595 = vmatpush1.msra.mxu0 %v403
    %2596 = vmatprep.subr.mxu0 %v408
    %2597 = vmatpush1.msra.mxu0 %v407
    %2598 = vmatprep.subr.mxu0 %v412
    %2599 = vmatpush1.msra.mxu0 %v411
    %2600 = vmatprep.subr.mxu0 %v416
    %2601 = vmatpush1.msra.mxu0 %v415
    %2602 = vmatprep.subr.mxu0 %v420
    %2603 = vmatpush1.msra.mxu0 %v419
    %2604 = vmatprep.subr.mxu0 %v424
    %2605 = vmatpush1.msra.mxu0 %v423
    %2606 = vmatprep.subr.mxu0 0.0
    %2607 = vmatpush1.msra.mxu0 0.0
    %2608 = vmatprep.subr.mxu0 0.0
    %2609 = vmatpush1.msra.mxu0 0.0
    %2610 = vmatprep.subr.mxu0 0.0
    %2611 = vmatpush1.msra.mxu0 0.0
    %2612 = vmatprep.subr.mxu0 0.0
    %2613 = vmatpush1.msra.mxu0 0.0
    %2614 = vmatprep.subr.mxu0 0.0
    %2615 = vmatpush1.msra.mxu0 0.0
    %2616 = vmatprep.subr.mxu0 0.0
    %2617 = vmatpush1.msra.mxu0 0.0
    %2618 = vmatprep.subr.mxu0 0.0
    %2619 = vmatpush1.msra.mxu0 0.0
    %2620 = vmatprep.subr.mxu0 0.0
    %2621 = vmatpush1.msra.mxu0 0.0
    %2622 = vmatprep.subr.mxu0 0.0
    %2623 = vmatpush1.msra.mxu0 0.0
    %2624 = vmatprep.subr.mxu0 0.0
    %2625 = vmatpush1.msra.mxu0 0.0
    %2626 = vmatprep.subr.mxu0 0.0
    %2627 = vmatpush1.msra.mxu0 0.0
    %2628 = vmatprep.subr.mxu0 0.0
    %2629 = vmatpush1.msra.mxu0 0.0
    %2630 = vmatprep.subr.mxu0 0.0
    %2631 = vmatpush1.msra.mxu0 0.0
    %2632 = vmatprep.subr.mxu0 0.0
    %2633 = vmatpush1.msra.mxu0 0.0
    %2634 = vmatprep.subr.mxu0 0.0
    %2635 = vmatpush1.msra.mxu0 0.0
    %2636 = vmatprep.subr.mxu0 0.0
    %2637 = vmatpush1.msra.mxu0 0.0
    %2638 = vmatprep.mubr.f32.mxu0 0.0
    %2639 = vmatmul.mubr.f32.gmra.mrb[0].mxu0 %v2190
    %v2640 = vpop.f32.mrb[0].mxu0
    %v2641 = vadd.f32 0.0, %v2640
    %v2642 = vpop.f32.mrb[0].mxu0
    %v2643 = vadd.f32 0.0, %v2642
    %2644 = vdwg.mxu0
    %v2645 = vadd.f32 %v226, %v2570
    %v2646 = vadd.f32 %v228, %v2572
    %v2647 = vadd.f32 %v339, %v2641
    %v2648 = vadd.f32 %v341, %v2643
    %v2649 = vxor.u32 %v2645, 2147483648
    %v2650 = vmul.f32 %v2649, 1.442695
    %v2651 = vpow.pop %v2650
    %v2652 = vadd.f32 %v2651, 1.0
    %v2653 = vrcp.pop %v2652
    %v2654 = vmul.f32 1.0, %v2653
    %v2655 = vxor.u32 %v2646, 2147483648
    %v2656 = vmul.f32 %v2655, 1.442695
    %v2657 = vpow.pop %v2656
    %v2658 = vadd.f32 %v2657, 1.0
    %v2659 = vrcp.pop %v2658
    %v2660 = vmul.f32 1.0, %v2659
    %v2661 = vtanh.pop %v2647
    %v2662 = vxor.u32 %v2648, 2147483648
    %v2663 = vmul.f32 %v2662, 1.442695
    %v2664 = vpow.pop %v2663
    %v2665 = vadd.f32 %v2664, 1.0
    %v2666 = vrcp.pop %v2665
    %v2667 = vmul.f32 1.0, %v2666
    %v2668 = vmul.f32 %v2660, %v2188
    %v2669 = vmul.f32 %v2654, %v2661
    %v2670 = vadd.f32 %v2668, %v2669
    %v2671 = vtanh.pop %v2670
    %v2672 = vmul.f32 %v2667, %v2671
    %2673 = vmatprep.subr.mxu0 %v490
    %2674 = vmatpush1.msra.mxu0 %v489
    %2675 = vmatprep.subr.mxu0 %v494
    %2676 = vmatpush1.msra.mxu0 %v493
    %2677 = vmatprep.subr.mxu0 %v498
    %2678 = vmatpush1.msra.mxu0 %v497
    %2679 = vmatprep.subr.mxu0 %v502
    %2680 = vmatpush1.msra.mxu0 %v501
    %2681 = vmatprep.subr.mxu0 %v506
    %2682 = vmatpush1.msra.mxu0 %v505
    %2683 = vmatprep.subr.mxu0 %v510
    %2684 = vmatpush1.msra.mxu0 %v509
    %2685 = vmatprep.subr.mxu0 %v514
    %2686 = vmatpush1.msra.mxu0 %v513
    %2687 = vmatprep.subr.mxu0 %v518
    %2688 = vmatpush1.msra.mxu0 %v517
    %2689 = vmatprep.subr.mxu0 %v522
    %2690 = vmatpush1.msra.mxu0 %v521
    %2691 = vmatprep.subr.mxu0 %v526
    %2692 = vmatpush1.msra.mxu0 %v525
    %2693 = vmatprep.subr.mxu0 %v530
    %2694 = vmatpush1.msra.mxu0 %v529
    %2695 = vmatprep.subr.mxu0 %v534
    %2696 = vmatpush1.msra.mxu0 %v533
    %2697 = vmatprep.subr.mxu0 %v538
    %2698 = vmatpush1.msra.mxu0 %v537
    %2699 = vmatprep.subr.mxu0 %v542
    %2700 = vmatpush1.msra.mxu0 %v541
    %2701 = vmatprep.subr.mxu0 %v546
    %2702 = vmatpush1.msra.mxu0 %v545
    %2703 = vmatprep.subr.mxu0 %v550
    %2704 = vmatpush1.msra.mxu0 %v549
    %2705 = vmatprep.subr.mxu0 0.0
    %2706 = vmatpush1.msra.mxu0 0.0
    %2707 = vmatprep.subr.mxu0 0.0
    %2708 = vmatpush1.msra.mxu0 0.0
    %2709 = vmatprep.subr.mxu0 0.0
    %2710 = vmatpush1.msra.mxu0 0.0
    %2711 = vmatprep.subr.mxu0 0.0
    %2712 = vmatpush1.msra.mxu0 0.0
    %2713 = vmatprep.subr.mxu0 0.0
    %2714 = vmatpush1.msra.mxu0 0.0
    %2715 = vmatprep.subr.mxu0 0.0
    %2716 = vmatpush1.msra.mxu0 0.0
    %2717 = vmatprep.subr.mxu0 0.0
    %2718 = vmatpush1.msra.mxu0 0.0
    %2719 = vmatprep.subr.mxu0 0.0
    %2720 = vmatpush1.msra.mxu0 0.0
    %2721 = vmatprep.subr.mxu0 0.0
    %2722 = vmatpush1.msra.mxu0 0.0
    %2723 = vmatprep.subr.mxu0 0.0
    %2724 = vmatpush1.msra.mxu0 0.0
    %2725 = vmatprep.subr.mxu0 0.0
    %2726 = vmatpush1.msra.mxu0 0.0
    %2727 = vmatprep.subr.mxu0 0.0
    %2728 = vmatpush1.msra.mxu0 0.0
    %2729 = vmatprep.subr.mxu0 0.0
    %2730 = vmatpush1.msra.mxu0 0.0
    %2731 = vmatprep.subr.mxu0 0.0
    %2732 = vmatpush1.msra.mxu0 0.0
    %2733 = vmatprep.subr.mxu0 0.0
    %2734 = vmatpush1.msra.mxu0 0.0
    %2735 = vmatprep.subr.mxu0 0.0
    %2736 = vmatpush1.msra.mxu0 0.0
    %2737 = vmatprep.mubr.f32.mxu0 0.0
    %2738 = vmatmul.mubr.f32.gmra.mrb[0].mxu0 %v2502
    %v2739 = vpop.f32.mrb[0].mxu0
    %v2740 = vadd.f32 0.0, %v2739
    %v2741 = vpop.f32.mrb[0].mxu0
    %v2742 = vadd.f32 0.0, %v2741
    %2743 = vdwg.mxu0
    %2744 = vmatprep.subr.mxu0 %v492
    %2745 = vmatpush1.msra.mxu0 %v491
    %2746 = vmatprep.subr.mxu0 %v496
    %2747 = vmatpush1.msra.mxu0 %v495
    %2748 = vmatprep.subr.mxu0 %v500
    %2749 = vmatpush1.msra.mxu0 %v499
    %2750 = vmatprep.subr.mxu0 %v504
    %2751 = vmatpush1.msra.mxu0 %v503
    %2752 = vmatprep.subr.mxu0 %v508
    %2753 = vmatpush1.msra.mxu0 %v507
    %2754 = vmatprep.subr.mxu0 %v512
    %2755 = vmatpush1.msra.mxu0 %v511
    %2756 = vmatprep.subr.mxu0 %v516
    %2757 = vmatpush1.msra.mxu0 %v515
    %2758 = vmatprep.subr.mxu0 %v520
    %2759 = vmatpush1.msra.mxu0 %v519
    %2760 = vmatprep.subr.mxu0 %v524
    %2761 = vmatpush1.msra.mxu0 %v523
    %2762 = vmatprep.subr.mxu0 %v528
    %2763 = vmatpush1.msra.mxu0 %v527
    %2764 = vmatprep.subr.mxu0 %v532
    %2765 = vmatpush1.msra.mxu0 %v531
    %2766 = vmatprep.subr.mxu0 %v536
    %2767 = vmatpush1.msra.mxu0 %v535
    %2768 = vmatprep.subr.mxu0 %v540
    %2769 = vmatpush1.msra.mxu0 %v539
    %2770 = vmatprep.subr.mxu0 %v544
    %2771 = vmatpush1.msra.mxu0 %v543
    %2772 = vmatprep.subr.mxu0 %v548
    %2773 = vmatpush1.msra.mxu0 %v547
    %2774 = vmatprep.subr.mxu0 %v552
    %2775 = vmatpush1.msra.mxu0 %v551
    %2776 = vmatprep.subr.mxu0 0.0
    %2777 = vmatpush1.msra.mxu0 0.0
    %2778 = vmatprep.subr.mxu0 0.0
    %2779 = vmatpush1.msra.mxu0 0.0
    %2780 = vmatprep.subr.mxu0 0.0
    %2781 = vmatpush1.msra.mxu0 0.0
    %2782 = vmatprep.subr.mxu0 0.0
    %2783 = vmatpush1.msra.mxu0 0.0
    %2784 = vmatprep.subr.mxu0 0.0
    %2785 = vmatpush1.msra.mxu0 0.0
    %2786 = vmatprep.subr.mxu0 0.0
    %2787 = vmatpush1.msra.mxu0 0.0
    %2788 = vmatprep.subr.mxu0 0.0
    %2789 = vmatpush1.msra.mxu0 0.0
    %2790 = vmatprep.subr.mxu0 0.0
    %2791 = vmatpush1.msra.mxu0 0.0
    %2792 = vmatprep.subr.mxu0 0.0
    %2793 = vmatpush1.msra.mxu0 0.0
    %2794 = vmatprep.subr.mxu0 0.0
    %2795 = vmatpush1.msra.mxu0 0.0
    %2796 = vmatprep.subr.mxu0 0.0
    %2797 = vmatpush1.msra.mxu0 0.0
    %2798 = vmatprep.subr.mxu0 0.0
    %2799 = vmatpush1.msra.mxu0 0.0
    %2800 = vmatprep.subr.mxu0 0.0
    %2801 = vmatpush1.msra.mxu0 0.0
    %2802 = vmatprep.subr.mxu0 0.0
    %2803 = vmatpush1.msra.mxu0 0.0
    %2804 = vmatprep.subr.mxu0 0.0
    %2805 = vmatpush1.msra.mxu0 0.0
    %2806 = vmatprep.subr.mxu0 0.0
    %2807 = vmatpush1.msra.mxu0 0.0
    %2808 = vmatprep.mubr.f32.mxu0 0.0
    %2809 = vmatmul.mubr.f32.gmra.mrb[0].mxu0 %v2502
    %v2810 = vpop.f32.mrb[0].mxu0
    %v2811 = vadd.f32 0.0, %v2810
    %v2812 = vpop.f32.mrb[0].mxu0
    %v2813 = vadd.f32 0.0, %v2812
    %2814 = vdwg.mxu0
    %2815 = vmatprep.subr.mxu0 %v426
    %2816 = vmatpush1.msra.mxu0 %v425
    %2817 = vmatprep.subr.mxu0 %v430
    %2818 = vmatpush1.msra.mxu0 %v429
    %2819 = vmatprep.subr.mxu0 %v434
    %2820 = vmatpush1.msra.mxu0 %v433
    %2821 = vmatprep.subr.mxu0 %v438
    %2822 = vmatpush1.msra.mxu0 %v437
    %2823 = vmatprep.subr.mxu0 %v442
    %2824 = vmatpush1.msra.mxu0 %v441
    %2825 = vmatprep.subr.mxu0 %v446
    %2826 = vmatpush1.msra.mxu0 %v445
    %2827 = vmatprep.subr.mxu0 %v450
    %2828 = vmatpush1.msra.mxu0 %v449
    %2829 = vmatprep.subr.mxu0 %v454
    %2830 = vmatpush1.msra.mxu0 %v453
    %2831 = vmatprep.subr.mxu0 %v458
    %2832 = vmatpush1.msra.mxu0 %v457
    %2833 = vmatprep.subr.mxu0 %v462
    %2834 = vmatpush1.msra.mxu0 %v461
    %2835 = vmatprep.subr.mxu0 %v466
    %2836 = vmatpush1.msra.mxu0 %v465
    %2837 = vmatprep.subr.mxu0 %v470
    %2838 = vmatpush1.msra.mxu0 %v469
    %2839 = vmatprep.subr.mxu0 %v474
    %2840 = vmatpush1.msra.mxu0 %v473
    %2841 = vmatprep.subr.mxu0 %v478
    %2842 = vmatpush1.msra.mxu0 %v477
    %2843 = vmatprep.subr.mxu0 %v482
    %2844 = vmatpush1.msra.mxu0 %v481
    %2845 = vmatprep.subr.mxu0 %v486
    %2846 = vmatpush1.msra.mxu0 %v485
    %2847 = vmatprep.subr.mxu0 0.0
    %2848 = vmatpush1.msra.mxu0 0.0
    %2849 = vmatprep.subr.mxu0 0.0
    %2850 = vmatpush1.msra.mxu0 0.0
    %2851 = vmatprep.subr.mxu0 0.0
    %2852 = vmatpush1.msra.mxu0 0.0
    %2853 = vmatprep.subr.mxu0 0.0
    %2854 = vmatpush1.msra.mxu0 0.0
    %2855 = vmatprep.subr.mxu0 0.0
    %2856 = vmatpush1.msra.mxu0 0.0
    %2857 = vmatprep.subr.mxu0 0.0
    %2858 = vmatpush1.msra.mxu0 0.0
    %2859 = vmatprep.subr.mxu0 0.0
    %2860 = vmatpush1.msra.mxu0 0.0
    %2861 = vmatprep.subr.mxu0 0.0
    %2862 = vmatpush1.msra.mxu0 0.0
    %2863 = vmatprep.subr.mxu0 0.0
    %2864 = vmatpush1.msra.mxu0 0.0
    %2865 = vmatprep.subr.mxu0 0.0
    %2866 = vmatpush1.msra.mxu0 0.0
    %2867 = vmatprep.subr.mxu0 0.0
    %2868 = vmatpush1.msra.mxu0 0.0
    %2869 = vmatprep.subr.mxu0 0.0
    %2870 = vmatpush1.msra.mxu0 0.0
    %2871 = vmatprep.subr.mxu0 0.0
    %2872 = vmatpush1.msra.mxu0 0.0
    %2873 = vmatprep.subr.mxu0 0.0
    %2874 = vmatpush1.msra.mxu0 0.0
    %2875 = vmatprep.subr.mxu0 0.0
    %2876 = vmatpush1.msra.mxu0 0.0
    %2877 = vmatprep.subr.mxu0 0.0
    %2878 = vmatpush1.msra.mxu0 0.0
    %2879 = vmatprep.mubr.f32.mxu0 0.0
    %2880 = vmatmul.mubr.f32.gmra.mrb[0].mxu0 %v2672
    %v2881 = vpop.f32.mrb[0].mxu0
    %v2882 = vadd.f32 %v2740, %v2881
    %v2883 = vpop.f32.mrb[0].mxu0
    %v2884 = vadd.f32 %v2742, %v2883
    %2885 = vdwg.mxu0
    %2886 = vmatprep.subr.mxu0 %v428
    %2887 = vmatpush1.msra.mxu0 %v427
    %2888 = vmatprep.subr.mxu0 %v432
    %2889 = vmatpush1.msra.mxu0 %v431
    %2890 = vmatprep.subr.mxu0 %v436
    %2891 = vmatpush1.msra.mxu0 %v435
    %2892 = vmatprep.subr.mxu0 %v440
    %2893 = vmatpush1.msra.mxu0 %v439
    %2894 = vmatprep.subr.mxu0 %v444
    %2895 = vmatpush1.msra.mxu0 %v443
    %2896 = vmatprep.subr.mxu0 %v448
    %2897 = vmatpush1.msra.mxu0 %v447
    %2898 = vmatprep.subr.mxu0 %v452
    %2899 = vmatpush1.msra.mxu0 %v451
    %2900 = vmatprep.subr.mxu0 %v456
    %2901 = vmatpush1.msra.mxu0 %v455
    %2902 = vmatprep.subr.mxu0 %v460
    %2903 = vmatpush1.msra.mxu0 %v459
    %2904 = vmatprep.subr.mxu0 %v464
    %2905 = vmatpush1.msra.mxu0 %v463
    %2906 = vmatprep.subr.mxu0 %v468
    %2907 = vmatpush1.msra.mxu0 %v467
    %2908 = vmatprep.subr.mxu0 %v472
    %2909 = vmatpush1.msra.mxu0 %v471
    %2910 = vmatprep.subr.mxu0 %v476
    %2911 = vmatpush1.msra.mxu0 %v475
    %2912 = vmatprep.subr.mxu0 %v480
    %2913 = vmatpush1.msra.mxu0 %v479
    %2914 = vmatprep.subr.mxu0 %v484
    %2915 = vmatpush1.msra.mxu0 %v483
    %2916 = vmatprep.subr.mxu0 %v488
    %2917 = vmatpush1.msra.mxu0 %v487
    %2918 = vmatprep.subr.mxu0 0.0
    %2919 = vmatpush1.msra.mxu0 0.0
    %2920 = vmatprep.subr.mxu0 0.0
    %2921 = vmatpush1.msra.mxu0 0.0
    %2922 = vmatprep.subr.mxu0 0.0
    %2923 = vmatpush1.msra.mxu0 0.0
    %2924 = vmatprep.subr.mxu0 0.0
    %2925 = vmatpush1.msra.mxu0 0.0
    %2926 = vmatprep.subr.mxu0 0.0
    %2927 = vmatpush1.msra.mxu0 0.0
    %2928 = vmatprep.subr.mxu0 0.0
    %2929 = vmatpush1.msra.mxu0 0.0
    %2930 = vmatprep.subr.mxu0 0.0
    %2931 = vmatpush1.msra.mxu0 0.0
    %2932 = vmatprep.subr.mxu0 0.0
    %2933 = vmatpush1.msra.mxu0 0.0
    %2934 = vmatprep.subr.mxu0 0.0
    %2935 = vmatpush1.msra.mxu0 0.0
    %2936 = vmatprep.subr.mxu0 0.0
    %2937 = vmatpush1.msra.mxu0 0.0
    %2938 = vmatprep.subr.mxu0 0.0
    %2939 = vmatpush1.msra.mxu0 0.0
    %2940 = vmatprep.subr.mxu0 0.0
    %2941 = vmatpush1.msra.mxu0 0.0
    %2942 = vmatprep.subr.mxu0 0.0
    %2943 = vmatpush1.msra.mxu0 0.0
    %2944 = vmatprep.subr.mxu0 0.0
    %2945 = vmatpush1.msra.mxu0 0.0
    %2946 = vmatprep.subr.mxu0 0.0
    %2947 = vmatpush1.msra.mxu0 0.0
    %2948 = vmatprep.subr.mxu0 0.0
    %2949 = vmatpush1.msra.mxu0 0.0
    %2950 = vmatprep.mubr.f32.mxu0 0.0
    %2951 = vmatmul.mubr.f32.gmra.mrb[0].mxu0 %v2672
    %v2952 = vpop.f32.mrb[0].mxu0
    %v2953 = vadd.f32 %v2811, %v2952
    %v2954 = vpop.f32.mrb[0].mxu0
    %v2955 = vadd.f32 %v2813, %v2954
    %2956 = vdwg.mxu0
    %v2957 = vadd.f32 %v2882, %v1012
    %v2958 = vadd.f32 %v2884, %v1016
    %v2959 = vadd.f32 %v2953, %v1020
    %v2960 = vadd.f32 %v2955, %v1024
    %v2961 = vxor.u32 %v2957, 2147483648
    %v2962 = vmul.f32 %v2961, 1.442695
    %v2963 = vpow.pop %v2962
    %v2964 = vadd.f32 %v2963, 1.0
    %v2965 = vrcp.pop %v2964
    %v2966 = vmul.f32 1.0, %v2965
    %v2967 = vxor.u32 %v2958, 2147483648
    %v2968 = vmul.f32 %v2967, 1.442695
    %v2969 = vpow.pop %v2968
    %v2970 = vadd.f32 %v2969, 1.0
    %v2971 = vrcp.pop %v2970
    %v2972 = vmul.f32 1.0, %v2971
    %v2973 = vtanh.pop %v2959
    %v2974 = vxor.u32 %v2960, 2147483648
    %v2975 = vmul.f32 %v2974, 1.442695
    %v2976 = vpow.pop %v2975
    %v2977 = vadd.f32 %v2976, 1.0
    %v2978 = vrcp.pop %v2977
    %v2979 = vmul.f32 1.0, %v2978
    %v2980 = vmul.f32 %v2972, %v2500
    %v2981 = vmul.f32 %v2966, %v2973
    %v2982 = vadd.f32 %v2980, %v2981
    %v2983 = vtanh.pop %v2982
    %v2984 = vmul.f32 %v2979, %v2983
    %2985 = vmatprep.subr.mxu0 %v362
    %2986 = vmatpush1.msra.mxu0 %v361
    %2987 = vmatprep.subr.mxu0 %v366
    %2988 = vmatpush1.msra.mxu0 %v365
    %2989 = vmatprep.subr.mxu0 %v370
    %2990 = vmatpush1.msra.mxu0 %v369
    %2991 = vmatprep.subr.mxu0 %v374
    %2992 = vmatpush1.msra.mxu0 %v373
    %2993 = vmatprep.subr.mxu0 %v378
    %2994 = vmatpush1.msra.mxu0 %v377
    %2995 = vmatprep.subr.mxu0 %v382
    %2996 = vmatpush1.msra.mxu0 %v381
    %2997 = vmatprep.subr.mxu0 %v386
    %2998 = vmatpush1.msra.mxu0 %v385
    %2999 = vmatprep.subr.mxu0 %v390
    %3000 = vmatpush1.msra.mxu0 %v389
    %3001 = vmatprep.subr.mxu0 %v394
    %3002 = vmatpush1.msra.mxu0 %v393
    %3003 = vmatprep.subr.mxu0 %v398
    %3004 = vmatpush1.msra.mxu0 %v397
    %3005 = vmatprep.subr.mxu0 %v402
    %3006 = vmatpush1.msra.mxu0 %v401
    %3007 = vmatprep.subr.mxu0 %v406
    %3008 = vmatpush1.msra.mxu0 %v405
    %3009 = vmatprep.subr.mxu0 %v410
    %3010 = vmatpush1.msra.mxu0 %v409
    %3011 = vmatprep.subr.mxu0 %v414
    %3012 = vmatpush1.msra.mxu0 %v413
    %3013 = vmatprep.subr.mxu0 %v418
    %3014 = vmatpush1.msra.mxu0 %v417
    %3015 = vmatprep.subr.mxu0 %v422
    %3016 = vmatpush1.msra.mxu0 %v421
    %3017 = vmatprep.subr.mxu0 0.0
    %3018 = vmatpush1.msra.mxu0 0.0
    %3019 = vmatprep.subr.mxu0 0.0
    %3020 = vmatpush1.msra.mxu0 0.0
    %3021 = vmatprep.subr.mxu0 0.0
    %3022 = vmatpush1.msra.mxu0 0.0
    %3023 = vmatprep.subr.mxu0 0.0
    %3024 = vmatpush1.msra.mxu0 0.0
    %3025 = vmatprep.subr.mxu0 0.0
    %3026 = vmatpush1.msra.mxu0 0.0
    %3027 = vmatprep.subr.mxu0 0.0
    %3028 = vmatpush1.msra.mxu0 0.0
    %3029 = vmatprep.subr.mxu0 0.0
    %3030 = vmatpush1.msra.mxu0 0.0
    %3031 = vmatprep.subr.mxu0 0.0
    %3032 = vmatpush1.msra.mxu0 0.0
    %3033 = vmatprep.subr.mxu0 0.0
    %3034 = vmatpush1.msra.mxu0 0.0
    %3035 = vmatprep.subr.mxu0 0.0
    %3036 = vmatpush1.msra.mxu0 0.0
    %3037 = vmatprep.subr.mxu0 0.0
    %3038 = vmatpush1.msra.mxu0 0.0
    %3039 = vmatprep.subr.mxu0 0.0
    %3040 = vmatpush1.msra.mxu0 0.0
    %3041 = vmatprep.subr.mxu0 0.0
    %3042 = vmatpush1.msra.mxu0 0.0
    %3043 = vmatprep.subr.mxu0 0.0
    %3044 = vmatpush1.msra.mxu0 0.0
    %3045 = vmatprep.subr.mxu0 0.0
    %3046 = vmatpush1.msra.mxu0 0.0
    %3047 = vmatprep.subr.mxu0 0.0
    %3048 = vmatpush1.msra.mxu0 0.0
    %3049 = vmatprep.mubr.f32.mxu0 0.0
    %3050 = vmatmul.mubr.f32.gmra.mrb[0].mxu0 %v2672
    %v3051 = vpop.f32.mrb[0].mxu0
    %v3052 = vadd.f32 0.0, %v3051
    %v3053 = vpop.f32.mrb[0].mxu0
    %v3054 = vadd.f32 0.0, %v3053
    %3055 = vdwg.mxu0
    %3056 = vmatprep.subr.mxu0 %v364
    %3057 = vmatpush1.msra.mxu0 %v363
    %3058 = vmatprep.subr.mxu0 %v368
    %3059 = vmatpush1.msra.mxu0 %v367
    %3060 = vmatprep.subr.mxu0 %v372
    %3061 = vmatpush1.msra.mxu0 %v371
    %3062 = vmatprep.subr.mxu0 %v376
    %3063 = vmatpush1.msra.mxu0 %v375
    %3064 = vmatprep.subr.mxu0 %v380
    %3065 = vmatpush1.msra.mxu0 %v379
    %3066 = vmatprep.subr.mxu0 %v384
    %3067 = vmatpush1.msra.mxu0 %v383
    %3068 = vmatprep.subr.mxu0 %v388
    %3069 = vmatpush1.msra.mxu0 %v387
    %3070 = vmatprep.subr.mxu0 %v392
    %3071 = vmatpush1.msra.mxu0 %v391
    %3072 = vmatprep.subr.mxu0 %v396
    %3073 = vmatpush1.msra.mxu0 %v395
    %3074 = vmatprep.subr.mxu0 %v400
    %3075 = vmatpush1.msra.mxu0 %v399
    %3076 = vmatprep.subr.mxu0 %v404
    %3077 = vmatpush1.msra.mxu0 %v403
    %3078 = vmatprep.subr.mxu0 %v408
    %3079 = vmatpush1.msra.mxu0 %v407
    %3080 = vmatprep.subr.mxu0 %v412
    %3081 = vmatpush1.msra.mxu0 %v411
    %3082 = vmatprep.subr.mxu0 %v416
    %3083 = vmatpush1.msra.mxu0 %v415
    %3084 = vmatprep.subr.mxu0 %v420
    %3085 = vmatpush1.msra.mxu0 %v419
    %3086 = vmatprep.subr.mxu0 %v424
    %3087 = vmatpush1.msra.mxu0 %v423
    %3088 = vmatprep.subr.mxu0 0.0
    %3089 = vmatpush1.msra.mxu0 0.0
    %3090 = vmatprep.subr.mxu0 0.0
    %3091 = vmatpush1.msra.mxu0 0.0
    %3092 = vmatprep.subr.mxu0 0.0
    %3093 = vmatpush1.msra.mxu0 0.0
    %3094 = vmatprep.subr.mxu0 0.0
    %3095 = vmatpush1.msra.mxu0 0.0
    %3096 = vmatprep.subr.mxu0 0.0
    %3097 = vmatpush1.msra.mxu0 0.0
    %3098 = vmatprep.subr.mxu0 0.0
    %3099 = vmatpush1.msra.mxu0 0.0
    %3100 = vmatprep.subr.mxu0 0.0
    %3101 = vmatpush1.msra.mxu0 0.0
    %3102 = vmatprep.subr.mxu0 0.0
    %3103 = vmatpush1.msra.mxu0 0.0
    %3104 = vmatprep.subr.mxu0 0.0
    %3105 = vmatpush1.msra.mxu0 0.0
    %3106 = vmatprep.subr.mxu0 0.0
    %3107 = vmatpush1.msra.mxu0 0.0
    %3108 = vmatprep.subr.mxu0 0.0
    %3109 = vmatpush1.msra.mxu0 0.0
    %3110 = vmatprep.subr.mxu0 0.0
    %3111 = vmatpush1.msra.mxu0 0.0
    %3112 = vmatprep.subr.mxu0 0.0
    %3113 = vmatpush1.msra.mxu0 0.0
    %3114 = vmatprep.subr.mxu0 0.0
    %3115 = vmatpush1.msra.mxu0 0.0
    %3116 = vmatprep.subr.mxu0 0.0
    %3117 = vmatpush1.msra.mxu0 0.0
    %3118 = vmatprep.subr.mxu0 0.0
    %3119 = vmatpush1.msra.mxu0 0.0
    %3120 = vmatprep.mubr.f32.mxu0 0.0
    %3121 = vmatmul.mubr.f32.gmra.mrb[0].mxu0 %v2672
    %v3122 = vpop.f32.mrb[0].mxu0
    %v3123 = vadd.f32 0.0, %v3122
    %v3124 = vpop.f32.mrb[0].mxu0
    %v3125 = vadd.f32 0.0, %v3124
    %3126 = vdwg.mxu0
    %v3127 = vadd.f32 %v232, %v3052
    %v3128 = vadd.f32 %v234, %v3054
    %v3129 = vadd.f32 %v345, %v3123
    %v3130 = vadd.f32 %v347, %v3125
    %v3131 = vxor.u32 %v3127, 2147483648
    %v3132 = vmul.f32 %v3131, 1.442695
    %v3133 = vpow.pop %v3132
    %v3134 = vadd.f32 %v3133, 1.0
    %v3135 = vrcp.pop %v3134
    %v3136 = vmul.f32 1.0, %v3135
    %v3137 = vxor.u32 %v3128, 2147483648
    %v3138 = vmul.f32 %v3137, 1.442695
    %v3139 = vpow.pop %v3138
    %v3140 = vadd.f32 %v3139, 1.0
    %v3141 = vrcp.pop %v3140
    %v3142 = vmul.f32 1.0, %v3141
    %v3143 = vtanh.pop %v3129
    %v3144 = vxor.u32 %v3130, 2147483648
    %v3145 = vmul.f32 %v3144, 1.442695
    %v3146 = vpow.pop %v3145
    %v3147 = vadd.f32 %v3146, 1.0
    %v3148 = vrcp.pop %v3147
    %v3149 = vmul.f32 1.0, %v3148
    %v3150 = vmul.f32 %v3142, %v2670
    %v3151 = vmul.f32 %v3136, %v3143
    %v3152 = vadd.f32 %v3150, %v3151
    %v3153 = vtanh.pop %v3152
    %v3154 = vmul.f32 %v3149, %v3153
    %3155 = vmatprep.subr.mxu0 %v490
    %3156 = vmatpush1.msra.mxu0 %v489
    %3157 = vmatprep.subr.mxu0 %v494
    %3158 = vmatpush1.msra.mxu0 %v493
    %3159 = vmatprep.subr.mxu0 %v498
    %3160 = vmatpush1.msra.mxu0 %v497
    %3161 = vmatprep.subr.mxu0 %v502
    %3162 = vmatpush1.msra.mxu0 %v501
    %3163 = vmatprep.subr.mxu0 %v506
    %3164 = vmatpush1.msra.mxu0 %v505
    %3165 = vmatprep.subr.mxu0 %v510
    %3166 = vmatpush1.msra.mxu0 %v509
    %3167 = vmatprep.subr.mxu0 %v514
    %3168 = vmatpush1.msra.mxu0 %v513
    %3169 = vmatprep.subr.mxu0 %v518
    %3170 = vmatpush1.msra.mxu0 %v517
    %3171 = vmatprep.subr.mxu0 %v522
    %3172 = vmatpush1.msra.mxu0 %v521
    %3173 = vmatprep.subr.mxu0 %v526
    %3174 = vmatpush1.msra.mxu0 %v525
    %3175 = vmatprep.subr.mxu0 %v530
    %3176 = vmatpush1.msra.mxu0 %v529
    %3177 = vmatprep.subr.mxu0 %v534
    %3178 = vmatpush1.msra.mxu0 %v533
    %3179 = vmatprep.subr.mxu0 %v538
    %3180 = vmatpush1.msra.mxu0 %v537
    %3181 = vmatprep.subr.mxu0 %v542
    %3182 = vmatpush1.msra.mxu0 %v541
    %3183 = vmatprep.subr.mxu0 %v546
    %3184 = vmatpush1.msra.mxu0 %v545
    %3185 = vmatprep.subr.mxu0 %v550
    %3186 = vmatpush1.msra.mxu0 %v549
    %3187 = vmatprep.subr.mxu0 0.0
    %3188 = vmatpush1.msra.mxu0 0.0
    %3189 = vmatprep.subr.mxu0 0.0
    %3190 = vmatpush1.msra.mxu0 0.0
    %3191 = vmatprep.subr.mxu0 0.0
    %3192 = vmatpush1.msra.mxu0 0.0
    %3193 = vmatprep.subr.mxu0 0.0
    %3194 = vmatpush1.msra.mxu0 0.0
    %3195 = vmatprep.subr.mxu0 0.0
    %3196 = vmatpush1.msra.mxu0 0.0
    %3197 = vmatprep.subr.mxu0 0.0
    %3198 = vmatpush1.msra.mxu0 0.0
    %3199 = vmatprep.subr.mxu0 0.0
    %3200 = vmatpush1.msra.mxu0 0.0
    %3201 = vmatprep.subr.mxu0 0.0
    %3202 = vmatpush1.msra.mxu0 0.0
    %3203 = vmatprep.subr.mxu0 0.0
    %3204 = vmatpush1.msra.mxu0 0.0
    %3205 = vmatprep.subr.mxu0 0.0
    %3206 = vmatpush1.msra.mxu0 0.0
    %3207 = vmatprep.subr.mxu0 0.0
    %3208 = vmatpush1.msra.mxu0 0.0
    %3209 = vmatprep.subr.mxu0 0.0
    %3210 = vmatpush1.msra.mxu0 0.0
    %3211 = vmatprep.subr.mxu0 0.0
    %3212 = vmatpush1.msra.mxu0 0.0
    %3213 = vmatprep.subr.mxu0 0.0
    %3214 = vmatpush1.msra.mxu0 0.0
    %3215 = vmatprep.subr.mxu0 0.0
    %3216 = vmatpush1.msra.mxu0 0.0
    %3217 = vmatprep.subr.mxu0 0.0
    %3218 = vmatpush1.msra.mxu0 0.0
    %3219 = vmatprep.mubr.f32.mxu0 0.0
    %3220 = vmatmul.mubr.f32.gmra.mrb[0].mxu0 %v2984
    %v3221 = vpop.f32.mrb[0].mxu0
    %v3222 = vadd.f32 0.0, %v3221
    %v3223 = vpop.f32.mrb[0].mxu0
    %v3224 = vadd.f32 0.0, %v3223
    %3225 = vdwg.mxu0
    %3226 = vmatprep.subr.mxu0 %v492
    %3227 = vmatpush1.msra.mxu0 %v491
    %3228 = vmatprep.subr.mxu0 %v496
    %3229 = vmatpush1.msra.mxu0 %v495
    %3230 = vmatprep.subr.mxu0 %v500
    %3231 = vmatpush1.msra.mxu0 %v499
    %3232 = vmatprep.subr.mxu0 %v504
    %3233 = vmatpush1.msra.mxu0 %v503
    %3234 = vmatprep.subr.mxu0 %v508
    %3235 = vmatpush1.msra.mxu0 %v507
    %3236 = vmatprep.subr.mxu0 %v512
    %3237 = vmatpush1.msra.mxu0 %v511
    %3238 = vmatprep.subr.mxu0 %v516
    %3239 = vmatpush1.msra.mxu0 %v515
    %3240 = vmatprep.subr.mxu0 %v520
    %3241 = vmatpush1.msra.mxu0 %v519
    %3242 = vmatprep.subr.mxu0 %v524
    %3243 = vmatpush1.msra.mxu0 %v523
    %3244 = vmatprep.subr.mxu0 %v528
    %3245 = vmatpush1.msra.mxu0 %v527
    %3246 = vmatprep.subr.mxu0 %v532
    %3247 = vmatpush1.msra.mxu0 %v531
    %3248 = vmatprep.subr.mxu0 %v536
    %3249 = vmatpush1.msra.mxu0 %v535
    %3250 = vmatprep.subr.mxu0 %v540
    %3251 = vmatpush1.msra.mxu0 %v539
    %3252 = vmatprep.subr.mxu0 %v544
    %3253 = vmatpush1.msra.mxu0 %v543
    %3254 = vmatprep.subr.mxu0 %v548
    %3255 = vmatpush1.msra.mxu0 %v547
    %3256 = vmatprep.subr.mxu0 %v552
    %3257 = vmatpush1.msra.mxu0 %v551
    %3258 = vmatprep.subr.mxu0 0.0
    %3259 = vmatpush1.msra.mxu0 0.0
    %3260 = vmatprep.subr.mxu0 0.0
    %3261 = vmatpush1.msra.mxu0 0.0
    %3262 = vmatprep.subr.mxu0 0.0
    %3263 = vmatpush1.msra.mxu0 0.0
    %3264 = vmatprep.subr.mxu0 0.0
    %3265 = vmatpush1.msra.mxu0 0.0
    %3266 = vmatprep.subr.mxu0 0.0
    %3267 = vmatpush1.msra.mxu0 0.0
    %3268 = vmatprep.subr.mxu0 0.0
    %3269 = vmatpush1.msra.mxu0 0.0
    %3270 = vmatprep.subr.mxu0 0.0
    %3271 = vmatpush1.msra.mxu0 0.0
    %3272 = vmatprep.subr.mxu0 0.0
    %3273 = vmatpush1.msra.mxu0 0.0
    %3274 = vmatprep.subr.mxu0 0.0
    %3275 = vmatpush1.msra.mxu0 0.0
    %3276 = vmatprep.subr.mxu0 0.0
    %3277 = vmatpush1.msra.mxu0 0.0
    %3278 = vmatprep.subr.mxu0 0.0
    %3279 = vmatpush1.msra.mxu0 0.0
    %3280 = vmatprep.subr.mxu0 0.0
    %3281 = vmatpush1.msra.mxu0 0.0
    %3282 = vmatprep.subr.mxu0 0.0
    %3283 = vmatpush1.msra.mxu0 0.0
    %3284 = vmatprep.subr.mxu0 0.0
    %3285 = vmatpush1.msra.mxu0 0.0
    %3286 = vmatprep.subr.mxu0 0.0
    %3287 = vmatpush1.msra.mxu0 0.0
    %3288 = vmatprep.subr.mxu0 0.0
    %3289 = vmatpush1.msra.mxu0 0.0
    %3290 = vmatprep.mubr.f32.mxu0 0.0
    %3291 = vmatmul.mubr.f32.gmra.mrb[0].mxu0 %v2984
    %v3292 = vpop.f32.mrb[0].mxu0
    %v3293 = vadd.f32 0.0, %v3292
    %v3294 = vpop.f32.mrb[0].mxu0
    %v3295 = vadd.f32 0.0, %v3294
    %3296 = vdwg.mxu0
    %3297 = vmatprep.subr.mxu0 %v426
    %3298 = vmatpush1.msra.mxu0 %v425
    %3299 = vmatprep.subr.mxu0 %v430
    %3300 = vmatpush1.msra.mxu0 %v429
    %3301 = vmatprep.subr.mxu0 %v434
    %3302 = vmatpush1.msra.mxu0 %v433
    %3303 = vmatprep.subr.mxu0 %v438
    %3304 = vmatpush1.msra.mxu0 %v437
    %3305 = vmatprep.subr.mxu0 %v442
    %3306 = vmatpush1.msra.mxu0 %v441
    %3307 = vmatprep.subr.mxu0 %v446
    %3308 = vmatpush1.msra.mxu0 %v445
    %3309 = vmatprep.subr.mxu0 %v450
    %3310 = vmatpush1.msra.mxu0 %v449
    %3311 = vmatprep.subr.mxu0 %v454
    %3312 = vmatpush1.msra.mxu0 %v453
    %3313 = vmatprep.subr.mxu0 %v458
    %3314 = vmatpush1.msra.mxu0 %v457
    %3315 = vmatprep.subr.mxu0 %v462
    %3316 = vmatpush1.msra.mxu0 %v461
    %3317 = vmatprep.subr.mxu0 %v466
    %3318 = vmatpush1.msra.mxu0 %v465
    %3319 = vmatprep.subr.mxu0 %v470
    %3320 = vmatpush1.msra.mxu0 %v469
    %3321 = vmatprep.subr.mxu0 %v474
    %3322 = vmatpush1.msra.mxu0 %v473
    %3323 = vmatprep.subr.mxu0 %v478
    %3324 = vmatpush1.msra.mxu0 %v477
    %3325 = vmatprep.subr.mxu0 %v482
    %3326 = vmatpush1.msra.mxu0 %v481
    %3327 = vmatprep.subr.mxu0 %v486
    %3328 = vmatpush1.msra.mxu0 %v485
    %3329 = vmatprep.subr.mxu0 0.0
    %3330 = vmatpush1.msra.mxu0 0.0
    %3331 = vmatprep.subr.mxu0 0.0
    %3332 = vmatpush1.msra.mxu0 0.0
    %3333 = vmatprep.subr.mxu0 0.0
    %3334 = vmatpush1.msra.mxu0 0.0
    %3335 = vmatprep.subr.mxu0 0.0
    %3336 = vmatpush1.msra.mxu0 0.0
    %3337 = vmatprep.subr.mxu0 0.0
    %3338 = vmatpush1.msra.mxu0 0.0
    %3339 = vmatprep.subr.mxu0 0.0
    %3340 = vmatpush1.msra.mxu0 0.0
    %3341 = vmatprep.subr.mxu0 0.0
    %3342 = vmatpush1.msra.mxu0 0.0
    %3343 = vmatprep.subr.mxu0 0.0
    %3344 = vmatpush1.msra.mxu0 0.0
    %3345 = vmatprep.subr.mxu0 0.0
    %3346 = vmatpush1.msra.mxu0 0.0
    %3347 = vmatprep.subr.mxu0 0.0
    %3348 = vmatpush1.msra.mxu0 0.0
    %3349 = vmatprep.subr.mxu0 0.0
    %3350 = vmatpush1.msra.mxu0 0.0
    %3351 = vmatprep.subr.mxu0 0.0
    %3352 = vmatpush1.msra.mxu0 0.0
    %3353 = vmatprep.subr.mxu0 0.0
    %3354 = vmatpush1.msra.mxu0 0.0
    %3355 = vmatprep.subr.mxu0 0.0
    %3356 = vmatpush1.msra.mxu0 0.0
    %3357 = vmatprep.subr.mxu0 0.0
    %3358 = vmatpush1.msra.mxu0 0.0
    %3359 = vmatprep.subr.mxu0 0.0
    %3360 = vmatpush1.msra.mxu0 0.0
    %3361 = vmatprep.mubr.f32.mxu0 0.0
    %3362 = vmatmul.mubr.f32.gmra.mrb[0].mxu0 %v3154
    %v3363 = vpop.f32.mrb[0].mxu0
    %v3364 = vadd.f32 %v3222, %v3363
    %v3365 = vpop.f32.mrb[0].mxu0
    %v3366 = vadd.f32 %v3224, %v3365
    %3367 = vdwg.mxu0
    %3368 = vmatprep.subr.mxu0 %v428
    %3369 = vmatpush1.msra.mxu0 %v427
    %3370 = vmatprep.subr.mxu0 %v432
    %3371 = vmatpush1.msra.mxu0 %v431
    %3372 = vmatprep.subr.mxu0 %v436
    %3373 = vmatpush1.msra.mxu0 %v435
    %3374 = vmatprep.subr.mxu0 %v440
    %3375 = vmatpush1.msra.mxu0 %v439
    %3376 = vmatprep.subr.mxu0 %v444
    %3377 = vmatpush1.msra.mxu0 %v443
    %3378 = vmatprep.subr.mxu0 %v448
    %3379 = vmatpush1.msra.mxu0 %v447
    %3380 = vmatprep.subr.mxu0 %v452
    %3381 = vmatpush1.msra.mxu0 %v451
    %3382 = vmatprep.subr.mxu0 %v456
    %3383 = vmatpush1.msra.mxu0 %v455
    %3384 = vmatprep.subr.mxu0 %v460
    %3385 = vmatpush1.msra.mxu0 %v459
    %3386 = vmatprep.subr.mxu0 %v464
    %3387 = vmatpush1.msra.mxu0 %v463
    %3388 = vmatprep.subr.mxu0 %v468
    %3389 = vmatpush1.msra.mxu0 %v467
    %3390 = vmatprep.subr.mxu0 %v472
    %3391 = vmatpush1.msra.mxu0 %v471
    %3392 = vmatprep.subr.mxu0 %v476
    %3393 = vmatpush1.msra.mxu0 %v475
    %3394 = vmatprep.subr.mxu0 %v480
    %3395 = vmatpush1.msra.mxu0 %v479
    %3396 = vmatprep.subr.mxu0 %v484
    %3397 = vmatpush1.msra.mxu0 %v483
    %3398 = vmatprep.subr.mxu0 %v488
    %3399 = vmatpush1.msra.mxu0 %v487
    %3400 = vmatprep.subr.mxu0 0.0
    %3401 = vmatpush1.msra.mxu0 0.0
    %3402 = vmatprep.subr.mxu0 0.0
    %3403 = vmatpush1.msra.mxu0 0.0
    %3404 = vmatprep.subr.mxu0 0.0
    %3405 = vmatpush1.msra.mxu0 0.0
    %3406 = vmatprep.subr.mxu0 0.0
    %3407 = vmatpush1.msra.mxu0 0.0
    %3408 = vmatprep.subr.mxu0 0.0
    %3409 = vmatpush1.msra.mxu0 0.0
    %3410 = vmatprep.subr.mxu0 0.0
    %3411 = vmatpush1.msra.mxu0 0.0
    %3412 = vmatprep.subr.mxu0 0.0
    %3413 = vmatpush1.msra.mxu0 0.0
    %3414 = vmatprep.subr.mxu0 0.0
    %3415 = vmatpush1.msra.mxu0 0.0
    %3416 = vmatprep.subr.mxu0 0.0
    %3417 = vmatpush1.msra.mxu0 0.0
    %3418 = vmatprep.subr.mxu0 0.0
    %3419 = vmatpush1.msra.mxu0 0.0
    %3420 = vmatprep.subr.mxu0 0.0
    %3421 = vmatpush1.msra.mxu0 0.0
    %3422 = vmatprep.subr.mxu0 0.0
    %3423 = vmatpush1.msra.mxu0 0.0
    %3424 = vmatprep.subr.mxu0 0.0
    %3425 = vmatpush1.msra.mxu0 0.0
    %3426 = vmatprep.subr.mxu0 0.0
    %3427 = vmatpush1.msra.mxu0 0.0
    %3428 = vmatprep.subr.mxu0 0.0
    %3429 = vmatpush1.msra.mxu0 0.0
    %3430 = vmatprep.subr.mxu0 0.0
    %3431 = vmatpush1.msra.mxu0 0.0
    %3432 = vmatprep.mubr.f32.mxu0 0.0
    %3433 = vmatmul.mubr.f32.gmra.mrb[0].mxu0 %v3154
    %v3434 = vpop.f32.mrb[0].mxu0
    %v3435 = vadd.f32 %v3293, %v3434
    %v3436 = vpop.f32.mrb[0].mxu0
    %v3437 = vadd.f32 %v3295, %v3436
    %3438 = vdwg.mxu0
    %v3439 = vadd.f32 %v3364, %v1012
    %v3440 = vadd.f32 %v3366, %v1016
    %v3441 = vadd.f32 %v3435, %v1020
    %v3442 = vadd.f32 %v3437, %v1024
    %v3443 = vxor.u32 %v3439, 2147483648
    %v3444 = vmul.f32 %v3443, 1.442695
    %v3445 = vpow.pop %v3444
    %v3446 = vadd.f32 %v3445, 1.0
    %v3447 = vrcp.pop %v3446
    %v3448 = vmul.f32 1.0, %v3447
    %v3449 = vxor.u32 %v3440, 2147483648
    %v3450 = vmul.f32 %v3449, 1.442695
    %v3451 = vpow.pop %v3450
    %v3452 = vadd.f32 %v3451, 1.0
    %v3453 = vrcp.pop %v3452
    %v3454 = vmul.f32 1.0, %v3453
    %v3455 = vtanh.pop %v3441
    %v3456 = vxor.u32 %v3442, 2147483648
    %v3457 = vmul.f32 %v3456, 1.442695
    %v3458 = vpow.pop %v3457
    %v3459 = vadd.f32 %v3458, 1.0
    %v3460 = vrcp.pop %v3459
    %v3461 = vmul.f32 1.0, %v3460
    %v3462 = vmul.f32 %v3454, %v2982
    %v3463 = vmul.f32 %v3448, %v3455
    %v3464 = vadd.f32 %v3462, %v3463
    %v3465 = vtanh.pop %v3464
    %v3466 = vmul.f32 %v3461, %v3465
    %3467 = vmatprep.subr.mxu0 %v362
    %3468 = vmatpush1.msra.mxu0 %v361
    %3469 = vmatprep.subr.mxu0 %v366
    %3470 = vmatpush1.msra.mxu0 %v365
    %3471 = vmatprep.subr.mxu0 %v370
    %3472 = vmatpush1.msra.mxu0 %v369
    %3473 = vmatprep.subr.mxu0 %v374
    %3474 = vmatpush1.msra.mxu0 %v373
    %3475 = vmatprep.subr.mxu0 %v378
    %3476 = vmatpush1.msra.mxu0 %v377
    %3477 = vmatprep.subr.mxu0 %v382
    %3478 = vmatpush1.msra.mxu0 %v381
    %3479 = vmatprep.subr.mxu0 %v386
    %3480 = vmatpush1.msra.mxu0 %v385
    %3481 = vmatprep.subr.mxu0 %v390
    %3482 = vmatpush1.msra.mxu0 %v389
    %3483 = vmatprep.subr.mxu0 %v394
    %3484 = vmatpush1.msra.mxu0 %v393
    %3485 = vmatprep.subr.mxu0 %v398
    %3486 = vmatpush1.msra.mxu0 %v397
    %3487 = vmatprep.subr.mxu0 %v402
    %3488 = vmatpush1.msra.mxu0 %v401
    %3489 = vmatprep.subr.mxu0 %v406
    %3490 = vmatpush1.msra.mxu0 %v405
    %3491 = vmatprep.subr.mxu0 %v410
    %3492 = vmatpush1.msra.mxu0 %v409
    %3493 = vmatprep.subr.mxu0 %v414
    %3494 = vmatpush1.msra.mxu0 %v413
    %3495 = vmatprep.subr.mxu0 %v418
    %3496 = vmatpush1.msra.mxu0 %v417
    %3497 = vmatprep.subr.mxu0 %v422
    %3498 = vmatpush1.msra.mxu0 %v421
    %3499 = vmatprep.subr.mxu0 0.0
    %3500 = vmatpush1.msra.mxu0 0.0
    %3501 = vmatprep.subr.mxu0 0.0
    %3502 = vmatpush1.msra.mxu0 0.0
    %3503 = vmatprep.subr.mxu0 0.0
    %3504 = vmatpush1.msra.mxu0 0.0
    %3505 = vmatprep.subr.mxu0 0.0
    %3506 = vmatpush1.msra.mxu0 0.0
    %3507 = vmatprep.subr.mxu0 0.0
    %3508 = vmatpush1.msra.mxu0 0.0
    %3509 = vmatprep.subr.mxu0 0.0
    %3510 = vmatpush1.msra.mxu0 0.0
    %3511 = vmatprep.subr.mxu0 0.0
    %3512 = vmatpush1.msra.mxu0 0.0
    %3513 = vmatprep.subr.mxu0 0.0
    %3514 = vmatpush1.msra.mxu0 0.0
    %3515 = vmatprep.subr.mxu0 0.0
    %3516 = vmatpush1.msra.mxu0 0.0
    %3517 = vmatprep.subr.mxu0 0.0
    %3518 = vmatpush1.msra.mxu0 0.0
    %3519 = vmatprep.subr.mxu0 0.0
    %3520 = vmatpush1.msra.mxu0 0.0
    %3521 = vmatprep.subr.mxu0 0.0
    %3522 = vmatpush1.msra.mxu0 0.0
    %3523 = vmatprep.subr.mxu0 0.0
    %3524 = vmatpush1.msra.mxu0 0.0
    %3525 = vmatprep.subr.mxu0 0.0
    %3526 = vmatpush1.msra.mxu0 0.0
    %3527 = vmatprep.subr.mxu0 0.0
    %3528 = vmatpush1.msra.mxu0 0.0
    %3529 = vmatprep.subr.mxu0 0.0
    %3530 = vmatpush1.msra.mxu0 0.0
    %3531 = vmatprep.mubr.f32.mxu0 0.0
    %3532 = vmatmul.mubr.f32.gmra.mrb[0].mxu0 %v3154
    %v3533 = vpop.f32.mrb[0].mxu0
    %v3534 = vadd.f32 0.0, %v3533
    %v3535 = vpop.f32.mrb[0].mxu0
    %v3536 = vadd.f32 0.0, %v3535
    %3537 = vdwg.mxu0
    %3538 = vmatprep.subr.mxu0 %v364
    %3539 = vmatpush1.msra.mxu0 %v363
    %3540 = vmatprep.subr.mxu0 %v368
    %3541 = vmatpush1.msra.mxu0 %v367
    %3542 = vmatprep.subr.mxu0 %v372
    %3543 = vmatpush1.msra.mxu0 %v371
    %3544 = vmatprep.subr.mxu0 %v376
    %3545 = vmatpush1.msra.mxu0 %v375
    %3546 = vmatprep.subr.mxu0 %v380
    %3547 = vmatpush1.msra.mxu0 %v379
    %3548 = vmatprep.subr.mxu0 %v384
    %3549 = vmatpush1.msra.mxu0 %v383
    %3550 = vmatprep.subr.mxu0 %v388
    %3551 = vmatpush1.msra.mxu0 %v387
    %3552 = vmatprep.subr.mxu0 %v392
    %3553 = vmatpush1.msra.mxu0 %v391
    %3554 = vmatprep.subr.mxu0 %v396
    %3555 = vmatpush1.msra.mxu0 %v395
    %3556 = vmatprep.subr.mxu0 %v400
    %3557 = vmatpush1.msra.mxu0 %v399
    %3558 = vmatprep.subr.mxu0 %v404
    %3559 = vmatpush1.msra.mxu0 %v403
    %3560 = vmatprep.subr.mxu0 %v408
    %3561 = vmatpush1.msra.mxu0 %v407
    %3562 = vmatprep.subr.mxu0 %v412
    %3563 = vmatpush1.msra.mxu0 %v411
    %3564 = vmatprep.subr.mxu0 %v416
    %3565 = vmatpush1.msra.mxu0 %v415
    %3566 = vmatprep.subr.mxu0 %v420
    %3567 = vmatpush1.msra.mxu0 %v419
    %3568 = vmatprep.subr.mxu0 %v424
    %3569 = vmatpush1.msra.mxu0 %v423
    %3570 = vmatprep.subr.mxu0 0.0
    %3571 = vmatpush1.msra.mxu0 0.0
    %3572 = vmatprep.subr.mxu0 0.0
    %3573 = vmatpush1.msra.mxu0 0.0
    %3574 = vmatprep.subr.mxu0 0.0
    %3575 = vmatpush1.msra.mxu0 0.0
    %3576 = vmatprep.subr.mxu0 0.0
    %3577 = vmatpush1.msra.mxu0 0.0
    %3578 = vmatprep.subr.mxu0 0.0
    %3579 = vmatpush1.msra.mxu0 0.0
    %3580 = vmatprep.subr.mxu0 0.0
    %3581 = vmatpush1.msra.mxu0 0.0
    %3582 = vmatprep.subr.mxu0 0.0
    %3583 = vmatpush1.msra.mxu0 0.0
    %3584 = vmatprep.subr.mxu0 0.0
    %3585 = vmatpush1.msra.mxu0 0.0
    %3586 = vmatprep.subr.mxu0 0.0
    %3587 = vmatpush1.msra.mxu0 0.0
    %3588 = vmatprep.subr.mxu0 0.0
    %3589 = vmatpush1.msra.mxu0 0.0
    %3590 = vmatprep.subr.mxu0 0.0
    %3591 = vmatpush1.msra.mxu0 0.0
    %3592 = vmatprep.subr.mxu0 0.0
    %3593 = vmatpush1.msra.mxu0 0.0
    %3594 = vmatprep.subr.mxu0 0.0
    %3595 = vmatpush1.msra.mxu0 0.0
    %3596 = vmatprep.subr.mxu0 0.0
    %3597 = vmatpush1.msra.mxu0 0.0
    %3598 = vmatprep.subr.mxu0 0.0
    %3599 = vmatpush1.msra.mxu0 0.0
    %3600 = vmatprep.subr.mxu0 0.0
    %3601 = vmatpush1.msra.mxu0 0.0
    %3602 = vmatprep.mubr.f32.mxu0 0.0
    %3603 = vmatmul.mubr.f32.gmra.mrb[0].mxu0 %v3154
    %v3604 = vpop.f32.mrb[0].mxu0
    %v3605 = vadd.f32 0.0, %v3604
    %v3606 = vpop.f32.mrb[0].mxu0
    %v3607 = vadd.f32 0.0, %v3606
    %3608 = vdwg.mxu0
    %v3609 = vadd.f32 %v238, %v3534
    %v3610 = vadd.f32 %v240, %v3536
    %v3611 = vadd.f32 %v351, %v3605
    %v3612 = vadd.f32 %v353, %v3607
    %v3613 = vxor.u32 %v3609, 2147483648
    %v3614 = vmul.f32 %v3613, 1.442695
    %v3615 = vpow.pop %v3614
    %v3616 = vadd.f32 %v3615, 1.0
    %v3617 = vrcp.pop %v3616
    %v3618 = vmul.f32 1.0, %v3617
    %v3619 = vxor.u32 %v3610, 2147483648
    %v3620 = vmul.f32 %v3619, 1.442695
    %v3621 = vpow.pop %v3620
    %v3622 = vadd.f32 %v3621, 1.0
    %v3623 = vrcp.pop %v3622
    %v3624 = vmul.f32 1.0, %v3623
    %v3625 = vtanh.pop %v3611
    %v3626 = vxor.u32 %v3612, 2147483648
    %v3627 = vmul.f32 %v3626, 1.442695
    %v3628 = vpow.pop %v3627
    %v3629 = vadd.f32 %v3628, 1.0
    %v3630 = vrcp.pop %v3629
    %v3631 = vmul.f32 1.0, %v3630
    %v3632 = vmul.f32 %v3624, %v3152
    %v3633 = vmul.f32 %v3618, %v3625
    %v3634 = vadd.f32 %v3632, %v3633
    %v3635 = vtanh.pop %v3634
    %v3636 = vmul.f32 %v3631, %v3635
    %3637 = vmatprep.subr.mxu0 %v490
    %3638 = vmatpush1.msra.mxu0 %v489
    %3639 = vmatprep.subr.mxu0 %v494
    %3640 = vmatpush1.msra.mxu0 %v493
    %3641 = vmatprep.subr.mxu0 %v498
    %3642 = vmatpush1.msra.mxu0 %v497
    %3643 = vmatprep.subr.mxu0 %v502
    %3644 = vmatpush1.msra.mxu0 %v501
    %3645 = vmatprep.subr.mxu0 %v506
    %3646 = vmatpush1.msra.mxu0 %v505
    %3647 = vmatprep.subr.mxu0 %v510
    %3648 = vmatpush1.msra.mxu0 %v509
    %3649 = vmatprep.subr.mxu0 %v514
    %3650 = vmatpush1.msra.mxu0 %v513
    %3651 = vmatprep.subr.mxu0 %v518
    %3652 = vmatpush1.msra.mxu0 %v517
    %3653 = vmatprep.subr.mxu0 %v522
    %3654 = vmatpush1.msra.mxu0 %v521
    %3655 = vmatprep.subr.mxu0 %v526
    %3656 = vmatpush1.msra.mxu0 %v525
    %3657 = vmatprep.subr.mxu0 %v530
    %3658 = vmatpush1.msra.mxu0 %v529
    %3659 = vmatprep.subr.mxu0 %v534
    %3660 = vmatpush1.msra.mxu0 %v533
    %3661 = vmatprep.subr.mxu0 %v538
    %3662 = vmatpush1.msra.mxu0 %v537
    %3663 = vmatprep.subr.mxu0 %v542
    %3664 = vmatpush1.msra.mxu0 %v541
    %3665 = vmatprep.subr.mxu0 %v546
    %3666 = vmatpush1.msra.mxu0 %v545
    %3667 = vmatprep.subr.mxu0 %v550
    %3668 = vmatpush1.msra.mxu0 %v549
    %3669 = vmatprep.subr.mxu0 0.0
    %3670 = vmatpush1.msra.mxu0 0.0
    %3671 = vmatprep.subr.mxu0 0.0
    %3672 = vmatpush1.msra.mxu0 0.0
    %3673 = vmatprep.subr.mxu0 0.0
    %3674 = vmatpush1.msra.mxu0 0.0
    %3675 = vmatprep.subr.mxu0 0.0
    %3676 = vmatpush1.msra.mxu0 0.0
    %3677 = vmatprep.subr.mxu0 0.0
    %3678 = vmatpush1.msra.mxu0 0.0
    %3679 = vmatprep.subr.mxu0 0.0
    %3680 = vmatpush1.msra.mxu0 0.0
    %3681 = vmatprep.subr.mxu0 0.0
    %3682 = vmatpush1.msra.mxu0 0.0
    %3683 = vmatprep.subr.mxu0 0.0
    %3684 = vmatpush1.msra.mxu0 0.0
    %3685 = vmatprep.subr.mxu0 0.0
    %3686 = vmatpush1.msra.mxu0 0.0
    %3687 = vmatprep.subr.mxu0 0.0
    %3688 = vmatpush1.msra.mxu0 0.0
    %3689 = vmatprep.subr.mxu0 0.0
    %3690 = vmatpush1.msra.mxu0 0.0
    %3691 = vmatprep.subr.mxu0 0.0
    %3692 = vmatpush1.msra.mxu0 0.0
    %3693 = vmatprep.subr.mxu0 0.0
    %3694 = vmatpush1.msra.mxu0 0.0
    %3695 = vmatprep.subr.mxu0 0.0
    %3696 = vmatpush1.msra.mxu0 0.0
    %3697 = vmatprep.subr.mxu0 0.0
    %3698 = vmatpush1.msra.mxu0 0.0
    %3699 = vmatprep.subr.mxu0 0.0
    %3700 = vmatpush1.msra.mxu0 0.0
    %3701 = vmatprep.mubr.f32.mxu0 0.0
    %3702 = vmatmul.mubr.f32.gmra.mrb[0].mxu0 %v3466
    %v3703 = vpop.f32.mrb[0].mxu0
    %v3704 = vadd.f32 0.0, %v3703
    %v3705 = vpop.f32.mrb[0].mxu0
    %v3706 = vadd.f32 0.0, %v3705
    %3707 = vdwg.mxu0
    %3708 = vmatprep.subr.mxu0 %v492
    %3709 = vmatpush1.msra.mxu0 %v491
    %3710 = vmatprep.subr.mxu0 %v496
    %3711 = vmatpush1.msra.mxu0 %v495
    %3712 = vmatprep.subr.mxu0 %v500
    %3713 = vmatpush1.msra.mxu0 %v499
    %3714 = vmatprep.subr.mxu0 %v504
    %3715 = vmatpush1.msra.mxu0 %v503
    %3716 = vmatprep.subr.mxu0 %v508
    %3717 = vmatpush1.msra.mxu0 %v507
    %3718 = vmatprep.subr.mxu0 %v512
    %3719 = vmatpush1.msra.mxu0 %v511
    %3720 = vmatprep.subr.mxu0 %v516
    %3721 = vmatpush1.msra.mxu0 %v515
    %3722 = vmatprep.subr.mxu0 %v520
    %3723 = vmatpush1.msra.mxu0 %v519
    %3724 = vmatprep.subr.mxu0 %v524
    %3725 = vmatpush1.msra.mxu0 %v523
    %3726 = vmatprep.subr.mxu0 %v528
    %3727 = vmatpush1.msra.mxu0 %v527
    %3728 = vmatprep.subr.mxu0 %v532
    %3729 = vmatpush1.msra.mxu0 %v531
    %3730 = vmatprep.subr.mxu0 %v536
    %3731 = vmatpush1.msra.mxu0 %v535
    %3732 = vmatprep.subr.mxu0 %v540
    %3733 = vmatpush1.msra.mxu0 %v539
    %3734 = vmatprep.subr.mxu0 %v544
    %3735 = vmatpush1.msra.mxu0 %v543
    %3736 = vmatprep.subr.mxu0 %v548
    %3737 = vmatpush1.msra.mxu0 %v547
    %3738 = vmatprep.subr.mxu0 %v552
    %3739 = vmatpush1.msra.mxu0 %v551
    %3740 = vmatprep.subr.mxu0 0.0
    %3741 = vmatpush1.msra.mxu0 0.0
    %3742 = vmatprep.subr.mxu0 0.0
    %3743 = vmatpush1.msra.mxu0 0.0
    %3744 = vmatprep.subr.mxu0 0.0
    %3745 = vmatpush1.msra.mxu0 0.0
    %3746 = vmatprep.subr.mxu0 0.0
    %3747 = vmatpush1.msra.mxu0 0.0
    %3748 = vmatprep.subr.mxu0 0.0
    %3749 = vmatpush1.msra.mxu0 0.0
    %3750 = vmatprep.subr.mxu0 0.0
    %3751 = vmatpush1.msra.mxu0 0.0
    %3752 = vmatprep.subr.mxu0 0.0
    %3753 = vmatpush1.msra.mxu0 0.0
    %3754 = vmatprep.subr.mxu0 0.0
    %3755 = vmatpush1.msra.mxu0 0.0
    %3756 = vmatprep.subr.mxu0 0.0
    %3757 = vmatpush1.msra.mxu0 0.0
    %3758 = vmatprep.subr.mxu0 0.0
    %3759 = vmatpush1.msra.mxu0 0.0
    %3760 = vmatprep.subr.mxu0 0.0
    %3761 = vmatpush1.msra.mxu0 0.0
    %3762 = vmatprep.subr.mxu0 0.0
    %3763 = vmatpush1.msra.mxu0 0.0
    %3764 = vmatprep.subr.mxu0 0.0
    %3765 = vmatpush1.msra.mxu0 0.0
    %3766 = vmatprep.subr.mxu0 0.0
    %3767 = vmatpush1.msra.mxu0 0.0
    %3768 = vmatprep.subr.mxu0 0.0
    %3769 = vmatpush1.msra.mxu0 0.0
    %3770 = vmatprep.subr.mxu0 0.0
    %3771 = vmatpush1.msra.mxu0 0.0
    %3772 = vmatprep.mubr.f32.mxu0 0.0
    %3773 = vmatmul.mubr.f32.gmra.mrb[0].mxu0 %v3466
    %v3774 = vpop.f32.mrb[0].mxu0
    %v3775 = vadd.f32 0.0, %v3774
    %v3776 = vpop.f32.mrb[0].mxu0
    %v3777 = vadd.f32 0.0, %v3776
    %3778 = vdwg.mxu0
    %3779 = vmatprep.subr.mxu0 %v426
    %3780 = vmatpush1.msra.mxu0 %v425
    %3781 = vmatprep.subr.mxu0 %v430
    %3782 = vmatpush1.msra.mxu0 %v429
    %3783 = vmatprep.subr.mxu0 %v434
    %3784 = vmatpush1.msra.mxu0 %v433
    %3785 = vmatprep.subr.mxu0 %v438
    %3786 = vmatpush1.msra.mxu0 %v437
    %3787 = vmatprep.subr.mxu0 %v442
    %3788 = vmatpush1.msra.mxu0 %v441
    %3789 = vmatprep.subr.mxu0 %v446
    %3790 = vmatpush1.msra.mxu0 %v445
    %3791 = vmatprep.subr.mxu0 %v450
    %3792 = vmatpush1.msra.mxu0 %v449
    %3793 = vmatprep.subr.mxu0 %v454
    %3794 = vmatpush1.msra.mxu0 %v453
    %3795 = vmatprep.subr.mxu0 %v458
    %3796 = vmatpush1.msra.mxu0 %v457
    %3797 = vmatprep.subr.mxu0 %v462
    %3798 = vmatpush1.msra.mxu0 %v461
    %3799 = vmatprep.subr.mxu0 %v466
    %3800 = vmatpush1.msra.mxu0 %v465
    %3801 = vmatprep.subr.mxu0 %v470
    %3802 = vmatpush1.msra.mxu0 %v469
    %3803 = vmatprep.subr.mxu0 %v474
    %3804 = vmatpush1.msra.mxu0 %v473
    %3805 = vmatprep.subr.mxu0 %v478
    %3806 = vmatpush1.msra.mxu0 %v477
    %3807 = vmatprep.subr.mxu0 %v482
    %3808 = vmatpush1.msra.mxu0 %v481
    %3809 = vmatprep.subr.mxu0 %v486
    %3810 = vmatpush1.msra.mxu0 %v485
    %3811 = vmatprep.subr.mxu0 0.0
    %3812 = vmatpush1.msra.mxu0 0.0
    %3813 = vmatprep.subr.mxu0 0.0
    %3814 = vmatpush1.msra.mxu0 0.0
    %3815 = vmatprep.subr.mxu0 0.0
    %3816 = vmatpush1.msra.mxu0 0.0
    %3817 = vmatprep.subr.mxu0 0.0
    %3818 = vmatpush1.msra.mxu0 0.0
    %3819 = vmatprep.subr.mxu0 0.0
    %3820 = vmatpush1.msra.mxu0 0.0
    %3821 = vmatprep.subr.mxu0 0.0
    %3822 = vmatpush1.msra.mxu0 0.0
    %3823 = vmatprep.subr.mxu0 0.0
    %3824 = vmatpush1.msra.mxu0 0.0
    %3825 = vmatprep.subr.mxu0 0.0
    %3826 = vmatpush1.msra.mxu0 0.0
    %3827 = vmatprep.subr.mxu0 0.0
    %3828 = vmatpush1.msra.mxu0 0.0
    %3829 = vmatprep.subr.mxu0 0.0
    %3830 = vmatpush1.msra.mxu0 0.0
    %3831 = vmatprep.subr.mxu0 0.0
    %3832 = vmatpush1.msra.mxu0 0.0
    %3833 = vmatprep.subr.mxu0 0.0
    %3834 = vmatpush1.msra.mxu0 0.0
    %3835 = vmatprep.subr.mxu0 0.0
    %3836 = vmatpush1.msra.mxu0 0.0
    %3837 = vmatprep.subr.mxu0 0.0
    %3838 = vmatpush1.msra.mxu0 0.0
    %3839 = vmatprep.subr.mxu0 0.0
    %3840 = vmatpush1.msra.mxu0 0.0
    %3841 = vmatprep.subr.mxu0 0.0
    %3842 = vmatpush1.msra.mxu0 0.0
    %3843 = vmatprep.mubr.f32.mxu0 0.0
    %3844 = vmatmul.mubr.f32.gmra.mrb[0].mxu0 %v3636
    %v3845 = vpop.f32.mrb[0].mxu0
    %v3846 = vadd.f32 %v3704, %v3845
    %v3847 = vpop.f32.mrb[0].mxu0
    %v3848 = vadd.f32 %v3706, %v3847
    %3849 = vdwg.mxu0
    %3850 = vmatprep.subr.mxu0 %v428
    %3851 = vmatpush1.msra.mxu0 %v427
    %3852 = vmatprep.subr.mxu0 %v432
    %3853 = vmatpush1.msra.mxu0 %v431
    %3854 = vmatprep.subr.mxu0 %v436
    %3855 = vmatpush1.msra.mxu0 %v435
    %3856 = vmatprep.subr.mxu0 %v440
    %3857 = vmatpush1.msra.mxu0 %v439
    %3858 = vmatprep.subr.mxu0 %v444
    %3859 = vmatpush1.msra.mxu0 %v443
    %3860 = vmatprep.subr.mxu0 %v448
    %3861 = vmatpush1.msra.mxu0 %v447
    %3862 = vmatprep.subr.mxu0 %v452
    %3863 = vmatpush1.msra.mxu0 %v451
    %3864 = vmatprep.subr.mxu0 %v456
    %3865 = vmatpush1.msra.mxu0 %v455
    %3866 = vmatprep.subr.mxu0 %v460
    %3867 = vmatpush1.msra.mxu0 %v459
    %3868 = vmatprep.subr.mxu0 %v464
    %3869 = vmatpush1.msra.mxu0 %v463
    %3870 = vmatprep.subr.mxu0 %v468
    %3871 = vmatpush1.msra.mxu0 %v467
    %3872 = vmatprep.subr.mxu0 %v472
    %3873 = vmatpush1.msra.mxu0 %v471
    %3874 = vmatprep.subr.mxu0 %v476
    %3875 = vmatpush1.msra.mxu0 %v475
    %3876 = vmatprep.subr.mxu0 %v480
    %3877 = vmatpush1.msra.mxu0 %v479
    %3878 = vmatprep.subr.mxu0 %v484
    %3879 = vmatpush1.msra.mxu0 %v483
    %3880 = vmatprep.subr.mxu0 %v488
    %3881 = vmatpush1.msra.mxu0 %v487
    %3882 = vmatprep.subr.mxu0 0.0
    %3883 = vmatpush1.msra.mxu0 0.0
    %3884 = vmatprep.subr.mxu0 0.0
    %3885 = vmatpush1.msra.mxu0 0.0
    %3886 = vmatprep.subr.mxu0 0.0
    %3887 = vmatpush1.msra.mxu0 0.0
    %3888 = vmatprep.subr.mxu0 0.0
    %3889 = vmatpush1.msra.mxu0 0.0
    %3890 = vmatprep.subr.mxu0 0.0
    %3891 = vmatpush1.msra.mxu0 0.0
    %3892 = vmatprep.subr.mxu0 0.0
    %3893 = vmatpush1.msra.mxu0 0.0
    %3894 = vmatprep.subr.mxu0 0.0
    %3895 = vmatpush1.msra.mxu0 0.0
    %3896 = vmatprep.subr.mxu0 0.0
    %3897 = vmatpush1.msra.mxu0 0.0
    %3898 = vmatprep.subr.mxu0 0.0
    %3899 = vmatpush1.msra.mxu0 0.0
    %3900 = vmatprep.subr.mxu0 0.0
    %3901 = vmatpush1.msra.mxu0 0.0
    %3902 = vmatprep.subr.mxu0 0.0
    %3903 = vmatpush1.msra.mxu0 0.0
    %3904 = vmatprep.subr.mxu0 0.0
    %3905 = vmatpush1.msra.mxu0 0.0
    %3906 = vmatprep.subr.mxu0 0.0
    %3907 = vmatpush1.msra.mxu0 0.0
    %3908 = vmatprep.subr.mxu0 0.0
    %3909 = vmatpush1.msra.mxu0 0.0
    %3910 = vmatprep.subr.mxu0 0.0
    %3911 = vmatpush1.msra.mxu0 0.0
    %3912 = vmatprep.subr.mxu0 0.0
    %3913 = vmatpush1.msra.mxu0 0.0
    %3914 = vmatprep.mubr.f32.mxu0 0.0
    %3915 = vmatmul.mubr.f32.gmra.mrb[0].mxu0 %v3636
    %v3916 = vpop.f32.mrb[0].mxu0
    %v3917 = vadd.f32 %v3775, %v3916
    %v3918 = vpop.f32.mrb[0].mxu0
    %v3919 = vadd.f32 %v3777, %v3918
    %3920 = vdwg.mxu0
    %v3921 = vadd.f32 %v3846, %v1012
    %v3922 = vadd.f32 %v3848, %v1016
    %v3923 = vadd.f32 %v3917, %v1020
    %v3924 = vadd.f32 %v3919, %v1024
    %v3925 = vxor.u32 %v3921, 2147483648
    %v3926 = vmul.f32 %v3925, 1.442695
    %v3927 = vpow.pop %v3926
    %v3928 = vadd.f32 %v3927, 1.0
    %v3929 = vrcp.pop %v3928
    %v3930 = vmul.f32 1.0, %v3929
    %v3931 = vxor.u32 %v3922, 2147483648
    %v3932 = vmul.f32 %v3931, 1.442695
    %v3933 = vpow.pop %v3932
    %v3934 = vadd.f32 %v3933, 1.0
    %v3935 = vrcp.pop %v3934
    %v3936 = vmul.f32 1.0, %v3935
    %v3937 = vtanh.pop %v3923
    %v3938 = vxor.u32 %v3924, 2147483648
    %v3939 = vmul.f32 %v3938, 1.442695
    %v3940 = vpow.pop %v3939
    %v3941 = vadd.f32 %v3940, 1.0
    %v3942 = vrcp.pop %v3941
    %v3943 = vmul.f32 1.0, %v3942
    %v3944 = vmul.f32 %v3936, %v3464
    %v3945 = vmul.f32 %v3930, %v3937
    %v3946 = vadd.f32 %v3944, %v3945
    %v3947 = vtanh.pop %v3946
    %v3948 = vmul.f32 %v3943, %v3947
    %3949 = vmatprep.subr.mxu0 %v362
    %3950 = vmatpush1.msra.mxu0 %v361
    %3951 = vmatprep.subr.mxu0 %v366
    %3952 = vmatpush1.msra.mxu0 %v365
    %3953 = vmatprep.subr.mxu0 %v370
    %3954 = vmatpush1.msra.mxu0 %v369
    %3955 = vmatprep.subr.mxu0 %v374
    %3956 = vmatpush1.msra.mxu0 %v373
    %3957 = vmatprep.subr.mxu0 %v378
    %3958 = vmatpush1.msra.mxu0 %v377
    %3959 = vmatprep.subr.mxu0 %v382
    %3960 = vmatpush1.msra.mxu0 %v381
    %3961 = vmatprep.subr.mxu0 %v386
    %3962 = vmatpush1.msra.mxu0 %v385
    %3963 = vmatprep.subr.mxu0 %v390
    %3964 = vmatpush1.msra.mxu0 %v389
    %3965 = vmatprep.subr.mxu0 %v394
    %3966 = vmatpush1.msra.mxu0 %v393
    %3967 = vmatprep.subr.mxu0 %v398
    %3968 = vmatpush1.msra.mxu0 %v397
    %3969 = vmatprep.subr.mxu0 %v402
    %3970 = vmatpush1.msra.mxu0 %v401
    %3971 = vmatprep.subr.mxu0 %v406
    %3972 = vmatpush1.msra.mxu0 %v405
    %3973 = vmatprep.subr.mxu0 %v410
    %3974 = vmatpush1.msra.mxu0 %v409
    %3975 = vmatprep.subr.mxu0 %v414
    %3976 = vmatpush1.msra.mxu0 %v413
    %3977 = vmatprep.subr.mxu0 %v418
    %3978 = vmatpush1.msra.mxu0 %v417
    %3979 = vmatprep.subr.mxu0 %v422
    %3980 = vmatpush1.msra.mxu0 %v421
    %3981 = vmatprep.subr.mxu0 0.0
    %3982 = vmatpush1.msra.mxu0 0.0
    %3983 = vmatprep.subr.mxu0 0.0
    %3984 = vmatpush1.msra.mxu0 0.0
    %3985 = vmatprep.subr.mxu0 0.0
    %3986 = vmatpush1.msra.mxu0 0.0
    %3987 = vmatprep.subr.mxu0 0.0
    %3988 = vmatpush1.msra.mxu0 0.0
    %3989 = vmatprep.subr.mxu0 0.0
    %3990 = vmatpush1.msra.mxu0 0.0
    %3991 = vmatprep.subr.mxu0 0.0
    %3992 = vmatpush1.msra.mxu0 0.0
    %3993 = vmatprep.subr.mxu0 0.0
    %3994 = vmatpush1.msra.mxu0 0.0
    %3995 = vmatprep.subr.mxu0 0.0
    %3996 = vmatpush1.msra.mxu0 0.0
    %3997 = vmatprep.subr.mxu0 0.0
    %3998 = vmatpush1.msra.mxu0 0.0
    %3999 = vmatprep.subr.mxu0 0.0
    %4000 = vmatpush1.msra.mxu0 0.0
    %4001 = vmatprep.subr.mxu0 0.0
    %4002 = vmatpush1.msra.mxu0 0.0
    %4003 = vmatprep.subr.mxu0 0.0
    %4004 = vmatpush1.msra.mxu0 0.0
    %4005 = vmatprep.subr.mxu0 0.0
    %4006 = vmatpush1.msra.mxu0 0.0
    %4007 = vmatprep.subr.mxu0 0.0
    %4008 = vmatpush1.msra.mxu0 0.0
    %4009 = vmatprep.subr.mxu0 0.0
    %4010 = vmatpush1.msra.mxu0 0.0
    %4011 = vmatprep.subr.mxu0 0.0
    %4012 = vmatpush1.msra.mxu0 0.0
    %4013 = vmatprep.mubr.f32.mxu0 0.0
    %4014 = vmatmul.mubr.f32.gmra.mrb[0].mxu0 %v3636
    %v4015 = vpop.f32.mrb[0].mxu0
    %v4016 = vadd.f32 0.0, %v4015
    %v4017 = vpop.f32.mrb[0].mxu0
    %v4018 = vadd.f32 0.0, %v4017
    %4019 = vdwg.mxu0
    %4020 = vmatprep.subr.mxu0 %v364
    %4021 = vmatpush1.msra.mxu0 %v363
    %4022 = vmatprep.subr.mxu0 %v368
    %4023 = vmatpush1.msra.mxu0 %v367
    %4024 = vmatprep.subr.mxu0 %v372
    %4025 = vmatpush1.msra.mxu0 %v371
    %4026 = vmatprep.subr.mxu0 %v376
    %4027 = vmatpush1.msra.mxu0 %v375
    %4028 = vmatprep.subr.mxu0 %v380
    %4029 = vmatpush1.msra.mxu0 %v379
    %4030 = vmatprep.subr.mxu0 %v384
    %4031 = vmatpush1.msra.mxu0 %v383
    %4032 = vmatprep.subr.mxu0 %v388
    %4033 = vmatpush1.msra.mxu0 %v387
    %4034 = vmatprep.subr.mxu0 %v392
    %4035 = vmatpush1.msra.mxu0 %v391
    %4036 = vmatprep.subr.mxu0 %v396
    %4037 = vmatpush1.msra.mxu0 %v395
    %4038 = vmatprep.subr.mxu0 %v400
    %4039 = vmatpush1.msra.mxu0 %v399
    %4040 = vmatprep.subr.mxu0 %v404
    %4041 = vmatpush1.msra.mxu0 %v403
    %4042 = vmatprep.subr.mxu0 %v408
    %4043 = vmatpush1.msra.mxu0 %v407
    %4044 = vmatprep.subr.mxu0 %v412
    %4045 = vmatpush1.msra.mxu0 %v411
    %4046 = vmatprep.subr.mxu0 %v416
    %4047 = vmatpush1.msra.mxu0 %v415
    %4048 = vmatprep.subr.mxu0 %v420
    %4049 = vmatpush1.msra.mxu0 %v419
    %4050 = vmatprep.subr.mxu0 %v424
    %4051 = vmatpush1.msra.mxu0 %v423
    %4052 = vmatprep.subr.mxu0 0.0
    %4053 = vmatpush1.msra.mxu0 0.0
    %4054 = vmatprep.subr.mxu0 0.0
    %4055 = vmatpush1.msra.mxu0 0.0
    %4056 = vmatprep.subr.mxu0 0.0
    %4057 = vmatpush1.msra.mxu0 0.0
    %4058 = vmatprep.subr.mxu0 0.0
    %4059 = vmatpush1.msra.mxu0 0.0
    %4060 = vmatprep.subr.mxu0 0.0
    %4061 = vmatpush1.msra.mxu0 0.0
    %4062 = vmatprep.subr.mxu0 0.0
    %4063 = vmatpush1.msra.mxu0 0.0
    %4064 = vmatprep.subr.mxu0 0.0
    %4065 = vmatpush1.msra.mxu0 0.0
    %4066 = vmatprep.subr.mxu0 0.0
    %4067 = vmatpush1.msra.mxu0 0.0
    %4068 = vmatprep.subr.mxu0 0.0
    %4069 = vmatpush1.msra.mxu0 0.0
    %4070 = vmatprep.subr.mxu0 0.0
    %4071 = vmatpush1.msra.mxu0 0.0
    %4072 = vmatprep.subr.mxu0 0.0
    %4073 = vmatpush1.msra.mxu0 0.0
    %4074 = vmatprep.subr.mxu0 0.0
    %4075 = vmatpush1.msra.mxu0 0.0
    %4076 = vmatprep.subr.mxu0 0.0
    %4077 = vmatpush1.msra.mxu0 0.0
    %4078 = vmatprep.subr.mxu0 0.0
    %4079 = vmatpush1.msra.mxu0 0.0
    %4080 = vmatprep.subr.mxu0 0.0
    %4081 = vmatpush1.msra.mxu0 0.0
    %4082 = vmatprep.subr.mxu0 0.0
    %4083 = vmatpush1.msra.mxu0 0.0
    %4084 = vmatprep.mubr.f32.mxu0 0.0
    %4085 = vmatmul.mubr.f32.gmra.mrb[0].mxu0 %v3636
    %v4086 = vpop.f32.mrb[0].mxu0
    %v4087 = vadd.f32 0.0, %v4086
    %v4088 = vpop.f32.mrb[0].mxu0
    %v4089 = vadd.f32 0.0, %v4088
    %4090 = vdwg.mxu0
    %v4091 = vadd.f32 %v244, %v4016
    %v4092 = vadd.f32 %v246, %v4018
    %v4093 = vadd.f32 %v357, %v4087
    %v4094 = vadd.f32 %v359, %v4089
    %v4095 = vxor.u32 %v4091, 2147483648
    %v4096 = vmul.f32 %v4095, 1.442695
    %v4097 = vpow.pop %v4096
    %v4098 = vadd.f32 %v4097, 1.0
    %v4099 = vrcp.pop %v4098
    %v4100 = vmul.f32 1.0, %v4099
    %v4101 = vxor.u32 %v4092, 2147483648
    %v4102 = vmul.f32 %v4101, 1.442695
    %v4103 = vpow.pop %v4102
    %v4104 = vadd.f32 %v4103, 1.0
    %v4105 = vrcp.pop %v4104
    %v4106 = vmul.f32 1.0, %v4105
    %v4107 = vtanh.pop %v4093
    %v4108 = vxor.u32 %v4094, 2147483648
    %v4109 = vmul.f32 %v4108, 1.442695
    %v4110 = vpow.pop %v4109
    %v4111 = vadd.f32 %v4110, 1.0
    %v4112 = vrcp.pop %v4111
    %v4113 = vmul.f32 1.0, %v4112
    %v4114 = vmul.f32 %v4106, %v3634
    %v4115 = vmul.f32 %v4100, %v4107
    %v4116 = vadd.f32 %v4114, %v4115
    %v4117 = vtanh.pop %v4116
    %v4118 = vmul.f32 %v4113, %v4117
    %4119 = vmatprep.subr.mxu0 %v490
    %4120 = vmatpush1.msra.mxu0 %v489
    %4121 = vmatprep.subr.mxu0 %v494
    %4122 = vmatpush1.msra.mxu0 %v493
    %4123 = vmatprep.subr.mxu0 %v498
    %4124 = vmatpush1.msra.mxu0 %v497
    %4125 = vmatprep.subr.mxu0 %v502
    %4126 = vmatpush1.msra.mxu0 %v501
    %4127 = vmatprep.subr.mxu0 %v506
    %4128 = vmatpush1.msra.mxu0 %v505
    %4129 = vmatprep.subr.mxu0 %v510
    %4130 = vmatpush1.msra.mxu0 %v509
    %4131 = vmatprep.subr.mxu0 %v514
    %4132 = vmatpush1.msra.mxu0 %v513
    %4133 = vmatprep.subr.mxu0 %v518
    %4134 = vmatpush1.msra.mxu0 %v517
    %4135 = vmatprep.subr.mxu0 %v522
    %4136 = vmatpush1.msra.mxu0 %v521
    %4137 = vmatprep.subr.mxu0 %v526
    %4138 = vmatpush1.msra.mxu0 %v525
    %4139 = vmatprep.subr.mxu0 %v530
    %4140 = vmatpush1.msra.mxu0 %v529
    %4141 = vmatprep.subr.mxu0 %v534
    %4142 = vmatpush1.msra.mxu0 %v533
    %4143 = vmatprep.subr.mxu0 %v538
    %4144 = vmatpush1.msra.mxu0 %v537
    %4145 = vmatprep.subr.mxu0 %v542
    %4146 = vmatpush1.msra.mxu0 %v541
    %4147 = vmatprep.subr.mxu0 %v546
    %4148 = vmatpush1.msra.mxu0 %v545
    %4149 = vmatprep.subr.mxu0 %v550
    %4150 = vmatpush1.msra.mxu0 %v549
    %4151 = vmatprep.subr.mxu0 0.0
    %4152 = vmatpush1.msra.mxu0 0.0
    %4153 = vmatprep.subr.mxu0 0.0
    %4154 = vmatpush1.msra.mxu0 0.0
    %4155 = vmatprep.subr.mxu0 0.0
    %4156 = vmatpush1.msra.mxu0 0.0
    %4157 = vmatprep.subr.mxu0 0.0
    %4158 = vmatpush1.msra.mxu0 0.0
    %4159 = vmatprep.subr.mxu0 0.0
    %4160 = vmatpush1.msra.mxu0 0.0
    %4161 = vmatprep.subr.mxu0 0.0
    %4162 = vmatpush1.msra.mxu0 0.0
    %4163 = vmatprep.subr.mxu0 0.0
    %4164 = vmatpush1.msra.mxu0 0.0
    %4165 = vmatprep.subr.mxu0 0.0
    %4166 = vmatpush1.msra.mxu0 0.0
    %4167 = vmatprep.subr.mxu0 0.0
    %4168 = vmatpush1.msra.mxu0 0.0
    %4169 = vmatprep.subr.mxu0 0.0
    %4170 = vmatpush1.msra.mxu0 0.0
    %4171 = vmatprep.subr.mxu0 0.0
    %4172 = vmatpush1.msra.mxu0 0.0
    %4173 = vmatprep.subr.mxu0 0.0
    %4174 = vmatpush1.msra.mxu0 0.0
    %4175 = vmatprep.subr.mxu0 0.0
    %4176 = vmatpush1.msra.mxu0 0.0
    %4177 = vmatprep.subr.mxu0 0.0
    %4178 = vmatpush1.msra.mxu0 0.0
    %4179 = vmatprep.subr.mxu0 0.0
    %4180 = vmatpush1.msra.mxu0 0.0
    %4181 = vmatprep.subr.mxu0 0.0
    %4182 = vmatpush1.msra.mxu0 0.0
    %4183 = vmatprep.mubr.f32.mxu0 0.0
    %4184 = vmatmul.mubr.f32.gmra.mrb[0].mxu0 %v3948
    %v4185 = vpop.f32.mrb[0].mxu0
    %v4186 = vadd.f32 0.0, %v4185
    %v4187 = vpop.f32.mrb[0].mxu0
    %v4188 = vadd.f32 0.0, %v4187
    %4189 = vdwg.mxu0
    %4190 = vmatprep.subr.mxu0 %v492
    %4191 = vmatpush1.msra.mxu0 %v491
    %4192 = vmatprep.subr.mxu0 %v496
    %4193 = vmatpush1.msra.mxu0 %v495
    %4194 = vmatprep.subr.mxu0 %v500
    %4195 = vmatpush1.msra.mxu0 %v499
    %4196 = vmatprep.subr.mxu0 %v504
    %4197 = vmatpush1.msra.mxu0 %v503
    %4198 = vmatprep.subr.mxu0 %v508
    %4199 = vmatpush1.msra.mxu0 %v507
    %4200 = vmatprep.subr.mxu0 %v512
    %4201 = vmatpush1.msra.mxu0 %v511
    %4202 = vmatprep.subr.mxu0 %v516
    %4203 = vmatpush1.msra.mxu0 %v515
    %4204 = vmatprep.subr.mxu0 %v520
    %4205 = vmatpush1.msra.mxu0 %v519
    %4206 = vmatprep.subr.mxu0 %v524
    %4207 = vmatpush1.msra.mxu0 %v523
    %4208 = vmatprep.subr.mxu0 %v528
    %4209 = vmatpush1.msra.mxu0 %v527
    %4210 = vmatprep.subr.mxu0 %v532
    %4211 = vmatpush1.msra.mxu0 %v531
    %4212 = vmatprep.subr.mxu0 %v536
    %4213 = vmatpush1.msra.mxu0 %v535
    %4214 = vmatprep.subr.mxu0 %v540
    %4215 = vmatpush1.msra.mxu0 %v539
    %4216 = vmatprep.subr.mxu0 %v544
    %4217 = vmatpush1.msra.mxu0 %v543
    %4218 = vmatprep.subr.mxu0 %v548
    %4219 = vmatpush1.msra.mxu0 %v547
    %4220 = vmatprep.subr.mxu0 %v552
    %4221 = vmatpush1.msra.mxu0 %v551
    %4222 = vmatprep.subr.mxu0 0.0
    %4223 = vmatpush1.msra.mxu0 0.0
    %4224 = vmatprep.subr.mxu0 0.0
    %4225 = vmatpush1.msra.mxu0 0.0
    %4226 = vmatprep.subr.mxu0 0.0
    %4227 = vmatpush1.msra.mxu0 0.0
    %4228 = vmatprep.subr.mxu0 0.0
    %4229 = vmatpush1.msra.mxu0 0.0
    %4230 = vmatprep.subr.mxu0 0.0
    %4231 = vmatpush1.msra.mxu0 0.0
    %4232 = vmatprep.subr.mxu0 0.0
    %4233 = vmatpush1.msra.mxu0 0.0
    %4234 = vmatprep.subr.mxu0 0.0
    %4235 = vmatpush1.msra.mxu0 0.0
    %4236 = vmatprep.subr.mxu0 0.0
    %4237 = vmatpush1.msra.mxu0 0.0
    %4238 = vmatprep.subr.mxu0 0.0
    %4239 = vmatpush1.msra.mxu0 0.0
    %4240 = vmatprep.subr.mxu0 0.0
    %4241 = vmatpush1.msra.mxu0 0.0
    %4242 = vmatprep.subr.mxu0 0.0
    %4243 = vmatpush1.msra.mxu0 0.0
    %4244 = vmatprep.subr.mxu0 0.0
    %4245 = vmatpush1.msra.mxu0 0.0
    %4246 = vmatprep.subr.mxu0 0.0
    %4247 = vmatpush1.msra.mxu0 0.0
    %4248 = vmatprep.subr.mxu0 0.0
    %4249 = vmatpush1.msra.mxu0 0.0
    %4250 = vmatprep.subr.mxu0 0.0
    %4251 = vmatpush1.msra.mxu0 0.0
    %4252 = vmatprep.subr.mxu0 0.0
    %4253 = vmatpush1.msra.mxu0 0.0
    %4254 = vmatprep.mubr.f32.mxu0 0.0
    %4255 = vmatmul.mubr.f32.gmra.mrb[0].mxu0 %v3948
    %v4256 = vpop.f32.mrb[0].mxu0
    %v4257 = vadd.f32 0.0, %v4256
    %v4258 = vpop.f32.mrb[0].mxu0
    %v4259 = vadd.f32 0.0, %v4258
    %4260 = vdwg.mxu0
    %4261 = vmatprep.subr.mxu0 %v426
    %4262 = vmatpush1.msra.mxu0 %v425
    %4263 = vmatprep.subr.mxu0 %v430
    %4264 = vmatpush1.msra.mxu0 %v429
    %4265 = vmatprep.subr.mxu0 %v434
    %4266 = vmatpush1.msra.mxu0 %v433
    %4267 = vmatprep.subr.mxu0 %v438
    %4268 = vmatpush1.msra.mxu0 %v437
    %4269 = vmatprep.subr.mxu0 %v442
    %4270 = vmatpush1.msra.mxu0 %v441
    %4271 = vmatprep.subr.mxu0 %v446
    %4272 = vmatpush1.msra.mxu0 %v445
    %4273 = vmatprep.subr.mxu0 %v450
    %4274 = vmatpush1.msra.mxu0 %v449
    %4275 = vmatprep.subr.mxu0 %v454
    %4276 = vmatpush1.msra.mxu0 %v453
    %4277 = vmatprep.subr.mxu0 %v458
    %4278 = vmatpush1.msra.mxu0 %v457
    %4279 = vmatprep.subr.mxu0 %v462
    %4280 = vmatpush1.msra.mxu0 %v461
    %4281 = vmatprep.subr.mxu0 %v466
    %4282 = vmatpush1.msra.mxu0 %v465
    %4283 = vmatprep.subr.mxu0 %v470
    %4284 = vmatpush1.msra.mxu0 %v469
    %4285 = vmatprep.subr.mxu0 %v474
    %4286 = vmatpush1.msra.mxu0 %v473
    %4287 = vmatprep.subr.mxu0 %v478
    %4288 = vmatpush1.msra.mxu0 %v477
    %4289 = vmatprep.subr.mxu0 %v482
    %4290 = vmatpush1.msra.mxu0 %v481
    %4291 = vmatprep.subr.mxu0 %v486
    %4292 = vmatpush1.msra.mxu0 %v485
    %4293 = vmatprep.subr.mxu0 0.0
    %4294 = vmatpush1.msra.mxu0 0.0
    %4295 = vmatprep.subr.mxu0 0.0
    %4296 = vmatpush1.msra.mxu0 0.0
    %4297 = vmatprep.subr.mxu0 0.0
    %4298 = vmatpush1.msra.mxu0 0.0
    %4299 = vmatprep.subr.mxu0 0.0
    %4300 = vmatpush1.msra.mxu0 0.0
    %4301 = vmatprep.subr.mxu0 0.0
    %4302 = vmatpush1.msra.mxu0 0.0
    %4303 = vmatprep.subr.mxu0 0.0
    %4304 = vmatpush1.msra.mxu0 0.0
    %4305 = vmatprep.subr.mxu0 0.0
    %4306 = vmatpush1.msra.mxu0 0.0
    %4307 = vmatprep.subr.mxu0 0.0
    %4308 = vmatpush1.msra.mxu0 0.0
    %4309 = vmatprep.subr.mxu0 0.0
    %4310 = vmatpush1.msra.mxu0 0.0
    %4311 = vmatprep.subr.mxu0 0.0
    %4312 = vmatpush1.msra.mxu0 0.0
    %4313 = vmatprep.subr.mxu0 0.0
    %4314 = vmatpush1.msra.mxu0 0.0
    %4315 = vmatprep.subr.mxu0 0.0
    %4316 = vmatpush1.msra.mxu0 0.0
    %4317 = vmatprep.subr.mxu0 0.0
    %4318 = vmatpush1.msra.mxu0 0.0
    %4319 = vmatprep.subr.mxu0 0.0
    %4320 = vmatpush1.msra.mxu0 0.0
    %4321 = vmatprep.subr.mxu0 0.0
    %4322 = vmatpush1.msra.mxu0 0.0
    %4323 = vmatprep.subr.mxu0 0.0
    %4324 = vmatpush1.msra.mxu0 0.0
    %4325 = vmatprep.mubr.f32.mxu0 0.0
    %4326 = vmatmul.mubr.f32.gmra.mrb[0].mxu0 %v4118
    %v4327 = vpop.f32.mrb[0].mxu0
    %v4328 = vadd.f32 %v4186, %v4327
    %v4329 = vpop.f32.mrb[0].mxu0
    %v4330 = vadd.f32 %v4188, %v4329
    %4331 = vdwg.mxu0
    %4332 = vmatprep.subr.mxu0 %v428
    %4333 = vmatpush1.msra.mxu0 %v427
    %4334 = vmatprep.subr.mxu0 %v432
    %4335 = vmatpush1.msra.mxu0 %v431
    %4336 = vmatprep.subr.mxu0 %v436
    %4337 = vmatpush1.msra.mxu0 %v435
    %4338 = vmatprep.subr.mxu0 %v440
    %4339 = vmatpush1.msra.mxu0 %v439
    %4340 = vmatprep.subr.mxu0 %v444
    %4341 = vmatpush1.msra.mxu0 %v443
    %4342 = vmatprep.subr.mxu0 %v448
    %4343 = vmatpush1.msra.mxu0 %v447
    %4344 = vmatprep.subr.mxu0 %v452
    %4345 = vmatpush1.msra.mxu0 %v451
    %4346 = vmatprep.subr.mxu0 %v456
    %4347 = vmatpush1.msra.mxu0 %v455
    %4348 = vmatprep.subr.mxu0 %v460
    %4349 = vmatpush1.msra.mxu0 %v459
    %4350 = vmatprep.subr.mxu0 %v464
    %4351 = vmatpush1.msra.mxu0 %v463
    %4352 = vmatprep.subr.mxu0 %v468
    %4353 = vmatpush1.msra.mxu0 %v467
    %4354 = vmatprep.subr.mxu0 %v472
    %4355 = vmatpush1.msra.mxu0 %v471
    %4356 = vmatprep.subr.mxu0 %v476
    %4357 = vmatpush1.msra.mxu0 %v475
    %4358 = vmatprep.subr.mxu0 %v480
    %4359 = vmatpush1.msra.mxu0 %v479
    %4360 = vmatprep.subr.mxu0 %v484
    %4361 = vmatpush1.msra.mxu0 %v483
    %4362 = vmatprep.subr.mxu0 %v488
    %4363 = vmatpush1.msra.mxu0 %v487
    %4364 = vmatprep.subr.mxu0 0.0
    %4365 = vmatpush1.msra.mxu0 0.0
    %4366 = vmatprep.subr.mxu0 0.0
    %4367 = vmatpush1.msra.mxu0 0.0
    %4368 = vmatprep.subr.mxu0 0.0
    %4369 = vmatpush1.msra.mxu0 0.0
    %4370 = vmatprep.subr.mxu0 0.0
    %4371 = vmatpush1.msra.mxu0 0.0
    %4372 = vmatprep.subr.mxu0 0.0
    %4373 = vmatpush1.msra.mxu0 0.0
    %4374 = vmatprep.subr.mxu0 0.0
    %4375 = vmatpush1.msra.mxu0 0.0
    %4376 = vmatprep.subr.mxu0 0.0
    %4377 = vmatpush1.msra.mxu0 0.0
    %4378 = vmatprep.subr.mxu0 0.0
    %4379 = vmatpush1.msra.mxu0 0.0
    %4380 = vmatprep.subr.mxu0 0.0
    %4381 = vmatpush1.msra.mxu0 0.0
    %4382 = vmatprep.subr.mxu0 0.0
    %4383 = vmatpush1.msra.mxu0 0.0
    %4384 = vmatprep.subr.mxu0 0.0
    %4385 = vmatpush1.msra.mxu0 0.0
    %4386 = vmatprep.subr.mxu0 0.0
    %4387 = vmatpush1.msra.mxu0 0.0
    %4388 = vmatprep.subr.mxu0 0.0
    %4389 = vmatpush1.msra.mxu0 0.0
    %4390 = vmatprep.subr.mxu0 0.0
    %4391 = vmatpush1.msra.mxu0 0.0
    %4392 = vmatprep.subr.mxu0 0.0
    %4393 = vmatpush1.msra.mxu0 0.0
    %4394 = vmatprep.subr.mxu0 0.0
    %4395 = vmatpush1.msra.mxu0 0.0
    %4396 = vmatprep.mubr.f32.mxu0 0.0
    %4397 = vmatmul.mubr.f32.gmra.mrb[0].mxu0 %v4118
    %v4398 = vpop.f32.mrb[0].mxu0
    %v4399 = vadd.f32 %v4257, %v4398
    %v4400 = vpop.f32.mrb[0].mxu0
    %v4401 = vadd.f32 %v4259, %v4400
    %4402 = vdwg.mxu0
    %v4403 = vadd.f32 %v4328, %v1012
    %v4404 = vadd.f32 %v4330, %v1016
    %v4405 = vadd.f32 %v4399, %v1020
    %v4406 = vadd.f32 %v4401, %v1024
    %v4407 = vxor.u32 %v4403, 2147483648
    %v4408 = vmul.f32 %v4407, 1.442695
    %v4409 = vpow.pop %v4408
    %v4410 = vadd.f32 %v4409, 1.0
    %v4411 = vrcp.pop %v4410
    %v4412 = vmul.f32 1.0, %v4411
    %v4413 = vxor.u32 %v4404, 2147483648
    %v4414 = vmul.f32 %v4413, 1.442695
    %v4415 = vpow.pop %v4414
    %v4416 = vadd.f32 %v4415, 1.0
    %v4417 = vrcp.pop %v4416
    %v4418 = vmul.f32 1.0, %v4417
    %v4419 = vtanh.pop %v4405
    %v4420 = vxor.u32 %v4406, 2147483648
    %v4421 = vmul.f32 %v4420, 1.442695
    %v4422 = vpow.pop %v4421
    %v4423 = vadd.f32 %v4422, 1.0
    %v4424 = vrcp.pop %v4423
    %v4425 = vmul.f32 1.0, %v4424
    %v4426 = vmul.f32 %v4418, %v3946
    %v4427 = vmul.f32 %v4412, %v4419
    %v4428 = vadd.f32 %v4426, %v4427
    %v4429 = vtanh.pop %v4428
    %v4430 = vmul.f32 %v4425, %v4429
    %v4431 = vld [vmem:[%s7] sm:$0xff]
    %v4432 = vld [vmem:[%s7 + $0x8] sm:$0xff]
    %v4433 = vld [vmem:[%s7 + $0x10] sm:$0xff]
    %v4434 = vld [vmem:[%s7 + $0x18] sm:$0xff]
    %v4435 = vld [vmem:[%s7 + $0x20] sm:$0xff]
    %v4436 = vld [vmem:[%s7 + $0x28] sm:$0xff]
    %v4437 = vld [vmem:[%s7 + $0x30] sm:$0xff]
    %v4438 = vld [vmem:[%s7 + $0x38] sm:$0xff]
    %v4439 = vld [vmem:[%s7 + $0x40] sm:$0xff]
    %v4440 = vld [vmem:[%s7 + $0x48] sm:$0xff]
    %v4441 = vld [vmem:[%s7 + $0x50] sm:$0xff]
    %v4442 = vld [vmem:[%s7 + $0x58] sm:$0xff]
    %v4443 = vld [vmem:[%s7 + $0x60] sm:$0xff]
    %v4444 = vld [vmem:[%s7 + $0x68] sm:$0xff]
    %v4445 = vld [vmem:[%s7 + $0x70] sm:$0xff]
    %v4446 = vld [vmem:[%s7 + $0x78] sm:$0xff]
    %v4447 = vld [vmem:[%s8] sm:$0x1]
    %v4449 = vlaneseq
    %v4450 = vshrl.u32 %v4449, 7
    %v4451 = vsub.s32 0, %v4450
    %v4452 = vrot.slane %v4447, %v4451
    %4454 = vmatprep.subr.mxu0 0.0
    %4455 = vmatpush1.msra.mxu0 %v4431
    %4456 = vmatprep.subr.mxu0 0.0
    %4457 = vmatpush1.msra.mxu0 %v4432
    %4458 = vmatprep.subr.mxu0 0.0
    %4459 = vmatpush1.msra.mxu0 %v4433
    %4460 = vmatprep.subr.mxu0 0.0
    %4461 = vmatpush1.msra.mxu0 %v4434
    %4462 = vmatprep.subr.mxu0 0.0
    %4463 = vmatpush1.msra.mxu0 %v4435
    %4464 = vmatprep.subr.mxu0 0.0
    %4465 = vmatpush1.msra.mxu0 %v4436
    %4466 = vmatprep.subr.mxu0 0.0
    %4467 = vmatpush1.msra.mxu0 %v4437
    %4468 = vmatprep.subr.mxu0 0.0
    %4469 = vmatpush1.msra.mxu0 %v4438
    %4470 = vmatprep.subr.mxu0 0.0
    %4471 = vmatpush1.msra.mxu0 %v4439
    %4472 = vmatprep.subr.mxu0 0.0
    %4473 = vmatpush1.msra.mxu0 %v4440
    %4474 = vmatprep.subr.mxu0 0.0
    %4475 = vmatpush1.msra.mxu0 %v4441
    %4476 = vmatprep.subr.mxu0 0.0
    %4477 = vmatpush1.msra.mxu0 %v4442
    %4478 = vmatprep.subr.mxu0 0.0
    %4479 = vmatpush1.msra.mxu0 %v4443
    %4480 = vmatprep.subr.mxu0 0.0
    %4481 = vmatpush1.msra.mxu0 %v4444
    %4482 = vmatprep.subr.mxu0 0.0
    %4483 = vmatpush1.msra.mxu0 %v4445
    %4484 = vmatprep.subr.mxu0 0.0
    %4485 = vmatpush1.msra.mxu0 %v4446
    %4486 = vmatprep.subr.mxu0 0.0
    %4487 = vmatpush1.msra.mxu0 0.0
    %4488 = vmatprep.subr.mxu0 0.0
    %4489 = vmatpush1.msra.mxu0 0.0
    %4490 = vmatprep.subr.mxu0 0.0
    %4491 = vmatpush1.msra.mxu0 0.0
    %4492 = vmatprep.subr.mxu0 0.0
    %4493 = vmatpush1.msra.mxu0 0.0
    %4494 = vmatprep.subr.mxu0 0.0
    %4495 = vmatpush1.msra.mxu0 0.0
    %4496 = vmatprep.subr.mxu0 0.0
    %4497 = vmatpush1.msra.mxu0 0.0
    %4498 = vmatprep.subr.mxu0 0.0
    %4499 = vmatpush1.msra.mxu0 0.0
    %4500 = vmatprep.subr.mxu0 0.0
    %4501 = vmatpush1.msra.mxu0 0.0
    %4502 = vmatprep.subr.mxu0 0.0
    %4503 = vmatpush1.msra.mxu0 0.0
    %4504 = vmatprep.subr.mxu0 0.0
    %4505 = vmatpush1.msra.mxu0 0.0
    %4506 = vmatprep.subr.mxu0 0.0
    %4507 = vmatpush1.msra.mxu0 0.0
    %4508 = vmatprep.subr.mxu0 0.0
    %4509 = vmatpush1.msra.mxu0 0.0
    %4510 = vmatprep.subr.mxu0 0.0
    %4511 = vmatpush1.msra.mxu0 0.0
    %4512 = vmatprep.subr.mxu0 0.0
    %4513 = vmatpush1.msra.mxu0 0.0
    %4514 = vmatprep.subr.mxu0 0.0
    %4515 = vmatpush1.msra.mxu0 0.0
    %4516 = vmatprep.subr.mxu0 0.0
    %4517 = vmatpush1.msra.mxu0 0.0
    %4518 = vmatprep.mubr.f32.mxu0 0.0
    %4519 = vmatmul.mubr.f32.gmra.mrb[0].mxu0 %v1056
    %v4520 = vpop.f32.mrb[0].mxu0
    %v4521 = vadd.f32 %v4452, %v4520
    %v4522 = vpop.f32.mrb[0].mxu0
    %4523 = vmatprep.mubr.f32.mxu0 0.0
    %4524 = vmatmul.mubr.f32.gmra.mrb[0].mxu0 %v1538
    %v4525 = vpop.f32.mrb[0].mxu0
    %v4526 = vadd.f32 %v4452, %v4525
    %v4527 = vpop.f32.mrb[0].mxu0
    %4528 = vmatprep.mubr.f32.mxu0 0.0
    %4529 = vmatmul.mubr.f32.gmra.mrb[0].mxu0 %v2020
    %v4530 = vpop.f32.mrb[0].mxu0
    %v4531 = vadd.f32 %v4452, %v4530
    %v4532 = vpop.f32.mrb[0].mxu0
    %4533 = vmatprep.mubr.f32.mxu0 0.0
    %4534 = vmatmul.mubr.f32.gmra.mrb[0].mxu0 %v2502
    %v4535 = vpop.f32.mrb[0].mxu0
    %v4536 = vadd.f32 %v4452, %v4535
    %v4537 = vpop.f32.mrb[0].mxu0
    %4538 = vmatprep.mubr.f32.mxu0 0.0
    %4539 = vmatmul.mubr.f32.gmra.mrb[0].mxu0 %v2984
    %v4540 = vpop.f32.mrb[0].mxu0
    %v4541 = vadd.f32 %v4452, %v4540
    %v4542 = vpop.f32.mrb[0].mxu0
    %4543 = vmatprep.mubr.f32.mxu0 0.0
    %4544 = vmatmul.mubr.f32.gmra.mrb[0].mxu0 %v3466
    %v4545 = vpop.f32.mrb[0].mxu0
    %v4546 = vadd.f32 %v4452, %v4545
    %v4547 = vpop.f32.mrb[0].mxu0
    %4548 = vmatprep.mubr.f32.mxu0 0.0
    %4549 = vmatmul.mubr.f32.gmra.mrb[0].mxu0 %v3948
    %v4550 = vpop.f32.mrb[0].mxu0
    %v4551 = vadd.f32 %v4452, %v4550
    %v4552 = vpop.f32.mrb[0].mxu0
    %4553 = vmatprep.mubr.f32.mxu0 0.0
    %4554 = vmatmul.mubr.f32.gmra.mrb[0].mxu0 %v4430
    %v4555 = vpop.f32.mrb[0].mxu0
    %v4556 = vadd.f32 %v4452, %v4555
    %v4557 = vpop.f32.mrb[0].mxu0
    %4558 = vdwg.mxu0
    %4559 = vmax.xlane.f32.xlu0 %v4521
    %v4560 = vpop.xlane.xlu0 %4559
    %4561 = vmax.xlane.f32.xlu0 %v4526
    %v4562 = vpop.xlane.xlu0 %4561
    %4563 = vmax.xlane.f32.xlu0 %v4531
    %v4564 = vpop.xlane.xlu0 %4563
    %4565 = vmax.xlane.f32.xlu0 %v4536
    %v4566 = vpop.xlane.xlu0 %4565
    %4567 = vmax.xlane.f32.xlu0 %v4541
    %v4568 = vpop.xlane.xlu0 %4567
    %4569 = vmax.xlane.f32.xlu0 %v4546
    %v4570 = vpop.xlane.xlu0 %4569
    %4571 = vmax.xlane.f32.xlu0 %v4551
    %v4572 = vpop.xlane.xlu0 %4571
    %4573 = vmax.xlane.f32.xlu0 %v4556
    %v4574 = vpop.xlane.xlu0 %4573
    %v4575 = vsub.f32 %v4521, %v4560
    %v4576 = vsub.f32 %v4526, %v4562
    %v4577 = vsub.f32 %v4531, %v4564
    %v4578 = vsub.f32 %v4536, %v4566
    %v4579 = vsub.f32 %v4541, %v4568
    %v4580 = vsub.f32 %v4546, %v4570
    %v4581 = vsub.f32 %v4551, %v4572
    %v4582 = vsub.f32 %v4556, %v4574
    %v4583 = vmul.f32 %v4575, 1.442695
    %v4584 = vpow.pop %v4583
    %v4585 = vmul.f32 %v4576, 1.442695
    %v4586 = vpow.pop %v4585
    %v4587 = vmul.f32 %v4577, 1.442695
    %v4588 = vpow.pop %v4587
    %v4589 = vmul.f32 %v4578, 1.442695
    %v4590 = vpow.pop %v4589
    %v4591 = vmul.f32 %v4579, 1.442695
    %v4592 = vpow.pop %v4591
    %v4593 = vmul.f32 %v4580, 1.442695
    %v4594 = vpow.pop %v4593
    %v4595 = vmul.f32 %v4581, 1.442695
    %v4596 = vpow.pop %v4595
    %v4597 = vmul.f32 %v4582, 1.442695
    %v4598 = vpow.pop %v4597
    %4599 = vadd.xlane.f32.xlu0 %v4584
    %v4600 = vpop.xlane.xlu0 %4599
    %4601 = vadd.xlane.f32.xlu0 %v4586
    %v4602 = vpop.xlane.xlu0 %4601
    %4603 = vadd.xlane.f32.xlu0 %v4588
    %v4604 = vpop.xlane.xlu0 %4603
    %4605 = vadd.xlane.f32.xlu0 %v4590
    %v4606 = vpop.xlane.xlu0 %4605
    %4607 = vadd.xlane.f32.xlu0 %v4592
    %v4608 = vpop.xlane.xlu0 %4607
    %4609 = vadd.xlane.f32.xlu0 %v4594
    %v4610 = vpop.xlane.xlu0 %4609
    %4611 = vadd.xlane.f32.xlu0 %v4596
    %v4612 = vpop.xlane.xlu0 %4611
    %4613 = vadd.xlane.f32.xlu0 %v4598
    %v4614 = vpop.xlane.xlu0 %4613
    %v4615 = vlog2.pop %v4600
    %v4616 = vmul.f32 %v4615, 0.6931472
    %v4617 = vlog2.pop %v4602
    %v4618 = vmul.f32 %v4617, 0.6931472
    %v4619 = vlog2.pop %v4604
    %v4620 = vmul.f32 %v4619, 0.6931472
    %v4621 = vlog2.pop %v4606
    %v4622 = vmul.f32 %v4621, 0.6931472
    %v4623 = vlog2.pop %v4608
    %v4624 = vmul.f32 %v4623, 0.6931472
    %v4625 = vlog2.pop %v4610
    %v4626 = vmul.f32 %v4625, 0.6931472
    %v4627 = vlog2.pop %v4612
    %v4628 = vmul.f32 %v4627, 0.6931472
    %v4629 = vlog2.pop %v4614
    %v4630 = vmul.f32 %v4629, 0.6931472
    %v4631 = vadd.f32 %v4560, %v4616
    %v4632 = vadd.f32 %v4562, %v4618
    %v4633 = vadd.f32 %v4564, %v4620
    %v4634 = vadd.f32 %v4566, %v4622
    %v4635 = vadd.f32 %v4568, %v4624
    %v4636 = vadd.f32 %v4570, %v4626
    %v4637 = vadd.f32 %v4572, %v4628
    %v4638 = vadd.f32 %v4574, %v4630
    %v4639 = vsub.f32 %v4521, %v4631
    %v4640 = vsub.f32 %v4526, %v4632
    %v4641 = vsub.f32 %v4531, %v4633
    %v4642 = vsub.f32 %v4536, %v4634
    %v4643 = vsub.f32 %v4541, %v4635
    %v4644 = vsub.f32 %v4546, %v4636
    %v4645 = vsub.f32 %v4551, %v4637
    %v4646 = vsub.f32 %v4556, %v4638
    %v4647 = vlaneseq
    %v4648 = vand.u32 %v4647, 127
    %v4649 = vld [vmem:[%s9] sm:$0xff]
    %v4650 = vld [vmem:[%s9 + $0x8] sm:$0xff]
    %v4651 = vld [vmem:[%s9 + $0x10] sm:$0xff]
    %v4652 = vld [vmem:[%s9 + $0x18] sm:$0xff]
    %v4653 = vld [vmem:[%s9 + $0x20] sm:$0xff]
    %v4654 = vld [vmem:[%s9 + $0x28] sm:$0xff]
    %v4655 = vld [vmem:[%s9 + $0x30] sm:$0xff]
    %v4656 = vld [vmem:[%s9 + $0x38] sm:$0xff]
    %4657 = vset.pattern.permute.xlu0 0
    %4658 = vperm.xlu0 %4657, %v4649
    %v4659 = vpop.permute.xlu0 %4658
    %4660 = vset.pattern.permute.xlu0 0
    %4661 = vperm.xlu0 %4660, %v4650
    %v4662 = vpop.permute.xlu0 %4661
    %4663 = vset.pattern.permute.xlu0 0
    %4664 = vperm.xlu0 %4663, %v4651
    %v4665 = vpop.permute.xlu0 %4664
    %4666 = vset.pattern.permute.xlu0 0
    %4667 = vperm.xlu0 %4666, %v4652
    %v4668 = vpop.permute.xlu0 %4667
    %4669 = vset.pattern.permute.xlu0 0
    %4670 = vperm.xlu0 %4669, %v4653
    %v4671 = vpop.permute.xlu0 %4670
    %4672 = vset.pattern.permute.xlu0 0
    %4673 = vperm.xlu0 %4672, %v4654
    %v4674 = vpop.permute.xlu0 %4673
    %4675 = vset.pattern.permute.xlu0 0
    %4676 = vperm.xlu0 %4675, %v4655
    %v4677 = vpop.permute.xlu0 %4676
    %4678 = vset.pattern.permute.xlu0 0
    %4679 = vperm.xlu0 %4678, %v4656
    %v4680 = vpop.permute.xlu0 %4679
    %vm4681 = vcmp.eq.s32.totalorder %v4648, %v4659
    %vm4682 = vcmp.eq.s32.totalorder %v4648, %v4662
    %vm4683 = vcmp.eq.s32.totalorder %v4648, %v4665
    %vm4684 = vcmp.eq.s32.totalorder %v4648, %v4668
    %vm4685 = vcmp.eq.s32.totalorder %v4648, %v4671
    %vm4686 = vcmp.eq.s32.totalorder %v4648, %v4674
    %vm4687 = vcmp.eq.s32.totalorder %v4648, %v4677
    %vm4688 = vcmp.eq.s32.totalorder %v4648, %v4680
    %v4689 = vsel %vm4681, 1, 0
    %v4690 = vsel %vm4682, 1, 0
    %v4691 = vsel %vm4683, 1, 0
    %v4692 = vsel %vm4684, 1, 0
    %v4693 = vsel %vm4685, 1, 0
    %v4694 = vsel %vm4686, 1, 0
    %v4695 = vsel %vm4687, 1, 0
    %v4696 = vsel %vm4688, 1, 0
    %v4697 = vcvt.s32.f32 %v4689
    %v4698 = vcvt.s32.f32 %v4690
    %v4699 = vcvt.s32.f32 %v4691
    %v4700 = vcvt.s32.f32 %v4692
    %v4701 = vcvt.s32.f32 %v4693
    %v4702 = vcvt.s32.f32 %v4694
    %v4703 = vcvt.s32.f32 %v4695
    %v4704 = vcvt.s32.f32 %v4696
    %v4705 = vmul.f32 %v4639, %v4697
    %v4706 = vmul.f32 %v4640, %v4698
    %v4707 = vmul.f32 %v4641, %v4699
    %v4708 = vmul.f32 %v4642, %v4700
    %v4709 = vmul.f32 %v4643, %v4701
    %v4710 = vmul.f32 %v4644, %v4702
    %v4711 = vmul.f32 %v4645, %v4703
    %v4712 = vmul.f32 %v4646, %v4704
    %4713 = vadd.xlane.f32.xlu0 %v4705
    %v4714 = vpop.xlane.xlu0 %4713
    %4715 = vadd.xlane.f32.xlu0 %v4706
    %v4716 = vpop.xlane.xlu0 %4715
    %4717 = vadd.xlane.f32.xlu0 %v4707
    %v4718 = vpop.xlane.xlu0 %4717
    %4719 = vadd.xlane.f32.xlu0 %v4708
    %v4720 = vpop.xlane.xlu0 %4719
    %4721 = vadd.xlane.f32.xlu0 %v4709
    %v4722 = vpop.xlane.xlu0 %4721
    %4723 = vadd.xlane.f32.xlu0 %v4710
    %v4724 = vpop.xlane.xlu0 %4723
    %4725 = vadd.xlane.f32.xlu0 %v4711
    %v4726 = vpop.xlane.xlu0 %4725
    %4727 = vadd.xlane.f32.xlu0 %v4712
    %v4728 = vpop.xlane.xlu0 %4727
    %vm4729 = vcmask 7168
    %4730 = vst.msk [vmem:[%s11] sm:$0xff] %vm4729, %v4714
    %4731 = vst.msk [vmem:[%s11 + $0x8] sm:$0xff] %vm4729, %v4716
    %4732 = vst.msk [vmem:[%s11 + $0x10] sm:$0xff] %vm4729, %v4718
    %4733 = vst.msk [vmem:[%s11 + $0x18] sm:$0xff] %vm4729, %v4720
    %4734 = vst.msk [vmem:[%s11 + $0x20] sm:$0xff] %vm4729, %v4722
    %4735 = vst.msk [vmem:[%s11 + $0x28] sm:$0xff] %vm4729, %v4724
    %4736 = vst.msk [vmem:[%s11 + $0x30] sm:$0xff] %vm4729, %v4726
    %4737 = vst.msk [vmem:[%s11 + $0x38] sm:$0xff] %vm4729, %v4728
    %v4738 = vld [vmem:[%s10] sm:$0xff]
    %v4739 = vld [vmem:[%s10 + $0x8] sm:$0xff]
    %v4740 = vld [vmem:[%s10 + $0x10] sm:$0xff]
    %v4741 = vld [vmem:[%s10 + $0x18] sm:$0xff]
    %v4742 = vld [vmem:[%s10 + $0x20] sm:$0xff]
    %v4743 = vld [vmem:[%s10 + $0x28] sm:$0xff]
    %v4744 = vld [vmem:[%s10 + $0x30] sm:$0xff]
    %v4745 = vld [vmem:[%s10 + $0x38] sm:$0xff]
    %v4746 = vmul.f32 %v4714, %v4738
    %v4747 = vmul.f32 %v4716, %v4739
    %v4748 = vmul.f32 %v4718, %v4740
    %v4749 = vmul.f32 %v4720, %v4741
    %v4750 = vmul.f32 %v4722, %v4742
    %v4751 = vmul.f32 %v4724, %v4743
    %v4752 = vmul.f32 %v4726, %v4744
    %v4753 = vmul.f32 %v4728, %v4745
    %v4754 = vsel %vm4729, %v4746, 0.0
    %v4755 = vsel %vm4729, %v4747, 0.0
    %v4756 = vadd.f32 %v4754, %v4755
    %v4757 = vsel %vm4729, %v4748, 0.0
    %v4758 = vadd.f32 %v4756, %v4757
    %v4759 = vsel %vm4729, %v4749, 0.0
    %v4760 = vadd.f32 %v4758, %v4759
    %v4761 = vsel %vm4729, %v4750, 0.0
    %v4762 = vadd.f32 %v4760, %v4761
    %v4763 = vsel %vm4729, %v4751, 0.0
    %v4764 = vadd.f32 %v4762, %v4763
    %v4765 = vsel %vm4729, %v4752, 0.0
    %v4766 = vadd.f32 %v4764, %v4765
    %v4767 = vsel %vm4729, %v4753, 0.0
    %v4768 = vadd.f32 %v4766, %v4767
    %4769 = vadd.xlane.f32.xlu0 %v4768
    %v4770 = vpop.xlane.xlu0 %4769
    %v4771 = vrot.slane %v4770, 4
    %v4772 = vadd.f32 %v4770, %v4771
    %v4773 = vrot.slane %v4772, 2
    %v4774 = vadd.f32 %v4772, %v4773
    %v4775 = vrot.slane %v4774, 1
    %v4776 = vadd.f32 %v4774, %v4775
    %s4777 = vtos %v4776
    %s4778 = ssub.f32 0.0, %s4777
    %s4779 = scalar_lea.smem [#allocation2], 0
    %4780 = sst [smem:[%s4779]] %s4778
    // Predicated region
    $region46: #{network_forward.1} parent=1 // pred_check
      _
    $region47: #{network_forward.1} parent=1 // pred_check_branch
      %4782 = sbr.rel (0) target = $region49
    $region48: #{network_forward.1} parent=1 // pred_region
      _
    $region49: #{network_forward.1} parent=1 // pred_fallthru
      _
    // Predicated region
    $region50: #{network_forward.1} parent=1 // pred_check
      _
    $region51: #{network_forward.1} parent=1 // pred_check_branch
      %4784 = sbr.rel (0) target = $region53
    $region52: #{network_forward.1} parent=1 // pred_region
      %s4786 = ssub.s32 16, 16
      %4787 = vsyncadd [#allocation3], %s4786
      %4790 = dma.smem_to_hbm [#allocation2], 16, %s12, [#allocation3]
    $region53: #{network_forward.1} parent=1 // pred_fallthru
      _
    // Predicated region
    $region54: #{network_forward.1} parent=1 // pred_check
      _
    $region55: #{network_forward.1} parent=1 // pred_check_branch
      %4792 = sbr.rel (0) target = $region57
    $region56: #{network_forward.1} parent=1 // pred_region
      _
    $region57: #{network_forward.1} parent=1 // pred_fallthru
      _
    // Predicated region
    $region58: #{network_forward.1} parent=1 // pred_check
      _
    $region59: #{network_forward.1} parent=1 // pred_check_branch
      %4794 = sbr.rel (0) target = $region61
    $region60: #{network_forward.1} parent=1 // pred_region
      %4795 = dma.done [#allocation3], 16
    $region61: #{network_forward.1} parent=1 // pred_fallthru
      _
    %4796 = sfence
    %4797 = vsyncpa [#allocation3], 1

</llo_original>
